<compile_context>
chip_gen: v7x
topology: tpu7x:2x2x1
jax: 0.10.0
libtpu: 0.0.40
codegen_flags: <defaults>
</compile_context>

<pallas_src>
import functools

import jax
import jax.numpy as jnp
from jax.experimental import pallas as pl
from jax.experimental.pallas import tpu as pltpu

# Logical (PyTorch) dims.
D_IN, D_H, D_Z = 784, 400, 100
# Lane-aligned (multiple-of-128) padded dims.
D_IN_P, D_H_P, D_Z_P = 896, 512, 128


def _round_up(n, m):
    return (n + m - 1) // m * m


def _tpu_generation():
    """Best-effort TPU generation detection (5 / 6 / 7)."""
    try:
        kind = jax.devices()[0].device_kind.lower()
    except Exception:  # pragma: no cover - defensive
        kind = ""
    if "v7" in kind:
        return 7
    if "v6" in kind:
        return 6
    if "v5" in kind:
        return 5
    return 6  # default to a modern bf16-VPU part


def vae_kernel(x_ref, w1_ref, b1_ref, w2_ref, b2_ref,
               w3_ref, b3_ref, w4_ref, b4_ref,
               recon_ref, z_ref, *, bf16_epilogue):
    # x tile: (TB, 896) bf16 (already cast in the wrapper -> no per-tile cast).
    # Weights: bf16 (MXU inputs).  Biases: f32.  Accumulation: f32.
    x = x_ref[...]

    # ---- encode ----
    h1 = jnp.dot(x, w1_ref[...], preferred_element_type=jnp.float32) + b1_ref[...]
    h1 = jnp.maximum(h1, 0.0)                                     # relu (f32 VPU)
    z = jnp.dot(h1.astype(jnp.bfloat16), w2_ref[...],
                preferred_element_type=jnp.float32) + b2_ref[...]

    # ---- decode ----
    h3 = jnp.dot(z.astype(jnp.bfloat16), w3_ref[...],
                 preferred_element_type=jnp.float32) + b3_ref[...]
    h3 = jnp.maximum(h3, 0.0)                                     # relu
    pre = jnp.dot(h3.astype(jnp.bfloat16), w4_ref[...],
                  preferred_element_type=jnp.float32)

    if bf16_epilogue:
        # v6e/v7x: bf16 VPU/EUP -> bias-add + tanh on half the element bytes,
        # pairs with the bf16 recon store.
        recon = jnp.tanh(pre.astype(jnp.bfloat16)
                         + b4_ref[...].astype(jnp.bfloat16))
    else:
        # v5e: no bf16 VPU/EUP -> keep the epilogue in f32, cast only for store.
        recon = jnp.tanh(pre + b4_ref[...]).astype(jnp.bfloat16)

    recon_ref[...] = recon
    z_ref[...] = z


def vae_forward(x, padded_params, *, tb=None):
    """x: (B, 1, 28, 28) or (B, 784).
    Returns (recon (B, 784) bf16, z (B, 100) f32)."""
    w1, b1, w2, b2, w3, b3, w4, b4 = padded_params

    gen = _tpu_generation()
    bf16_epilogue = gen >= 6

    x2d = x.reshape(-1, D_IN)                    # == torch x.view(-1, 784)
    B = x2d.shape[0]

    # Per-generation batch tile (multiple of 8 sublanes).
    if tb is None:
        tb = 512 if gen == 7 else 1024
    if gen == 7:
        # Keep at least 2 grid steps so the "parallel" batch axis can shard
        # across both v7x TensorCores; also keeps the 64 MiB VMEM safe.
        TB = min(tb, max(8, _round_up(-(-B // 2), 8)))
    else:
        TB = min(tb, _round_up(B, 8))
    Bp = _round_up(B, TB)
    nb = Bp // TB

    # Zero-pad batch to a tile multiple, features to lane-aligned width, and
    # cast to bf16 once here (halves the largest input DMA, no in-kernel cast).
    x_pad = (jnp.zeros((Bp, D_IN_P), jnp.bfloat16)
             .at[:B, :D_IN].set(x2d.astype(jnp.bfloat16)))

    # Weights/biases: full-array blocks, constant index_map -> DMA'd once and
    # kept VMEM-resident across the batch grid.  Buffered(1): no pointless
    # double-buffer allocation for blocks that never change.
    def weight_spec(a):
        return pl.BlockSpec(a.shape, lambda i: (0,) * a.ndim,
                            pipeline_mode=pl.Buffered(1))

    flops = 2 * Bp * (D_IN_P * D_H_P + D_H_P * D_Z_P
                      + D_Z_P * D_H_P + D_H_P * D_IN_P)
    bytes_accessed = (
        sum(int(a.size) * a.dtype.itemsize for a in padded_params)
        + int(x_pad.size) * 2            # bf16 input
        + Bp * D_IN_P * 2                # bf16 recon
        + Bp * D_Z_P * 4                 # f32 z
    )

    recon_p, z_p = pl.pallas_call(
        functools.partial(vae_kernel, bf16_epilogue=bf16_epilogue),
        grid=(nb,),
        in_specs=[
            pl.BlockSpec((TB, D_IN_P), lambda i: (i, 0)),         # x: batch-tiled
            weight_spec(w1), weight_spec(b1),
            weight_spec(w2), weight_spec(b2),
            weight_spec(w3), weight_spec(b3),
            weight_spec(w4), weight_spec(b4),
        ],
        out_specs=(
            pl.BlockSpec((TB, D_IN_P), lambda i: (i, 0)),         # recon (bf16)
            pl.BlockSpec((TB, D_Z_P), lambda i: (i, 0)),          # z (f32)
        ),
        out_shape=(
            jax.ShapeDtypeStruct((Bp, D_IN_P), jnp.bfloat16),
            jax.ShapeDtypeStruct((Bp, D_Z_P), jnp.float32),
        ),
        compiler_params=pltpu.CompilerParams(
            dimension_semantics=("parallel",),      # megacore sharding on v7x
            vmem_limit_bytes=32 << 20,              # portable across v5e/v6e/v7x
        ),
        cost_estimate=pl.CostEstimate(
            flops=flops,
            transcendentals=Bp * D_IN_P,
            bytes_accessed=bytes_accessed,
        ),
    )(x_pad, w1, b1, w2, b2, w3, b3, w4, b4)

    # Slice back to logical PyTorch shapes.  If downstream can consume the
    # padded (Bp, 896)/(Bp, 128) layout, drop these slices to avoid the extra
    # XLA copy.
    return recon_p[:B, :D_IN], z_p[:B, :D_Z]


def init_params(key):
    """torch.nn.Linear-style init (U[-1/sqrt(in), 1/sqrt(in)]), stored as
    (in_features, out_features) f32, unpadded."""
    def linear(k, fan_in, fan_out):
        kw, kb = jax.random.split(k)
        bound = 1.0 / jnp.sqrt(fan_in)
        w = jax.random.uniform(kw, (fan_in, fan_out), jnp.float32, -bound, bound)
        b = jax.random.uniform(kb, (1, fan_out), jnp.float32, -bound, bound)
        return w, b

    k1, k2, k3, k4 = jax.random.split(key, 4)
    w1, b1 = linear(k1, D_IN, D_H)
    w2, b2 = linear(k2, D_H, D_Z)
    w3, b3 = linear(k3, D_Z, D_H)
    w4, b4 = linear(k4, D_H, D_IN)
    return (w1, b1, w2, b2, w3, b3, w4, b4)


def prepare_params(params):
    """Zero-pad every feature dim to a multiple of 128 and cast weights to bf16
    (MXU inputs).  Biases stay f32.  Done once, outside the kernel, so padded
    lanes contribute exactly zero."""
    w1, b1, w2, b2, w3, b3, w4, b4 = params

    def pad_w(w, rows, cols):
        out = jnp.zeros((rows, cols), jnp.float32).at[:w.shape[0], :w.shape[1]].set(w)
        return out.astype(jnp.bfloat16)

    def pad_b(b, cols):
        return jnp.zeros((1, cols), jnp.float32).at[:, :b.shape[1]].set(b)

    return (pad_w(w1, D_IN_P, D_H_P), pad_b(b1, D_H_P),
            pad_w(w2, D_H_P, D_Z_P), pad_b(b2, D_Z_P),
            pad_w(w3, D_Z_P, D_H_P), pad_b(b3, D_H_P),
            pad_w(w4, D_H_P, D_IN_P), pad_b(b4, D_IN_P))


def reference_forward(x, padded_params, *, bf16_epilogue):
    """Pure-JAX reference with the same bf16-matmul / f32-accumulate recipe."""
    w1, b1, w2, b2, w3, b3, w4, b4 = padded_params
    x2d = x.reshape(-1, D_IN)
    xp = jnp.pad(x2d, ((0, 0), (0, D_IN_P - D_IN))).astype(jnp.bfloat16)
    h1 = jnp.maximum(jnp.dot(xp, w1, preferred_element_type=jnp.float32) + b1, 0.0)
    z = jnp.dot(h1.astype(jnp.bfloat16), w2,
                preferred_element_type=jnp.float32) + b2
    h3 = jnp.maximum(jnp.dot(z.astype(jnp.bfloat16), w3,
                             preferred_element_type=jnp.float32) + b3, 0.0)
    pre = jnp.dot(h3.astype(jnp.bfloat16), w4, preferred_element_type=jnp.float32)
    if bf16_epilogue:
        recon = jnp.tanh(pre.astype(jnp.bfloat16) + b4.astype(jnp.bfloat16))
    else:
        recon = jnp.tanh(pre + b4)
    return recon[:, :D_IN], z[:, :D_Z]


if __name__ == "__main__":
    key = jax.random.PRNGKey(0)
    kx, kp = jax.random.split(key)

    B = 8
    x = jax.random.normal(kx, (B, 1, 28, 28), dtype=jnp.float32)  # NCHW MNIST-like
    params = init_params(kp)
    padded_params = prepare_params(params)   # one-time pad + bf16 cast

    recon, z = vae_forward(x, padded_params)
    jax.block_until_ready(recon)
    jax.block_until_ready(z)

    bf16_epi = _tpu_generation() >= 6
    recon_ref, z_ref = reference_forward(x, padded_params, bf16_epilogue=bf16_epi)

    assert recon.shape == (B, D_IN) and z.shape == (B, D_Z)
    # NOTE: bf16 weights / bf16 recon quantize vs. a pure-f32 torch run (~1e-3..1e-2).
    assert jnp.allclose(recon.astype(jnp.float32), recon_ref.astype(jnp.float32),
                        atol=2e-2, rtol=2e-2), \
        float(jnp.max(jnp.abs(recon.astype(jnp.float32)
                              - recon_ref.astype(jnp.float32))))
    assert jnp.allclose(z, z_ref, atol=2e-2, rtol=2e-2), \
        float(jnp.max(jnp.abs(z - z_ref)))

    print("KERNEL_OK")
</pallas_src>

<mosaic_0001>
module attributes {stable_mosaic.version = 11 : i64} {
  func.func @vae_kernel(%arg0: i32, %arg1: memref<8x896xbf16, #tpu.memory_space<vmem>>, %arg2: memref<896x512xbf16, #tpu.memory_space<vmem>>, %arg3: memref<1x512xf32, #tpu.memory_space<vmem>>, %arg4: memref<512x128xbf16, #tpu.memory_space<vmem>>, %arg5: memref<1x128xf32, #tpu.memory_space<vmem>>, %arg6: memref<128x512xbf16, #tpu.memory_space<vmem>>, %arg7: memref<1x512xf32, #tpu.memory_space<vmem>>, %arg8: memref<512x896xbf16, #tpu.memory_space<vmem>>, %arg9: memref<1x896xf32, #tpu.memory_space<vmem>>, %arg10: memref<8x896xbf16, #tpu.memory_space<vmem>>, %arg11: memref<8x128xf32, #tpu.memory_space<vmem>>) attributes {dimension_semantics = [#tpu.dimension_semantics<parallel>], iteration_bounds = array<i64: 1>, scalar_prefetch = 0 : i64, scratch_operands = 0 : i64, tpu.core_type = #tpu.core_type<tc>, window_params = [{transform_indices = @transform_0, window_bounds = array<i64: 8, 896>}, {pipeline_mode = #tpu.pipeline_mode<synchronous>, transform_indices = @transform_1, window_bounds = array<i64: 896, 512>}, {pipeline_mode = #tpu.pipeline_mode<synchronous>, transform_indices = @transform_2, window_bounds = array<i64: 1, 512>}, {pipeline_mode = #tpu.pipeline_mode<synchronous>, transform_indices = @transform_3, window_bounds = array<i64: 512, 128>}, {pipeline_mode = #tpu.pipeline_mode<synchronous>, transform_indices = @transform_4, window_bounds = array<i64: 1, 128>}, {pipeline_mode = #tpu.pipeline_mode<synchronous>, transform_indices = @transform_5, window_bounds = array<i64: 128, 512>}, {pipeline_mode = #tpu.pipeline_mode<synchronous>, transform_indices = @transform_6, window_bounds = array<i64: 1, 512>}, {pipeline_mode = #tpu.pipeline_mode<synchronous>, transform_indices = @transform_7, window_bounds = array<i64: 512, 896>}, {pipeline_mode = #tpu.pipeline_mode<synchronous>, transform_indices = @transform_8, window_bounds = array<i64: 1, 896>}, {transform_indices = @transform_9, window_bounds = array<i64: 8, 896>}, {transform_indices = @transform_10, window_bounds = array<i64: 8, 128>}]} {
    %c0 = arith.constant 0 : index
    %c0_0 = arith.constant 0 : index
    %0 = vector.load %arg1[%c0, %c0_0] : memref<8x896xbf16, #tpu.memory_space<vmem>>, vector<8x896xbf16>
    %c0_1 = arith.constant 0 : index
    %c0_2 = arith.constant 0 : index
    %1 = vector.load %arg2[%c0_1, %c0_2] : memref<896x512xbf16, #tpu.memory_space<vmem>>, vector<896x512xbf16>
    %cst = arith.constant dense<0.000000e+00> : vector<8x512xf32>
    %2 = tpu.matmul %0, %1, %cst {dimension_numbers = #tpu.dot_dimension_numbers<[1], [0], [0], [1], [0, 0, 1, 1], [], []>} : vector<8x896xbf16>, vector<896x512xbf16>, vector<8x512xf32> -> vector<8x512xf32>
    %c0_3 = arith.constant 0 : index
    %c0_4 = arith.constant 0 : index
    %3 = vector.load %arg3[%c0_3, %c0_4] : memref<1x512xf32, #tpu.memory_space<vmem>>, vector<1x512xf32>
    %4 = vector.broadcast %3 : vector<1x512xf32> to vector<8x512xf32>
    %5 = arith.addf %2, %4 : vector<8x512xf32>
    %cst_5 = arith.constant 0.000000e+00 : f32
    %6 = vector.broadcast %cst_5 : f32 to vector<8x512xf32>
    %7 = arith.maximumf %5, %6 : vector<8x512xf32>
    %8 = arith.truncf %7 : vector<8x512xf32> to vector<8x512xbf16>
    %c0_6 = arith.constant 0 : index
    %c0_7 = arith.constant 0 : index
    %9 = vector.load %arg4[%c0_6, %c0_7] : memref<512x128xbf16, #tpu.memory_space<vmem>>, vector<512x128xbf16>
    %cst_8 = arith.constant dense<0.000000e+00> : vector<8x128xf32>
    %10 = tpu.matmul %8, %9, %cst_8 {dimension_numbers = #tpu.dot_dimension_numbers<[1], [0], [0], [1], [0, 0, 1, 1], [], []>} : vector<8x512xbf16>, vector<512x128xbf16>, vector<8x128xf32> -> vector<8x128xf32>
    %c0_9 = arith.constant 0 : index
    %c0_10 = arith.constant 0 : index
    %11 = vector.load %arg5[%c0_9, %c0_10] : memref<1x128xf32, #tpu.memory_space<vmem>>, vector<1x128xf32>
    %12 = vector.broadcast %11 : vector<1x128xf32> to vector<8x128xf32>
    %13 = arith.addf %10, %12 : vector<8x128xf32>
    %14 = arith.truncf %13 : vector<8x128xf32> to vector<8x128xbf16>
    %c0_11 = arith.constant 0 : index
    %c0_12 = arith.constant 0 : index
    %15 = vector.load %arg6[%c0_11, %c0_12] : memref<128x512xbf16, #tpu.memory_space<vmem>>, vector<128x512xbf16>
    %cst_13 = arith.constant dense<0.000000e+00> : vector<8x512xf32>
    %16 = tpu.matmul %14, %15, %cst_13 {dimension_numbers = #tpu.dot_dimension_numbers<[1], [0], [0], [1], [0, 0, 1, 1], [], []>} : vector<8x128xbf16>, vector<128x512xbf16>, vector<8x512xf32> -> vector<8x512xf32>
    %c0_14 = arith.constant 0 : index
    %c0_15 = arith.constant 0 : index
    %17 = vector.load %arg7[%c0_14, %c0_15] : memref<1x512xf32, #tpu.memory_space<vmem>>, vector<1x512xf32>
    %18 = vector.broadcast %17 : vector<1x512xf32> to vector<8x512xf32>
    %19 = arith.addf %16, %18 : vector<8x512xf32>
    %cst_16 = arith.constant 0.000000e+00 : f32
    %20 = vector.broadcast %cst_16 : f32 to vector<8x512xf32>
    %21 = arith.maximumf %19, %20 : vector<8x512xf32>
    %22 = arith.truncf %21 : vector<8x512xf32> to vector<8x512xbf16>
    %c0_17 = arith.constant 0 : index
    %c0_18 = arith.constant 0 : index
    %23 = vector.load %arg8[%c0_17, %c0_18] : memref<512x896xbf16, #tpu.memory_space<vmem>>, vector<512x896xbf16>
    %cst_19 = arith.constant dense<0.000000e+00> : vector<8x896xf32>
    %24 = tpu.matmul %22, %23, %cst_19 {dimension_numbers = #tpu.dot_dimension_numbers<[1], [0], [0], [1], [0, 0, 1, 1], [], []>} : vector<8x512xbf16>, vector<512x896xbf16>, vector<8x896xf32> -> vector<8x896xf32>
    %25 = arith.truncf %24 : vector<8x896xf32> to vector<8x896xbf16>
    %c0_20 = arith.constant 0 : index
    %c0_21 = arith.constant 0 : index
    %26 = vector.load %arg9[%c0_20, %c0_21] : memref<1x896xf32, #tpu.memory_space<vmem>>, vector<1x896xf32>
    %27 = arith.truncf %26 : vector<1x896xf32> to vector<1x896xbf16>
    %28 = vector.broadcast %27 : vector<1x896xbf16> to vector<8x896xbf16>
    %29 = arith.addf %25, %28 : vector<8x896xbf16>
    %30 = math.tanh %29 : vector<8x896xbf16>
    %c0_22 = arith.constant 0 : index
    %c0_23 = arith.constant 0 : index
    %31 = vector.load %arg10[%c0_22, %c0_23] : memref<8x896xbf16, #tpu.memory_space<vmem>>, vector<8x896xbf16>
    tpu.vector_store %arg10[%c0_22, %c0_23], %30 {strides = array<i32>} : memref<8x896xbf16, #tpu.memory_space<vmem>>, vector<8x896xbf16>,
    %c0_24 = arith.constant 0 : index
    %c0_25 = arith.constant 0 : index
    %32 = vector.load %arg11[%c0_24, %c0_25] : memref<8x128xf32, #tpu.memory_space<vmem>>, vector<8x128xf32>
    tpu.vector_store %arg11[%c0_24, %c0_25], %13 {strides = array<i32>} : memref<8x128xf32, #tpu.memory_space<vmem>>, vector<8x128xf32>,
    return
  }
  func.func @transform_0(%arg0: i32) -> (i32, i32) {
    %c0_i32 = arith.constant 0 : i32
    %c0_i32_0 = arith.constant 0 : i32
    return %arg0, %c0_i32 : i32, i32
  }
  func.func @transform_1(%arg0: i32) -> (i32, i32) {
    %c0_i32 = arith.constant 0 : i32
    %c0_i32_0 = arith.constant 0 : i32
    %c0_i32_1 = arith.constant 0 : i32
    return %c0_i32, %c0_i32_0 : i32, i32
  }
  func.func @transform_2(%arg0: i32) -> (i32, i32) {
    %c0_i32 = arith.constant 0 : i32
    %c0_i32_0 = arith.constant 0 : i32
    %c0_i32_1 = arith.constant 0 : i32
    return %c0_i32, %c0_i32_0 : i32, i32
  }
  func.func @transform_3(%arg0: i32) -> (i32, i32) {
    %c0_i32 = arith.constant 0 : i32
    %c0_i32_0 = arith.constant 0 : i32
    %c0_i32_1 = arith.constant 0 : i32
    return %c0_i32, %c0_i32_0 : i32, i32
  }
  func.func @transform_4(%arg0: i32) -> (i32, i32) {
    %c0_i32 = arith.constant 0 : i32
    %c0_i32_0 = arith.constant 0 : i32
    %c0_i32_1 = arith.constant 0 : i32
    return %c0_i32, %c0_i32_0 : i32, i32
  }
  func.func @transform_5(%arg0: i32) -> (i32, i32) {
    %c0_i32 = arith.constant 0 : i32
    %c0_i32_0 = arith.constant 0 : i32
    %c0_i32_1 = arith.constant 0 : i32
    return %c0_i32, %c0_i32_0 : i32, i32
  }
  func.func @transform_6(%arg0: i32) -> (i32, i32) {
    %c0_i32 = arith.constant 0 : i32
    %c0_i32_0 = arith.constant 0 : i32
    %c0_i32_1 = arith.constant 0 : i32
    return %c0_i32, %c0_i32_0 : i32, i32
  }
  func.func @transform_7(%arg0: i32) -> (i32, i32) {
    %c0_i32 = arith.constant 0 : i32
    %c0_i32_0 = arith.constant 0 : i32
    %c0_i32_1 = arith.constant 0 : i32
    return %c0_i32, %c0_i32_0 : i32, i32
  }
  func.func @transform_8(%arg0: i32) -> (i32, i32) {
    %c0_i32 = arith.constant 0 : i32
    %c0_i32_0 = arith.constant 0 : i32
    %c0_i32_1 = arith.constant 0 : i32
    return %c0_i32, %c0_i32_0 : i32, i32
  }
  func.func @transform_9(%arg0: i32) -> (i32, i32) {
    %c0_i32 = arith.constant 0 : i32
    %c0_i32_0 = arith.constant 0 : i32
    return %arg0, %c0_i32 : i32, i32
  }
  func.func @transform_10(%arg0: i32) -> (i32, i32) {
    %c0_i32 = arith.constant 0 : i32
    %c0_i32_0 = arith.constant 0 : i32
    return %arg0, %c0_i32 : i32, i32
  }
}

</mosaic_0001>

<llo_original>
// kernel: tpu_custom_call.1
$region0: #{tpu_custom_call.1}
  #allocation0 [shape = 'u32[]', space=smem, size = 0x4, offset = 0x4, fixed_abs, tag = 'smem constant byte address 0x4 - core index']
  #allocation1 [shape = 'u32[144,128]{1,0:T(1,128)}', space=vmem, size = 0x12000, scoped, tag = 'internal scratch']
  %s0 = inlined_call_operand.hbm [shape: bf16[8,896], index: 0, kind: input, shape index: {}]
  %s1 = inlined_call_operand.hbm [shape: bf16[896,512], index: 1, kind: input, shape index: {}]
  %s2 = inlined_call_operand.vmem [shape: f32[1,512], index: 2, kind: input, shape index: {}]
  %s3 = inlined_call_operand.hbm [shape: bf16[512,128], index: 3, kind: input, shape index: {}]
  %s4 = inlined_call_operand.hbm [shape: f32[1,128], index: 4, kind: input, shape index: {}]
  %s5 = inlined_call_operand.hbm [shape: bf16[128,512], index: 5, kind: input, shape index: {}]
  %s6 = inlined_call_operand.vmem [shape: f32[1,512], index: 6, kind: input, shape index: {}]
  %s7 = inlined_call_operand.hbm [shape: bf16[512,896], index: 7, kind: input, shape index: {}]
  %s8 = inlined_call_operand.vmem [shape: f32[1,896], index: 8, kind: input, shape index: {}]
  %s9 = inlined_call_operand.hbm [shape: bf16[8,896], index: 9, kind: output, shape index: {0}]
  %s10 = inlined_call_operand.hbm [shape: f32[8,128], index: 10, kind: output, shape index: {1}]
  %11 = xla_tuple %s9, %s10
  %s12 = sld [smem:[#allocation0]]
  $region78: #{tpu_custom_call.1} parent=0
    _
  %s14 = ssub.s32 1, %s12
  %s15 = scalar_select 0, %s14, %s12
  $region1: #{tpu_custom_call.1} parent=0
    #allocation2 [shape = 'u8[14336]{0}', space=vmem, size = 0x3800, scoped, tag = 'input window, operand 0, single buffered']
    #allocation3 [shape = 's32[1]{0}', space=sflag, size = 0x4, scoped, tag = 'scoped memory for tpu_custom_call.1']
    #allocation4 [shape = 's32[1]{0}', space=sflag, size = 0x4, scoped, tag = 'scoped memory for tpu_custom_call.1']
    #allocation5 [shape = 'u8[917504]{0}', space=vmem, size = 0xe0000, scoped, tag = 'input window, operand 1, single buffered']
    #allocation6 [shape = 's32[1]{0}', space=sflag, size = 0x4, scoped, tag = 'scoped memory for tpu_custom_call.1']
    #allocation7 [shape = 'u8[131072]{0}', space=vmem, size = 0x20000, scoped, tag = 'input window, operand 3, single buffered']
    #allocation8 [shape = 'u8[512]{0}', space=vmem, size = 0x400, scoped, tag = 'input window, operand 4, single buffered']
    #allocation9 [shape = 's32[1]{0}', space=sflag, size = 0x4, scoped, tag = 'scoped memory for tpu_custom_call.1']
    #allocation10 [shape = 'u8[131072]{0}', space=vmem, size = 0x20000, scoped, tag = 'input window, operand 5, single buffered']
    #allocation11 [shape = 'u8[917504]{0}', space=vmem, size = 0xe0000, scoped, tag = 'input window, operand 7, single buffered']
    #allocation12 [shape = 's32[1]{0}', space=sflag, size = 0x4, scoped, tag = 'scoped memory for tpu_custom_call.1']
    #allocation13 [shape = 'u8[14336]{0}', space=vmem, size = 0x3800, scoped, tag = 'output window, operand 0, single buffered']
    #allocation14 [shape = 'u8[4096]{0}', space=vmem, size = 0x1000, scoped, tag = 'output window, operand 1, single buffered']
    #allocation15 [shape = 's32[1]{0}', space=sflag, size = 0x4, scoped, tag = 'scoped memory for tpu_custom_call.1']
    %16 = vsyncpa [#allocation3], 0
    %17 = vsyncpa [#allocation6], 0
    %18 = vsyncpa [#allocation9], 0
    %19 = vsyncpa [#allocation12], 0
    %20 = vsyncpa [#allocation4], 0
    %21 = vsyncpa [#allocation15], 0
    // Predicated region
    $region2: #{tpu_custom_call.1} parent=1 // pred_check
      _
    $region3: #{tpu_custom_call.1} parent=1 // pred_check_branch
      %23 = sbr.rel (0) target = $region5
    $region4: #{tpu_custom_call.1} parent=1 // pred_region
      %s25 = ssub.s32 448, 448
      %26 = vsyncadd [#allocation3], %s25
      %s28 = sshll.u32 [#allocation2], 4
      %s29 = int_to_ptr.vmem [resolvable:$true] %s28
      %31 = dma.hbm_to_vmem [thread:$0]  %s0, 448, %s29, [#allocation3]
    $region5: #{tpu_custom_call.1} parent=1 // pred_fallthru
      _
    // Predicated region
    $region6: #{tpu_custom_call.1} parent=1 // pred_check
      _
    $region7: #{tpu_custom_call.1} parent=1 // pred_check_branch
      %33 = sbr.rel (0) target = $region9
    $region8: #{tpu_custom_call.1} parent=1 // pred_region
      %s35 = ssub.s32 28672, 28672
      %36 = vsyncadd [#allocation6], %s35
      %s37 = sshll.u32 [#allocation5], 4
      %s38 = int_to_ptr.vmem [resolvable:$true] %s37
      %43 = dma.hbm_to_vmem [thread:$0]  %s1, 28672, %s38, [#allocation6], 256, 256, 16
    $region9: #{tpu_custom_call.1} parent=1 // pred_fallthru
      _
    // Predicated region
    $region10: #{tpu_custom_call.1} parent=1 // pred_check
      _
    $region11: #{tpu_custom_call.1} parent=1 // pred_check_branch
      %45 = sbr.rel (0) target = $region13
    $region12: #{tpu_custom_call.1} parent=1 // pred_region
      _
    $region13: #{tpu_custom_call.1} parent=1 // pred_fallthru
      _
    // Predicated region
    $region14: #{tpu_custom_call.1} parent=1 // pred_check
      _
    $region15: #{tpu_custom_call.1} parent=1 // pred_check_branch
      %47 = sbr.rel (0) target = $region17
    $region16: #{tpu_custom_call.1} parent=1 // pred_region
      %s49 = ssub.s32 4096, 4096
      %50 = vsyncadd [#allocation6], %s49
      %s51 = sshll.u32 [#allocation7], 4
      %s52 = int_to_ptr.vmem [resolvable:$true] %s51
      %57 = dma.hbm_to_vmem [thread:$0]  %s3, 4096, %s52, [#allocation6], 64, 64, 4
    $region17: #{tpu_custom_call.1} parent=1 // pred_fallthru
      _
    // Predicated region
    $region18: #{tpu_custom_call.1} parent=1 // pred_check
      _
    $region19: #{tpu_custom_call.1} parent=1 // pred_check_branch
      %59 = sbr.rel (0) target = $region21
    $region20: #{tpu_custom_call.1} parent=1 // pred_region
      %s61 = ssub.s32 16, 16
      %62 = vsyncadd [#allocation9], %s61
      %s64 = sshll.u32 [#allocation8], 4
      %s65 = int_to_ptr.vmem [resolvable:$true] %s64
      %67 = dma.hbm_to_vmem [thread:$0]  %s4, 16, %s65, [#allocation9]
    $region21: #{tpu_custom_call.1} parent=1 // pred_fallthru
      _
    // Predicated region
    $region22: #{tpu_custom_call.1} parent=1 // pred_check
      _
    $region23: #{tpu_custom_call.1} parent=1 // pred_check_branch
      %69 = sbr.rel (0) target = $region25
    $region24: #{tpu_custom_call.1} parent=1 // pred_region
      %s71 = ssub.s32 4096, 4096
      %72 = vsyncadd [#allocation9], %s71
      %s73 = sshll.u32 [#allocation10], 4
      %s74 = int_to_ptr.vmem [resolvable:$true] %s73
      %79 = dma.hbm_to_vmem [thread:$0]  %s5, 4096, %s74, [#allocation9], 256, 256, 16
    $region25: #{tpu_custom_call.1} parent=1 // pred_fallthru
      _
    // Predicated region
    $region26: #{tpu_custom_call.1} parent=1 // pred_check
      _
    $region27: #{tpu_custom_call.1} parent=1 // pred_check_branch
      %81 = sbr.rel (0) target = $region29
    $region28: #{tpu_custom_call.1} parent=1 // pred_region
      _
    $region29: #{tpu_custom_call.1} parent=1 // pred_fallthru
      _
    // Predicated region
    $region30: #{tpu_custom_call.1} parent=1 // pred_check
      _
    $region31: #{tpu_custom_call.1} parent=1 // pred_check_branch
      %83 = sbr.rel (0) target = $region33
    $region32: #{tpu_custom_call.1} parent=1 // pred_region
      %s85 = ssub.s32 28672, 28672
      %86 = vsyncadd [#allocation12], %s85
      %s87 = sshll.u32 [#allocation11], 4
      %s88 = int_to_ptr.vmem [resolvable:$true] %s87
      %93 = dma.hbm_to_vmem [thread:$0]  %s7, 28672, %s88, [#allocation12], 448, 448, 28
    $region33: #{tpu_custom_call.1} parent=1 // pred_fallthru
      _
    // Predicated region
    $region34: #{tpu_custom_call.1} parent=1 // pred_check
      _
    $region35: #{tpu_custom_call.1} parent=1 // pred_check_branch
      %95 = sbr.rel (0) target = $region37
    $region36: #{tpu_custom_call.1} parent=1 // pred_region
      _
    $region37: #{tpu_custom_call.1} parent=1 // pred_fallthru
      _
    // Predicated region
    $region38: #{tpu_custom_call.1} parent=1 // pred_check
      _
    $region39: #{tpu_custom_call.1} parent=1 // pred_check_branch
      %97 = sbr.rel (0) target = $region41
    $region40: #{tpu_custom_call.1} parent=1 // pred_region
      %98 = dma.done [#allocation3], 448
    $region41: #{tpu_custom_call.1} parent=1 // pred_fallthru
      _
    // Predicated region
    $region42: #{tpu_custom_call.1} parent=1 // pred_check
      _
    $region43: #{tpu_custom_call.1} parent=1 // pred_check_branch
      %100 = sbr.rel (0) target = $region45
    $region44: #{tpu_custom_call.1} parent=1 // pred_region
      %101 = dma.done [#allocation6], 28672
    $region45: #{tpu_custom_call.1} parent=1 // pred_fallthru
      _
    // Predicated region
    $region46: #{tpu_custom_call.1} parent=1 // pred_check
      _
    $region47: #{tpu_custom_call.1} parent=1 // pred_check_branch
      %103 = sbr.rel (0) target = $region49
    $region48: #{tpu_custom_call.1} parent=1 // pred_region
      %104 = dma.done [#allocation6], 4096
    $region49: #{tpu_custom_call.1} parent=1 // pred_fallthru
      _
    // Predicated region
    $region50: #{tpu_custom_call.1} parent=1 // pred_check
      _
    $region51: #{tpu_custom_call.1} parent=1 // pred_check_branch
      %106 = sbr.rel (0) target = $region53
    $region52: #{tpu_custom_call.1} parent=1 // pred_region
      %107 = dma.done [#allocation9], 16
    $region53: #{tpu_custom_call.1} parent=1 // pred_fallthru
      _
    // Predicated region
    $region54: #{tpu_custom_call.1} parent=1 // pred_check
      _
    $region55: #{tpu_custom_call.1} parent=1 // pred_check_branch
      %109 = sbr.rel (0) target = $region57
    $region56: #{tpu_custom_call.1} parent=1 // pred_region
      %110 = dma.done [#allocation9], 4096
    $region57: #{tpu_custom_call.1} parent=1 // pred_fallthru
      _
    // Predicated region
    $region58: #{tpu_custom_call.1} parent=1 // pred_check
      _
    $region59: #{tpu_custom_call.1} parent=1 // pred_check_branch
      %112 = sbr.rel (0) target = $region61
    $region60: #{tpu_custom_call.1} parent=1 // pred_region
      %113 = dma.done [#allocation12], 28672
    $region61: #{tpu_custom_call.1} parent=1 // pred_fallthru
      _
    %v115 = vld [vmem:[#allocation2] sm:$0xff]
    %v116 = vld [vmem:[#allocation2 + $0x8] sm:$0xff]
    %v117 = vld [vmem:[#allocation2 + $0x10] sm:$0xff]
    %v118 = vld [vmem:[#allocation2 + $0x18] sm:$0xf]
    %v119 = vld [vmem:[#allocation5] sm:$0xff]
    %v120 = vld [vmem:[#allocation5 + $0x8] sm:$0xff]
    %v121 = vld [vmem:[#allocation5 + $0x10] sm:$0xff]
    %v122 = vld [vmem:[#allocation5 + $0x18] sm:$0xff]
    %v123 = vld [vmem:[#allocation5 + $0x20] sm:$0xff]
    %v124 = vld [vmem:[#allocation5 + $0x28] sm:$0xff]
    %v125 = vld [vmem:[#allocation5 + $0x30] sm:$0xff]
    %v126 = vld [vmem:[#allocation5 + $0x38] sm:$0xff]
    %v127 = vld [vmem:[#allocation5 + $0x40] sm:$0xff]
    %v128 = vld [vmem:[#allocation5 + $0x48] sm:$0xff]
    %v129 = vld [vmem:[#allocation5 + $0x50] sm:$0xff]
    %v130 = vld [vmem:[#allocation5 + $0x58] sm:$0xff]
    %v131 = vld [vmem:[#allocation5 + $0x60] sm:$0xff]
    %v132 = vld [vmem:[#allocation5 + $0x68] sm:$0xff]
    %v133 = vld [vmem:[#allocation5 + $0x70] sm:$0xff]
    %v134 = vld [vmem:[#allocation5 + $0x78] sm:$0xff]
    %v135 = vld [vmem:[#allocation5 + $0x80] sm:$0xff]
    %v136 = vld [vmem:[#allocation5 + $0x88] sm:$0xff]
    %v137 = vld [vmem:[#allocation5 + $0x90] sm:$0xff]
    %v138 = vld [vmem:[#allocation5 + $0x98] sm:$0xff]
    %v139 = vld [vmem:[#allocation5 + $0xa0] sm:$0xff]
    %v140 = vld [vmem:[#allocation5 + $0xa8] sm:$0xff]
    %v141 = vld [vmem:[#allocation5 + $0xb0] sm:$0xff]
    %v142 = vld [vmem:[#allocation5 + $0xb8] sm:$0xff]
    %v143 = vld [vmem:[#allocation5 + $0xc0] sm:$0xff]
    %v144 = vld [vmem:[#allocation5 + $0xc8] sm:$0xff]
    %v145 = vld [vmem:[#allocation5 + $0xd0] sm:$0xff]
    %v146 = vld [vmem:[#allocation5 + $0xd8] sm:$0xff]
    %v147 = vld [vmem:[#allocation5 + $0xe0] sm:$0xff]
    %v148 = vld [vmem:[#allocation5 + $0xe8] sm:$0xff]
    %v149 = vld [vmem:[#allocation5 + $0xf0] sm:$0xff]
    %v150 = vld [vmem:[#allocation5 + $0xf8] sm:$0xff]
    %v151 = vld [vmem:[#allocation5 + $0x100] sm:$0xff]
    %v152 = vld [vmem:[#allocation5 + $0x108] sm:$0xff]
    %v153 = vld [vmem:[#allocation5 + $0x110] sm:$0xff]
    %v154 = vld [vmem:[#allocation5 + $0x118] sm:$0xff]
    %v155 = vld [vmem:[#allocation5 + $0x120] sm:$0xff]
    %v156 = vld [vmem:[#allocation5 + $0x128] sm:$0xff]
    %v157 = vld [vmem:[#allocation5 + $0x130] sm:$0xff]
    %v158 = vld [vmem:[#allocation5 + $0x138] sm:$0xff]
    %v159 = vld [vmem:[#allocation5 + $0x140] sm:$0xff]
    %v160 = vld [vmem:[#allocation5 + $0x148] sm:$0xff]
    %v161 = vld [vmem:[#allocation5 + $0x150] sm:$0xff]
    %v162 = vld [vmem:[#allocation5 + $0x158] sm:$0xff]
    %v163 = vld [vmem:[#allocation5 + $0x160] sm:$0xff]
    %v164 = vld [vmem:[#allocation5 + $0x168] sm:$0xff]
    %v165 = vld [vmem:[#allocation5 + $0x170] sm:$0xff]
    %v166 = vld [vmem:[#allocation5 + $0x178] sm:$0xff]
    %v167 = vld [vmem:[#allocation5 + $0x180] sm:$0xff]
    %v168 = vld [vmem:[#allocation5 + $0x188] sm:$0xff]
    %v169 = vld [vmem:[#allocation5 + $0x190] sm:$0xff]
    %v170 = vld [vmem:[#allocation5 + $0x198] sm:$0xff]
    %v171 = vld [vmem:[#allocation5 + $0x1a0] sm:$0xff]
    %v172 = vld [vmem:[#allocation5 + $0x1a8] sm:$0xff]
    %v173 = vld [vmem:[#allocation5 + $0x1b0] sm:$0xff]
    %v174 = vld [vmem:[#allocation5 + $0x1b8] sm:$0xff]
    %v175 = vld [vmem:[#allocation5 + $0x1c0] sm:$0xff]
    %v176 = vld [vmem:[#allocation5 + $0x1c8] sm:$0xff]
    %v177 = vld [vmem:[#allocation5 + $0x1d0] sm:$0xff]
    %v178 = vld [vmem:[#allocation5 + $0x1d8] sm:$0xff]
    %v179 = vld [vmem:[#allocation5 + $0x1e0] sm:$0xff]
    %v180 = vld [vmem:[#allocation5 + $0x1e8] sm:$0xff]
    %v181 = vld [vmem:[#allocation5 + $0x1f0] sm:$0xff]
    %v182 = vld [vmem:[#allocation5 + $0x1f8] sm:$0xff]
    %v183 = vld [vmem:[#allocation5 + $0x200] sm:$0xff]
    %v184 = vld [vmem:[#allocation5 + $0x208] sm:$0xff]
    %v185 = vld [vmem:[#allocation5 + $0x210] sm:$0xff]
    %v186 = vld [vmem:[#allocation5 + $0x218] sm:$0xff]
    %v187 = vld [vmem:[#allocation5 + $0x220] sm:$0xff]
    %v188 = vld [vmem:[#allocation5 + $0x228] sm:$0xff]
    %v189 = vld [vmem:[#allocation5 + $0x230] sm:$0xff]
    %v190 = vld [vmem:[#allocation5 + $0x238] sm:$0xff]
    %v191 = vld [vmem:[#allocation5 + $0x240] sm:$0xff]
    %v192 = vld [vmem:[#allocation5 + $0x248] sm:$0xff]
    %v193 = vld [vmem:[#allocation5 + $0x250] sm:$0xff]
    %v194 = vld [vmem:[#allocation5 + $0x258] sm:$0xff]
    %v195 = vld [vmem:[#allocation5 + $0x260] sm:$0xff]
    %v196 = vld [vmem:[#allocation5 + $0x268] sm:$0xff]
    %v197 = vld [vmem:[#allocation5 + $0x270] sm:$0xff]
    %v198 = vld [vmem:[#allocation5 + $0x278] sm:$0xff]
    %v199 = vld [vmem:[#allocation5 + $0x280] sm:$0xff]
    %v200 = vld [vmem:[#allocation5 + $0x288] sm:$0xff]
    %v201 = vld [vmem:[#allocation5 + $0x290] sm:$0xff]
    %v202 = vld [vmem:[#allocation5 + $0x298] sm:$0xff]
    %v203 = vld [vmem:[#allocation5 + $0x2a0] sm:$0xff]
    %v204 = vld [vmem:[#allocation5 + $0x2a8] sm:$0xff]
    %v205 = vld [vmem:[#allocation5 + $0x2b0] sm:$0xff]
    %v206 = vld [vmem:[#allocation5 + $0x2b8] sm:$0xff]
    %v207 = vld [vmem:[#allocation5 + $0x2c0] sm:$0xff]
    %v208 = vld [vmem:[#allocation5 + $0x2c8] sm:$0xff]
    %v209 = vld [vmem:[#allocation5 + $0x2d0] sm:$0xff]
    %v210 = vld [vmem:[#allocation5 + $0x2d8] sm:$0xff]
    %v211 = vld [vmem:[#allocation5 + $0x2e0] sm:$0xff]
    %v212 = vld [vmem:[#allocation5 + $0x2e8] sm:$0xff]
    %v213 = vld [vmem:[#allocation5 + $0x2f0] sm:$0xff]
    %v214 = vld [vmem:[#allocation5 + $0x2f8] sm:$0xff]
    %v215 = vld [vmem:[#allocation5 + $0x300] sm:$0xff]
    %v216 = vld [vmem:[#allocation5 + $0x308] sm:$0xff]
    %v217 = vld [vmem:[#allocation5 + $0x310] sm:$0xff]
    %v218 = vld [vmem:[#allocation5 + $0x318] sm:$0xff]
    %v219 = vld [vmem:[#allocation5 + $0x320] sm:$0xff]
    %v220 = vld [vmem:[#allocation5 + $0x328] sm:$0xff]
    %v221 = vld [vmem:[#allocation5 + $0x330] sm:$0xff]
    %v222 = vld [vmem:[#allocation5 + $0x338] sm:$0xff]
    %v223 = vld [vmem:[#allocation5 + $0x340] sm:$0xff]
    %v224 = vld [vmem:[#allocation5 + $0x348] sm:$0xff]
    %v225 = vld [vmem:[#allocation5 + $0x350] sm:$0xff]
    %v226 = vld [vmem:[#allocation5 + $0x358] sm:$0xff]
    %v227 = vld [vmem:[#allocation5 + $0x360] sm:$0xff]
    %v228 = vld [vmem:[#allocation5 + $0x368] sm:$0xff]
    %v229 = vld [vmem:[#allocation5 + $0x370] sm:$0xff]
    %v230 = vld [vmem:[#allocation5 + $0x378] sm:$0xff]
    %v231 = vld [vmem:[#allocation5 + $0x380] sm:$0xff]
    %v232 = vld [vmem:[#allocation5 + $0x388] sm:$0xff]
    %v233 = vld [vmem:[#allocation5 + $0x390] sm:$0xff]
    %v234 = vld [vmem:[#allocation5 + $0x398] sm:$0xff]
    %v235 = vld [vmem:[#allocation5 + $0x3a0] sm:$0xff]
    %v236 = vld [vmem:[#allocation5 + $0x3a8] sm:$0xff]
    %v237 = vld [vmem:[#allocation5 + $0x3b0] sm:$0xff]
    %v238 = vld [vmem:[#allocation5 + $0x3b8] sm:$0xff]
    %v239 = vld [vmem:[#allocation5 + $0x3c0] sm:$0xff]
    %v240 = vld [vmem:[#allocation5 + $0x3c8] sm:$0xff]
    %v241 = vld [vmem:[#allocation5 + $0x3d0] sm:$0xff]
    %v242 = vld [vmem:[#allocation5 + $0x3d8] sm:$0xff]
    %v243 = vld [vmem:[#allocation5 + $0x3e0] sm:$0xff]
    %v244 = vld [vmem:[#allocation5 + $0x3e8] sm:$0xff]
    %v245 = vld [vmem:[#allocation5 + $0x3f0] sm:$0xff]
    %v246 = vld [vmem:[#allocation5 + $0x3f8] sm:$0xff]
    %v247 = vld [vmem:[#allocation5 + $0x400] sm:$0xff]
    %v248 = vld [vmem:[#allocation5 + $0x408] sm:$0xff]
    %v249 = vld [vmem:[#allocation5 + $0x410] sm:$0xff]
    %v250 = vld [vmem:[#allocation5 + $0x418] sm:$0xff]
    %v251 = vld [vmem:[#allocation5 + $0x420] sm:$0xff]
    %v252 = vld [vmem:[#allocation5 + $0x428] sm:$0xff]
    %v253 = vld [vmem:[#allocation5 + $0x430] sm:$0xff]
    %v254 = vld [vmem:[#allocation5 + $0x438] sm:$0xff]
    %v255 = vld [vmem:[#allocation5 + $0x440] sm:$0xff]
    %v256 = vld [vmem:[#allocation5 + $0x448] sm:$0xff]
    %v257 = vld [vmem:[#allocation5 + $0x450] sm:$0xff]
    %v258 = vld [vmem:[#allocation5 + $0x458] sm:$0xff]
    %v259 = vld [vmem:[#allocation5 + $0x460] sm:$0xff]
    %v260 = vld [vmem:[#allocation5 + $0x468] sm:$0xff]
    %v261 = vld [vmem:[#allocation5 + $0x470] sm:$0xff]
    %v262 = vld [vmem:[#allocation5 + $0x478] sm:$0xff]
    %v263 = vld [vmem:[#allocation5 + $0x480] sm:$0xff]
    %v264 = vld [vmem:[#allocation5 + $0x488] sm:$0xff]
    %v265 = vld [vmem:[#allocation5 + $0x490] sm:$0xff]
    %v266 = vld [vmem:[#allocation5 + $0x498] sm:$0xff]
    %v267 = vld [vmem:[#allocation5 + $0x4a0] sm:$0xff]
    %v268 = vld [vmem:[#allocation5 + $0x4a8] sm:$0xff]
    %v269 = vld [vmem:[#allocation5 + $0x4b0] sm:$0xff]
    %v270 = vld [vmem:[#allocation5 + $0x4b8] sm:$0xff]
    %v271 = vld [vmem:[#allocation5 + $0x4c0] sm:$0xff]
    %v272 = vld [vmem:[#allocation5 + $0x4c8] sm:$0xff]
    %v273 = vld [vmem:[#allocation5 + $0x4d0] sm:$0xff]
    %v274 = vld [vmem:[#allocation5 + $0x4d8] sm:$0xff]
    %v275 = vld [vmem:[#allocation5 + $0x4e0] sm:$0xff]
    %v276 = vld [vmem:[#allocation5 + $0x4e8] sm:$0xff]
    %v277 = vld [vmem:[#allocation5 + $0x4f0] sm:$0xff]
    %v278 = vld [vmem:[#allocation5 + $0x4f8] sm:$0xff]
    %v279 = vld [vmem:[#allocation5 + $0x500] sm:$0xff]
    %v280 = vld [vmem:[#allocation5 + $0x508] sm:$0xff]
    %v281 = vld [vmem:[#allocation5 + $0x510] sm:$0xff]
    %v282 = vld [vmem:[#allocation5 + $0x518] sm:$0xff]
    %v283 = vld [vmem:[#allocation5 + $0x520] sm:$0xff]
    %v284 = vld [vmem:[#allocation5 + $0x528] sm:$0xff]
    %v285 = vld [vmem:[#allocation5 + $0x530] sm:$0xff]
    %v286 = vld [vmem:[#allocation5 + $0x538] sm:$0xff]
    %v287 = vld [vmem:[#allocation5 + $0x540] sm:$0xff]
    %v288 = vld [vmem:[#allocation5 + $0x548] sm:$0xff]
    %v289 = vld [vmem:[#allocation5 + $0x550] sm:$0xff]
    %v290 = vld [vmem:[#allocation5 + $0x558] sm:$0xff]
    %v291 = vld [vmem:[#allocation5 + $0x560] sm:$0xff]
    %v292 = vld [vmem:[#allocation5 + $0x568] sm:$0xff]
    %v293 = vld [vmem:[#allocation5 + $0x570] sm:$0xff]
    %v294 = vld [vmem:[#allocation5 + $0x578] sm:$0xff]
    %v295 = vld [vmem:[#allocation5 + $0x580] sm:$0xff]
    %v296 = vld [vmem:[#allocation5 + $0x588] sm:$0xff]
    %v297 = vld [vmem:[#allocation5 + $0x590] sm:$0xff]
    %v298 = vld [vmem:[#allocation5 + $0x598] sm:$0xff]
    %v299 = vld [vmem:[#allocation5 + $0x5a0] sm:$0xff]
    %v300 = vld [vmem:[#allocation5 + $0x5a8] sm:$0xff]
    %v301 = vld [vmem:[#allocation5 + $0x5b0] sm:$0xff]
    %v302 = vld [vmem:[#allocation5 + $0x5b8] sm:$0xff]
    %v303 = vld [vmem:[#allocation5 + $0x5c0] sm:$0xff]
    %v304 = vld [vmem:[#allocation5 + $0x5c8] sm:$0xff]
    %v305 = vld [vmem:[#allocation5 + $0x5d0] sm:$0xff]
    %v306 = vld [vmem:[#allocation5 + $0x5d8] sm:$0xff]
    %v307 = vld [vmem:[#allocation5 + $0x5e0] sm:$0xff]
    %v308 = vld [vmem:[#allocation5 + $0x5e8] sm:$0xff]
    %v309 = vld [vmem:[#allocation5 + $0x5f0] sm:$0xff]
    %v310 = vld [vmem:[#allocation5 + $0x5f8] sm:$0xff]
    %v311 = vld [vmem:[#allocation5 + $0x600] sm:$0xff]
    %v312 = vld [vmem:[#allocation5 + $0x608] sm:$0xff]
    %v313 = vld [vmem:[#allocation5 + $0x610] sm:$0xff]
    %v314 = vld [vmem:[#allocation5 + $0x618] sm:$0xff]
    %v315 = vld [vmem:[#allocation5 + $0x620] sm:$0xff]
    %v316 = vld [vmem:[#allocation5 + $0x628] sm:$0xff]
    %v317 = vld [vmem:[#allocation5 + $0x630] sm:$0xff]
    %v318 = vld [vmem:[#allocation5 + $0x638] sm:$0xff]
    %v319 = vld [vmem:[#allocation5 + $0x640] sm:$0xff]
    %v320 = vld [vmem:[#allocation5 + $0x648] sm:$0xff]
    %v321 = vld [vmem:[#allocation5 + $0x650] sm:$0xff]
    %v322 = vld [vmem:[#allocation5 + $0x658] sm:$0xff]
    %v323 = vld [vmem:[#allocation5 + $0x660] sm:$0xff]
    %v324 = vld [vmem:[#allocation5 + $0x668] sm:$0xff]
    %v325 = vld [vmem:[#allocation5 + $0x670] sm:$0xff]
    %v326 = vld [vmem:[#allocation5 + $0x678] sm:$0xff]
    %v327 = vld [vmem:[#allocation5 + $0x680] sm:$0xff]
    %v328 = vld [vmem:[#allocation5 + $0x688] sm:$0xff]
    %v329 = vld [vmem:[#allocation5 + $0x690] sm:$0xff]
    %v330 = vld [vmem:[#allocation5 + $0x698] sm:$0xff]
    %v331 = vld [vmem:[#allocation5 + $0x6a0] sm:$0xff]
    %v332 = vld [vmem:[#allocation5 + $0x6a8] sm:$0xff]
    %v333 = vld [vmem:[#allocation5 + $0x6b0] sm:$0xff]
    %v334 = vld [vmem:[#allocation5 + $0x6b8] sm:$0xff]
    %v335 = vld [vmem:[#allocation5 + $0x6c0] sm:$0xff]
    %v336 = vld [vmem:[#allocation5 + $0x6c8] sm:$0xff]
    %v337 = vld [vmem:[#allocation5 + $0x6d0] sm:$0xff]
    %v338 = vld [vmem:[#allocation5 + $0x6d8] sm:$0xff]
    %v339 = vld [vmem:[#allocation5 + $0x6e0] sm:$0xff]
    %v340 = vld [vmem:[#allocation5 + $0x6e8] sm:$0xff]
    %v341 = vld [vmem:[#allocation5 + $0x6f0] sm:$0xff]
    %v342 = vld [vmem:[#allocation5 + $0x6f8] sm:$0xff]
    %v343 = vld [vmem:[%s2] sm:$0xf]
    %v345 = vlaneseq
    %v346 = vshrl.u32 %v345, 7
    %v347 = vsub.s32 0, %v346
    %v348 = vrot.slane %v343, %v347
    %v349 = vlaneseq
    %v350 = vshrl.u32 %v349, 7
    %v351 = vsub.s32 1, %v350
    %v352 = vrot.slane %v343, %v351
    %v353 = vlaneseq
    %v354 = vshrl.u32 %v353, 7
    %v355 = vsub.s32 2, %v354
    %v356 = vrot.slane %v343, %v355
    %v357 = vlaneseq
    %v358 = vshrl.u32 %v357, 7
    %v359 = vsub.s32 3, %v358
    %v360 = vrot.slane %v343, %v359
    %v369 = vunpack.c.l.b16 %v115
    %v370 = vunpack.c.h.b16 %v115
    %v371 = vunpack.c.l.b16 %v116
    %v372 = vunpack.c.h.b16 %v116
    %v373 = vunpack.c.l.b16 %v117
    %v374 = vunpack.c.h.b16 %v117
    %v375 = vunpack.c.l.b16 %v118
    %v376 = vpack.c.b16 %v369, %v369
    %v377 = vpack.c.b16 %v370, %v370
    %v378 = vpack.c.b16 %v371, %v371
    %v379 = vpack.c.b16 %v372, %v372
    %v380 = vpack.c.b16 %v373, %v373
    %v381 = vpack.c.b16 %v374, %v374
    %v382 = vpack.c.b16 %v375, %v375
    %v614 = vunpack.c.l.b16 %v119
    %v615 = vunpack.c.h.b16 %v119
    %v616 = vunpack.c.l.b16 %v120
    %v617 = vunpack.c.h.b16 %v120
    %v618 = vunpack.c.l.b16 %v121
    %v619 = vunpack.c.h.b16 %v121
    %v620 = vunpack.c.l.b16 %v122
    %v621 = vunpack.c.h.b16 %v122
    %v622 = vunpack.c.l.b16 %v123
    %v623 = vunpack.c.h.b16 %v123
    %v624 = vunpack.c.l.b16 %v124
    %v625 = vunpack.c.h.b16 %v124
    %v626 = vunpack.c.l.b16 %v125
    %v627 = vunpack.c.h.b16 %v125
    %v628 = vunpack.c.l.b16 %v126
    %v629 = vunpack.c.h.b16 %v126
    %v630 = vunpack.c.l.b16 %v127
    %v631 = vunpack.c.h.b16 %v127
    %v632 = vunpack.c.l.b16 %v128
    %v633 = vunpack.c.h.b16 %v128
    %v634 = vunpack.c.l.b16 %v129
    %v635 = vunpack.c.h.b16 %v129
    %v636 = vunpack.c.l.b16 %v130
    %v637 = vunpack.c.h.b16 %v130
    %v638 = vunpack.c.l.b16 %v131
    %v639 = vunpack.c.h.b16 %v131
    %v640 = vunpack.c.l.b16 %v132
    %v641 = vunpack.c.h.b16 %v132
    %v642 = vunpack.c.l.b16 %v133
    %v643 = vunpack.c.h.b16 %v133
    %v644 = vunpack.c.l.b16 %v134
    %v645 = vunpack.c.h.b16 %v134
    %v646 = vunpack.c.l.b16 %v135
    %v647 = vunpack.c.h.b16 %v135
    %v648 = vunpack.c.l.b16 %v136
    %v649 = vunpack.c.h.b16 %v136
    %v650 = vunpack.c.l.b16 %v137
    %v651 = vunpack.c.h.b16 %v137
    %v652 = vunpack.c.l.b16 %v138
    %v653 = vunpack.c.h.b16 %v138
    %v654 = vunpack.c.l.b16 %v139
    %v655 = vunpack.c.h.b16 %v139
    %v656 = vunpack.c.l.b16 %v140
    %v657 = vunpack.c.h.b16 %v140
    %v658 = vunpack.c.l.b16 %v141
    %v659 = vunpack.c.h.b16 %v141
    %v660 = vunpack.c.l.b16 %v142
    %v661 = vunpack.c.h.b16 %v142
    %v662 = vunpack.c.l.b16 %v143
    %v663 = vunpack.c.h.b16 %v143
    %v664 = vunpack.c.l.b16 %v144
    %v665 = vunpack.c.h.b16 %v144
    %v666 = vunpack.c.l.b16 %v145
    %v667 = vunpack.c.h.b16 %v145
    %v668 = vunpack.c.l.b16 %v146
    %v669 = vunpack.c.h.b16 %v146
    %v670 = vunpack.c.l.b16 %v147
    %v671 = vunpack.c.h.b16 %v147
    %v672 = vunpack.c.l.b16 %v148
    %v673 = vunpack.c.h.b16 %v148
    %v674 = vunpack.c.l.b16 %v149
    %v675 = vunpack.c.h.b16 %v149
    %v676 = vunpack.c.l.b16 %v150
    %v677 = vunpack.c.h.b16 %v150
    %v678 = vunpack.c.l.b16 %v151
    %v679 = vunpack.c.h.b16 %v151
    %v680 = vunpack.c.l.b16 %v152
    %v681 = vunpack.c.h.b16 %v152
    %v682 = vunpack.c.l.b16 %v153
    %v683 = vunpack.c.h.b16 %v153
    %v684 = vunpack.c.l.b16 %v154
    %v685 = vunpack.c.h.b16 %v154
    %v686 = vunpack.c.l.b16 %v155
    %v687 = vunpack.c.h.b16 %v155
    %v688 = vunpack.c.l.b16 %v156
    %v689 = vunpack.c.h.b16 %v156
    %v690 = vunpack.c.l.b16 %v157
    %v691 = vunpack.c.h.b16 %v157
    %v692 = vunpack.c.l.b16 %v158
    %v693 = vunpack.c.h.b16 %v158
    %v694 = vunpack.c.l.b16 %v159
    %v695 = vunpack.c.h.b16 %v159
    %v696 = vunpack.c.l.b16 %v160
    %v697 = vunpack.c.h.b16 %v160
    %v698 = vunpack.c.l.b16 %v161
    %v699 = vunpack.c.h.b16 %v161
    %v700 = vunpack.c.l.b16 %v162
    %v701 = vunpack.c.h.b16 %v162
    %v702 = vunpack.c.l.b16 %v163
    %v703 = vunpack.c.h.b16 %v163
    %v704 = vunpack.c.l.b16 %v164
    %v705 = vunpack.c.h.b16 %v164
    %v706 = vunpack.c.l.b16 %v165
    %v707 = vunpack.c.h.b16 %v165
    %v708 = vunpack.c.l.b16 %v166
    %v709 = vunpack.c.h.b16 %v166
    %v710 = vunpack.c.l.b16 %v167
    %v711 = vunpack.c.h.b16 %v167
    %v712 = vunpack.c.l.b16 %v168
    %v713 = vunpack.c.h.b16 %v168
    %v714 = vunpack.c.l.b16 %v169
    %v715 = vunpack.c.h.b16 %v169
    %v716 = vunpack.c.l.b16 %v170
    %v717 = vunpack.c.h.b16 %v170
    %v718 = vunpack.c.l.b16 %v171
    %v719 = vunpack.c.h.b16 %v171
    %v720 = vunpack.c.l.b16 %v172
    %v721 = vunpack.c.h.b16 %v172
    %v722 = vunpack.c.l.b16 %v173
    %v723 = vunpack.c.h.b16 %v173
    %v724 = vunpack.c.l.b16 %v174
    %v725 = vunpack.c.h.b16 %v174
    %v726 = vunpack.c.l.b16 %v175
    %v727 = vunpack.c.h.b16 %v175
    %v728 = vunpack.c.l.b16 %v176
    %v729 = vunpack.c.h.b16 %v176
    %v730 = vunpack.c.l.b16 %v177
    %v731 = vunpack.c.h.b16 %v177
    %v732 = vunpack.c.l.b16 %v178
    %v733 = vunpack.c.h.b16 %v178
    %v734 = vunpack.c.l.b16 %v179
    %v735 = vunpack.c.h.b16 %v179
    %v736 = vunpack.c.l.b16 %v180
    %v737 = vunpack.c.h.b16 %v180
    %v738 = vunpack.c.l.b16 %v181
    %v739 = vunpack.c.h.b16 %v181
    %v740 = vunpack.c.l.b16 %v182
    %v741 = vunpack.c.h.b16 %v182
    %v742 = vunpack.c.l.b16 %v183
    %v743 = vunpack.c.h.b16 %v183
    %v744 = vunpack.c.l.b16 %v184
    %v745 = vunpack.c.h.b16 %v184
    %v746 = vunpack.c.l.b16 %v185
    %v747 = vunpack.c.h.b16 %v185
    %v748 = vunpack.c.l.b16 %v186
    %v749 = vunpack.c.h.b16 %v186
    %v750 = vunpack.c.l.b16 %v187
    %v751 = vunpack.c.h.b16 %v187
    %v752 = vunpack.c.l.b16 %v188
    %v753 = vunpack.c.h.b16 %v188
    %v754 = vunpack.c.l.b16 %v189
    %v755 = vunpack.c.h.b16 %v189
    %v756 = vunpack.c.l.b16 %v190
    %v757 = vunpack.c.h.b16 %v190
    %v758 = vunpack.c.l.b16 %v191
    %v759 = vunpack.c.h.b16 %v191
    %v760 = vunpack.c.l.b16 %v192
    %v761 = vunpack.c.h.b16 %v192
    %v762 = vunpack.c.l.b16 %v193
    %v763 = vunpack.c.h.b16 %v193
    %v764 = vunpack.c.l.b16 %v194
    %v765 = vunpack.c.h.b16 %v194
    %v766 = vunpack.c.l.b16 %v195
    %v767 = vunpack.c.h.b16 %v195
    %v768 = vunpack.c.l.b16 %v196
    %v769 = vunpack.c.h.b16 %v196
    %v770 = vunpack.c.l.b16 %v197
    %v771 = vunpack.c.h.b16 %v197
    %v772 = vunpack.c.l.b16 %v198
    %v773 = vunpack.c.h.b16 %v198
    %v774 = vunpack.c.l.b16 %v199
    %v775 = vunpack.c.h.b16 %v199
    %v776 = vunpack.c.l.b16 %v200
    %v777 = vunpack.c.h.b16 %v200
    %v778 = vunpack.c.l.b16 %v201
    %v779 = vunpack.c.h.b16 %v201
    %v780 = vunpack.c.l.b16 %v202
    %v781 = vunpack.c.h.b16 %v202
    %v782 = vunpack.c.l.b16 %v203
    %v783 = vunpack.c.h.b16 %v203
    %v784 = vunpack.c.l.b16 %v204
    %v785 = vunpack.c.h.b16 %v204
    %v786 = vunpack.c.l.b16 %v205
    %v787 = vunpack.c.h.b16 %v205
    %v788 = vunpack.c.l.b16 %v206
    %v789 = vunpack.c.h.b16 %v206
    %v790 = vunpack.c.l.b16 %v207
    %v791 = vunpack.c.h.b16 %v207
    %v792 = vunpack.c.l.b16 %v208
    %v793 = vunpack.c.h.b16 %v208
    %v794 = vunpack.c.l.b16 %v209
    %v795 = vunpack.c.h.b16 %v209
    %v796 = vunpack.c.l.b16 %v210
    %v797 = vunpack.c.h.b16 %v210
    %v798 = vunpack.c.l.b16 %v211
    %v799 = vunpack.c.h.b16 %v211
    %v800 = vunpack.c.l.b16 %v212
    %v801 = vunpack.c.h.b16 %v212
    %v802 = vunpack.c.l.b16 %v213
    %v803 = vunpack.c.h.b16 %v213
    %v804 = vunpack.c.l.b16 %v214
    %v805 = vunpack.c.h.b16 %v214
    %v806 = vunpack.c.l.b16 %v215
    %v807 = vunpack.c.h.b16 %v215
    %v808 = vunpack.c.l.b16 %v216
    %v809 = vunpack.c.h.b16 %v216
    %v810 = vunpack.c.l.b16 %v217
    %v811 = vunpack.c.h.b16 %v217
    %v812 = vunpack.c.l.b16 %v218
    %v813 = vunpack.c.h.b16 %v218
    %v814 = vunpack.c.l.b16 %v219
    %v815 = vunpack.c.h.b16 %v219
    %v816 = vunpack.c.l.b16 %v220
    %v817 = vunpack.c.h.b16 %v220
    %v818 = vunpack.c.l.b16 %v221
    %v819 = vunpack.c.h.b16 %v221
    %v820 = vunpack.c.l.b16 %v222
    %v821 = vunpack.c.h.b16 %v222
    %v822 = vunpack.c.l.b16 %v223
    %v823 = vunpack.c.h.b16 %v223
    %v824 = vunpack.c.l.b16 %v224
    %v825 = vunpack.c.h.b16 %v224
    %v826 = vunpack.c.l.b16 %v225
    %v827 = vunpack.c.h.b16 %v225
    %v828 = vunpack.c.l.b16 %v226
    %v829 = vunpack.c.h.b16 %v226
    %v830 = vunpack.c.l.b16 %v227
    %v831 = vunpack.c.h.b16 %v227
    %v832 = vunpack.c.l.b16 %v228
    %v833 = vunpack.c.h.b16 %v228
    %v834 = vunpack.c.l.b16 %v229
    %v835 = vunpack.c.h.b16 %v229
    %v836 = vunpack.c.l.b16 %v230
    %v837 = vunpack.c.h.b16 %v230
    %v838 = vunpack.c.l.b16 %v231
    %v839 = vunpack.c.h.b16 %v231
    %v840 = vunpack.c.l.b16 %v232
    %v841 = vunpack.c.h.b16 %v232
    %v842 = vunpack.c.l.b16 %v233
    %v843 = vunpack.c.h.b16 %v233
    %v844 = vunpack.c.l.b16 %v234
    %v845 = vunpack.c.h.b16 %v234
    %v846 = vunpack.c.l.b16 %v235
    %v847 = vunpack.c.h.b16 %v235
    %v848 = vunpack.c.l.b16 %v236
    %v849 = vunpack.c.h.b16 %v236
    %v850 = vunpack.c.l.b16 %v237
    %v851 = vunpack.c.h.b16 %v237
    %v852 = vunpack.c.l.b16 %v238
    %v853 = vunpack.c.h.b16 %v238
    %v854 = vunpack.c.l.b16 %v239
    %v855 = vunpack.c.h.b16 %v239
    %v856 = vunpack.c.l.b16 %v240
    %v857 = vunpack.c.h.b16 %v240
    %v858 = vunpack.c.l.b16 %v241
    %v859 = vunpack.c.h.b16 %v241
    %v860 = vunpack.c.l.b16 %v242
    %v861 = vunpack.c.h.b16 %v242
    %v862 = vunpack.c.l.b16 %v243
    %v863 = vunpack.c.h.b16 %v243
    %v864 = vunpack.c.l.b16 %v244
    %v865 = vunpack.c.h.b16 %v244
    %v866 = vunpack.c.l.b16 %v245
    %v867 = vunpack.c.h.b16 %v245
    %v868 = vunpack.c.l.b16 %v246
    %v869 = vunpack.c.h.b16 %v246
    %v870 = vunpack.c.l.b16 %v247
    %v871 = vunpack.c.h.b16 %v247
    %v872 = vunpack.c.l.b16 %v248
    %v873 = vunpack.c.h.b16 %v248
    %v874 = vunpack.c.l.b16 %v249
    %v875 = vunpack.c.h.b16 %v249
    %v876 = vunpack.c.l.b16 %v250
    %v877 = vunpack.c.h.b16 %v250
    %v878 = vunpack.c.l.b16 %v251
    %v879 = vunpack.c.h.b16 %v251
    %v880 = vunpack.c.l.b16 %v252
    %v881 = vunpack.c.h.b16 %v252
    %v882 = vunpack.c.l.b16 %v253
    %v883 = vunpack.c.h.b16 %v253
    %v884 = vunpack.c.l.b16 %v254
    %v885 = vunpack.c.h.b16 %v254
    %v886 = vunpack.c.l.b16 %v255
    %v887 = vunpack.c.h.b16 %v255
    %v888 = vunpack.c.l.b16 %v256
    %v889 = vunpack.c.h.b16 %v256
    %v890 = vunpack.c.l.b16 %v257
    %v891 = vunpack.c.h.b16 %v257
    %v892 = vunpack.c.l.b16 %v258
    %v893 = vunpack.c.h.b16 %v258
    %v894 = vunpack.c.l.b16 %v259
    %v895 = vunpack.c.h.b16 %v259
    %v896 = vunpack.c.l.b16 %v260
    %v897 = vunpack.c.h.b16 %v260
    %v898 = vunpack.c.l.b16 %v261
    %v899 = vunpack.c.h.b16 %v261
    %v900 = vunpack.c.l.b16 %v262
    %v901 = vunpack.c.h.b16 %v262
    %v902 = vunpack.c.l.b16 %v263
    %v903 = vunpack.c.h.b16 %v263
    %v904 = vunpack.c.l.b16 %v264
    %v905 = vunpack.c.h.b16 %v264
    %v906 = vunpack.c.l.b16 %v265
    %v907 = vunpack.c.h.b16 %v265
    %v908 = vunpack.c.l.b16 %v266
    %v909 = vunpack.c.h.b16 %v266
    %v910 = vunpack.c.l.b16 %v267
    %v911 = vunpack.c.h.b16 %v267
    %v912 = vunpack.c.l.b16 %v268
    %v913 = vunpack.c.h.b16 %v268
    %v914 = vunpack.c.l.b16 %v269
    %v915 = vunpack.c.h.b16 %v269
    %v916 = vunpack.c.l.b16 %v270
    %v917 = vunpack.c.h.b16 %v270
    %v918 = vunpack.c.l.b16 %v271
    %v919 = vunpack.c.h.b16 %v271
    %v920 = vunpack.c.l.b16 %v272
    %v921 = vunpack.c.h.b16 %v272
    %v922 = vunpack.c.l.b16 %v273
    %v923 = vunpack.c.h.b16 %v273
    %v924 = vunpack.c.l.b16 %v274
    %v925 = vunpack.c.h.b16 %v274
    %v926 = vunpack.c.l.b16 %v275
    %v927 = vunpack.c.h.b16 %v275
    %v928 = vunpack.c.l.b16 %v276
    %v929 = vunpack.c.h.b16 %v276
    %v930 = vunpack.c.l.b16 %v277
    %v931 = vunpack.c.h.b16 %v277
    %v932 = vunpack.c.l.b16 %v278
    %v933 = vunpack.c.h.b16 %v278
    %v934 = vunpack.c.l.b16 %v279
    %v935 = vunpack.c.h.b16 %v279
    %v936 = vunpack.c.l.b16 %v280
    %v937 = vunpack.c.h.b16 %v280
    %v938 = vunpack.c.l.b16 %v281
    %v939 = vunpack.c.h.b16 %v281
    %v940 = vunpack.c.l.b16 %v282
    %v941 = vunpack.c.h.b16 %v282
    %v942 = vunpack.c.l.b16 %v283
    %v943 = vunpack.c.h.b16 %v283
    %v944 = vunpack.c.l.b16 %v284
    %v945 = vunpack.c.h.b16 %v284
    %v946 = vunpack.c.l.b16 %v285
    %v947 = vunpack.c.h.b16 %v285
    %v948 = vunpack.c.l.b16 %v286
    %v949 = vunpack.c.h.b16 %v286
    %v950 = vunpack.c.l.b16 %v287
    %v951 = vunpack.c.h.b16 %v287
    %v952 = vunpack.c.l.b16 %v288
    %v953 = vunpack.c.h.b16 %v288
    %v954 = vunpack.c.l.b16 %v289
    %v955 = vunpack.c.h.b16 %v289
    %v956 = vunpack.c.l.b16 %v290
    %v957 = vunpack.c.h.b16 %v290
    %v958 = vunpack.c.l.b16 %v291
    %v959 = vunpack.c.h.b16 %v291
    %v960 = vunpack.c.l.b16 %v292
    %v961 = vunpack.c.h.b16 %v292
    %v962 = vunpack.c.l.b16 %v293
    %v963 = vunpack.c.h.b16 %v293
    %v964 = vunpack.c.l.b16 %v294
    %v965 = vunpack.c.h.b16 %v294
    %v966 = vunpack.c.l.b16 %v295
    %v967 = vunpack.c.h.b16 %v295
    %v968 = vunpack.c.l.b16 %v296
    %v969 = vunpack.c.h.b16 %v296
    %v970 = vunpack.c.l.b16 %v297
    %v971 = vunpack.c.h.b16 %v297
    %v972 = vunpack.c.l.b16 %v298
    %v973 = vunpack.c.h.b16 %v298
    %v974 = vunpack.c.l.b16 %v299
    %v975 = vunpack.c.h.b16 %v299
    %v976 = vunpack.c.l.b16 %v300
    %v977 = vunpack.c.h.b16 %v300
    %v978 = vunpack.c.l.b16 %v301
    %v979 = vunpack.c.h.b16 %v301
    %v980 = vunpack.c.l.b16 %v302
    %v981 = vunpack.c.h.b16 %v302
    %v982 = vunpack.c.l.b16 %v303
    %v983 = vunpack.c.h.b16 %v303
    %v984 = vunpack.c.l.b16 %v304
    %v985 = vunpack.c.h.b16 %v304
    %v986 = vunpack.c.l.b16 %v305
    %v987 = vunpack.c.h.b16 %v305
    %v988 = vunpack.c.l.b16 %v306
    %v989 = vunpack.c.h.b16 %v306
    %v990 = vunpack.c.l.b16 %v307
    %v991 = vunpack.c.h.b16 %v307
    %v992 = vunpack.c.l.b16 %v308
    %v993 = vunpack.c.h.b16 %v308
    %v994 = vunpack.c.l.b16 %v309
    %v995 = vunpack.c.h.b16 %v309
    %v996 = vunpack.c.l.b16 %v310
    %v997 = vunpack.c.h.b16 %v310
    %v998 = vunpack.c.l.b16 %v311
    %v999 = vunpack.c.h.b16 %v311
    %v1000 = vunpack.c.l.b16 %v312
    %v1001 = vunpack.c.h.b16 %v312
    %v1002 = vunpack.c.l.b16 %v313
    %v1003 = vunpack.c.h.b16 %v313
    %v1004 = vunpack.c.l.b16 %v314
    %v1005 = vunpack.c.h.b16 %v314
    %v1006 = vunpack.c.l.b16 %v315
    %v1007 = vunpack.c.h.b16 %v315
    %v1008 = vunpack.c.l.b16 %v316
    %v1009 = vunpack.c.h.b16 %v316
    %v1010 = vunpack.c.l.b16 %v317
    %v1011 = vunpack.c.h.b16 %v317
    %v1012 = vunpack.c.l.b16 %v318
    %v1013 = vunpack.c.h.b16 %v318
    %v1014 = vunpack.c.l.b16 %v319
    %v1015 = vunpack.c.h.b16 %v319
    %v1016 = vunpack.c.l.b16 %v320
    %v1017 = vunpack.c.h.b16 %v320
    %v1018 = vunpack.c.l.b16 %v321
    %v1019 = vunpack.c.h.b16 %v321
    %v1020 = vunpack.c.l.b16 %v322
    %v1021 = vunpack.c.h.b16 %v322
    %v1022 = vunpack.c.l.b16 %v323
    %v1023 = vunpack.c.h.b16 %v323
    %v1024 = vunpack.c.l.b16 %v324
    %v1025 = vunpack.c.h.b16 %v324
    %v1026 = vunpack.c.l.b16 %v325
    %v1027 = vunpack.c.h.b16 %v325
    %v1028 = vunpack.c.l.b16 %v326
    %v1029 = vunpack.c.h.b16 %v326
    %v1030 = vunpack.c.l.b16 %v327
    %v1031 = vunpack.c.h.b16 %v327
    %v1032 = vunpack.c.l.b16 %v328
    %v1033 = vunpack.c.h.b16 %v328
    %v1034 = vunpack.c.l.b16 %v329
    %v1035 = vunpack.c.h.b16 %v329
    %v1036 = vunpack.c.l.b16 %v330
    %v1037 = vunpack.c.h.b16 %v330
    %v1038 = vunpack.c.l.b16 %v331
    %v1039 = vunpack.c.h.b16 %v331
    %v1040 = vunpack.c.l.b16 %v332
    %v1041 = vunpack.c.h.b16 %v332
    %v1042 = vunpack.c.l.b16 %v333
    %v1043 = vunpack.c.h.b16 %v333
    %v1044 = vunpack.c.l.b16 %v334
    %v1045 = vunpack.c.h.b16 %v334
    %v1046 = vunpack.c.l.b16 %v335
    %v1047 = vunpack.c.h.b16 %v335
    %v1048 = vunpack.c.l.b16 %v336
    %v1049 = vunpack.c.h.b16 %v336
    %v1050 = vunpack.c.l.b16 %v337
    %v1051 = vunpack.c.h.b16 %v337
    %v1052 = vunpack.c.l.b16 %v338
    %v1053 = vunpack.c.h.b16 %v338
    %v1054 = vunpack.c.l.b16 %v339
    %v1055 = vunpack.c.h.b16 %v339
    %v1056 = vunpack.c.l.b16 %v340
    %v1057 = vunpack.c.h.b16 %v340
    %v1058 = vunpack.c.l.b16 %v341
    %v1059 = vunpack.c.h.b16 %v341
    %v1060 = vunpack.c.l.b16 %v342
    %v1061 = vunpack.c.h.b16 %v342
    %v1062 = vpack.c.b16 %v618, %v614
    %v1063 = vpack.c.b16 %v619, %v615
    %v1064 = vpack.c.b16 %v620, %v616
    %v1065 = vpack.c.b16 %v621, %v617
    %v1066 = vpack.c.b16 %v626, %v622
    %v1067 = vpack.c.b16 %v627, %v623
    %v1068 = vpack.c.b16 %v628, %v624
    %v1069 = vpack.c.b16 %v629, %v625
    %v1070 = vpack.c.b16 %v634, %v630
    %v1071 = vpack.c.b16 %v635, %v631
    %v1072 = vpack.c.b16 %v636, %v632
    %v1073 = vpack.c.b16 %v637, %v633
    %v1074 = vpack.c.b16 %v642, %v638
    %v1075 = vpack.c.b16 %v643, %v639
    %v1076 = vpack.c.b16 %v644, %v640
    %v1077 = vpack.c.b16 %v645, %v641
    %v1078 = vpack.c.b16 %v650, %v646
    %v1079 = vpack.c.b16 %v651, %v647
    %v1080 = vpack.c.b16 %v652, %v648
    %v1081 = vpack.c.b16 %v653, %v649
    %v1082 = vpack.c.b16 %v658, %v654
    %v1083 = vpack.c.b16 %v659, %v655
    %v1084 = vpack.c.b16 %v660, %v656
    %v1085 = vpack.c.b16 %v661, %v657
    %v1086 = vpack.c.b16 %v666, %v662
    %v1087 = vpack.c.b16 %v667, %v663
    %v1088 = vpack.c.b16 %v668, %v664
    %v1089 = vpack.c.b16 %v669, %v665
    %v1090 = vpack.c.b16 %v674, %v670
    %v1091 = vpack.c.b16 %v675, %v671
    %v1092 = vpack.c.b16 %v676, %v672
    %v1093 = vpack.c.b16 %v677, %v673
    %v1094 = vpack.c.b16 %v682, %v678
    %v1095 = vpack.c.b16 %v683, %v679
    %v1096 = vpack.c.b16 %v684, %v680
    %v1097 = vpack.c.b16 %v685, %v681
    %v1098 = vpack.c.b16 %v690, %v686
    %v1099 = vpack.c.b16 %v691, %v687
    %v1100 = vpack.c.b16 %v692, %v688
    %v1101 = vpack.c.b16 %v693, %v689
    %v1102 = vpack.c.b16 %v698, %v694
    %v1103 = vpack.c.b16 %v699, %v695
    %v1104 = vpack.c.b16 %v700, %v696
    %v1105 = vpack.c.b16 %v701, %v697
    %v1106 = vpack.c.b16 %v706, %v702
    %v1107 = vpack.c.b16 %v707, %v703
    %v1108 = vpack.c.b16 %v708, %v704
    %v1109 = vpack.c.b16 %v709, %v705
    %v1110 = vpack.c.b16 %v714, %v710
    %v1111 = vpack.c.b16 %v715, %v711
    %v1112 = vpack.c.b16 %v716, %v712
    %v1113 = vpack.c.b16 %v717, %v713
    %v1114 = vpack.c.b16 %v722, %v718
    %v1115 = vpack.c.b16 %v723, %v719
    %v1116 = vpack.c.b16 %v724, %v720
    %v1117 = vpack.c.b16 %v725, %v721
    %v1118 = vpack.c.b16 %v730, %v726
    %v1119 = vpack.c.b16 %v731, %v727
    %v1120 = vpack.c.b16 %v732, %v728
    %v1121 = vpack.c.b16 %v733, %v729
    %v1122 = vpack.c.b16 %v738, %v734
    %v1123 = vpack.c.b16 %v739, %v735
    %v1124 = vpack.c.b16 %v740, %v736
    %v1125 = vpack.c.b16 %v741, %v737
    %v1126 = vpack.c.b16 %v746, %v742
    %v1127 = vpack.c.b16 %v747, %v743
    %v1128 = vpack.c.b16 %v748, %v744
    %v1129 = vpack.c.b16 %v749, %v745
    %v1130 = vpack.c.b16 %v754, %v750
    %v1131 = vpack.c.b16 %v755, %v751
    %v1132 = vpack.c.b16 %v756, %v752
    %v1133 = vpack.c.b16 %v757, %v753
    %v1134 = vpack.c.b16 %v762, %v758
    %v1135 = vpack.c.b16 %v763, %v759
    %v1136 = vpack.c.b16 %v764, %v760
    %v1137 = vpack.c.b16 %v765, %v761
    %v1138 = vpack.c.b16 %v770, %v766
    %v1139 = vpack.c.b16 %v771, %v767
    %v1140 = vpack.c.b16 %v772, %v768
    %v1141 = vpack.c.b16 %v773, %v769
    %v1142 = vpack.c.b16 %v778, %v774
    %v1143 = vpack.c.b16 %v779, %v775
    %v1144 = vpack.c.b16 %v780, %v776
    %v1145 = vpack.c.b16 %v781, %v777
    %v1146 = vpack.c.b16 %v786, %v782
    %v1147 = vpack.c.b16 %v787, %v783
    %v1148 = vpack.c.b16 %v788, %v784
    %v1149 = vpack.c.b16 %v789, %v785
    %v1150 = vpack.c.b16 %v794, %v790
    %v1151 = vpack.c.b16 %v795, %v791
    %v1152 = vpack.c.b16 %v796, %v792
    %v1153 = vpack.c.b16 %v797, %v793
    %v1154 = vpack.c.b16 %v802, %v798
    %v1155 = vpack.c.b16 %v803, %v799
    %v1156 = vpack.c.b16 %v804, %v800
    %v1157 = vpack.c.b16 %v805, %v801
    %v1158 = vpack.c.b16 %v810, %v806
    %v1159 = vpack.c.b16 %v811, %v807
    %v1160 = vpack.c.b16 %v812, %v808
    %v1161 = vpack.c.b16 %v813, %v809
    %v1162 = vpack.c.b16 %v818, %v814
    %v1163 = vpack.c.b16 %v819, %v815
    %v1164 = vpack.c.b16 %v820, %v816
    %v1165 = vpack.c.b16 %v821, %v817
    %v1166 = vpack.c.b16 %v826, %v822
    %v1167 = vpack.c.b16 %v827, %v823
    %v1168 = vpack.c.b16 %v828, %v824
    %v1169 = vpack.c.b16 %v829, %v825
    %v1170 = vpack.c.b16 %v834, %v830
    %v1171 = vpack.c.b16 %v835, %v831
    %v1172 = vpack.c.b16 %v836, %v832
    %v1173 = vpack.c.b16 %v837, %v833
    %v1174 = vpack.c.b16 %v842, %v838
    %v1175 = vpack.c.b16 %v843, %v839
    %v1176 = vpack.c.b16 %v844, %v840
    %v1177 = vpack.c.b16 %v845, %v841
    %v1178 = vpack.c.b16 %v850, %v846
    %v1179 = vpack.c.b16 %v851, %v847
    %v1180 = vpack.c.b16 %v852, %v848
    %v1181 = vpack.c.b16 %v853, %v849
    %v1182 = vpack.c.b16 %v858, %v854
    %v1183 = vpack.c.b16 %v859, %v855
    %v1184 = vpack.c.b16 %v860, %v856
    %v1185 = vpack.c.b16 %v861, %v857
    %v1186 = vpack.c.b16 %v866, %v862
    %v1187 = vpack.c.b16 %v867, %v863
    %v1188 = vpack.c.b16 %v868, %v864
    %v1189 = vpack.c.b16 %v869, %v865
    %v1190 = vpack.c.b16 %v874, %v870
    %v1191 = vpack.c.b16 %v875, %v871
    %v1192 = vpack.c.b16 %v876, %v872
    %v1193 = vpack.c.b16 %v877, %v873
    %v1194 = vpack.c.b16 %v882, %v878
    %v1195 = vpack.c.b16 %v883, %v879
    %v1196 = vpack.c.b16 %v884, %v880
    %v1197 = vpack.c.b16 %v885, %v881
    %v1198 = vpack.c.b16 %v890, %v886
    %v1199 = vpack.c.b16 %v891, %v887
    %v1200 = vpack.c.b16 %v892, %v888
    %v1201 = vpack.c.b16 %v893, %v889
    %v1202 = vpack.c.b16 %v898, %v894
    %v1203 = vpack.c.b16 %v899, %v895
    %v1204 = vpack.c.b16 %v900, %v896
    %v1205 = vpack.c.b16 %v901, %v897
    %v1206 = vpack.c.b16 %v906, %v902
    %v1207 = vpack.c.b16 %v907, %v903
    %v1208 = vpack.c.b16 %v908, %v904
    %v1209 = vpack.c.b16 %v909, %v905
    %v1210 = vpack.c.b16 %v914, %v910
    %v1211 = vpack.c.b16 %v915, %v911
    %v1212 = vpack.c.b16 %v916, %v912
    %v1213 = vpack.c.b16 %v917, %v913
    %v1214 = vpack.c.b16 %v922, %v918
    %v1215 = vpack.c.b16 %v923, %v919
    %v1216 = vpack.c.b16 %v924, %v920
    %v1217 = vpack.c.b16 %v925, %v921
    %v1218 = vpack.c.b16 %v930, %v926
    %v1219 = vpack.c.b16 %v931, %v927
    %v1220 = vpack.c.b16 %v932, %v928
    %v1221 = vpack.c.b16 %v933, %v929
    %v1222 = vpack.c.b16 %v938, %v934
    %v1223 = vpack.c.b16 %v939, %v935
    %v1224 = vpack.c.b16 %v940, %v936
    %v1225 = vpack.c.b16 %v941, %v937
    %v1226 = vpack.c.b16 %v946, %v942
    %v1227 = vpack.c.b16 %v947, %v943
    %v1228 = vpack.c.b16 %v948, %v944
    %v1229 = vpack.c.b16 %v949, %v945
    %v1230 = vpack.c.b16 %v954, %v950
    %v1231 = vpack.c.b16 %v955, %v951
    %v1232 = vpack.c.b16 %v956, %v952
    %v1233 = vpack.c.b16 %v957, %v953
    %v1234 = vpack.c.b16 %v962, %v958
    %v1235 = vpack.c.b16 %v963, %v959
    %v1236 = vpack.c.b16 %v964, %v960
    %v1237 = vpack.c.b16 %v965, %v961
    %v1238 = vpack.c.b16 %v970, %v966
    %v1239 = vpack.c.b16 %v971, %v967
    %v1240 = vpack.c.b16 %v972, %v968
    %v1241 = vpack.c.b16 %v973, %v969
    %v1242 = vpack.c.b16 %v978, %v974
    %v1243 = vpack.c.b16 %v979, %v975
    %v1244 = vpack.c.b16 %v980, %v976
    %v1245 = vpack.c.b16 %v981, %v977
    %v1246 = vpack.c.b16 %v986, %v982
    %v1247 = vpack.c.b16 %v987, %v983
    %v1248 = vpack.c.b16 %v988, %v984
    %v1249 = vpack.c.b16 %v989, %v985
    %v1250 = vpack.c.b16 %v994, %v990
    %v1251 = vpack.c.b16 %v995, %v991
    %v1252 = vpack.c.b16 %v996, %v992
    %v1253 = vpack.c.b16 %v997, %v993
    %v1254 = vpack.c.b16 %v1002, %v998
    %v1255 = vpack.c.b16 %v1003, %v999
    %v1256 = vpack.c.b16 %v1004, %v1000
    %v1257 = vpack.c.b16 %v1005, %v1001
    %v1258 = vpack.c.b16 %v1010, %v1006
    %v1259 = vpack.c.b16 %v1011, %v1007
    %v1260 = vpack.c.b16 %v1012, %v1008
    %v1261 = vpack.c.b16 %v1013, %v1009
    %v1262 = vpack.c.b16 %v1018, %v1014
    %v1263 = vpack.c.b16 %v1019, %v1015
    %v1264 = vpack.c.b16 %v1020, %v1016
    %v1265 = vpack.c.b16 %v1021, %v1017
    %v1266 = vpack.c.b16 %v1026, %v1022
    %v1267 = vpack.c.b16 %v1027, %v1023
    %v1268 = vpack.c.b16 %v1028, %v1024
    %v1269 = vpack.c.b16 %v1029, %v1025
    %v1270 = vpack.c.b16 %v1034, %v1030
    %v1271 = vpack.c.b16 %v1035, %v1031
    %v1272 = vpack.c.b16 %v1036, %v1032
    %v1273 = vpack.c.b16 %v1037, %v1033
    %v1274 = vpack.c.b16 %v1042, %v1038
    %v1275 = vpack.c.b16 %v1043, %v1039
    %v1276 = vpack.c.b16 %v1044, %v1040
    %v1277 = vpack.c.b16 %v1045, %v1041
    %v1278 = vpack.c.b16 %v1050, %v1046
    %v1279 = vpack.c.b16 %v1051, %v1047
    %v1280 = vpack.c.b16 %v1052, %v1048
    %v1281 = vpack.c.b16 %v1053, %v1049
    %v1282 = vpack.c.b16 %v1058, %v1054
    %v1283 = vpack.c.b16 %v1059, %v1055
    %v1284 = vpack.c.b16 %v1060, %v1056
    %v1285 = vpack.c.b16 %v1061, %v1057
    %1510 = vmatprep.subr.bf16.mxu0 %v1063
    %1511 = vmatpush1.bf16.msra.mxu0 %v1062
    %1512 = vmatprep.subr.bf16.mxu0 %v1067
    %1513 = vmatpush1.bf16.msra.mxu0 %v1066
    %1514 = vmatprep.subr.bf16.mxu0 %v1071
    %1515 = vmatpush1.bf16.msra.mxu0 %v1070
    %1516 = vmatprep.subr.bf16.mxu0 %v1075
    %1517 = vmatpush1.bf16.msra.mxu0 %v1074
    %1518 = vmatprep.subr.bf16.mxu0 %v1079
    %1519 = vmatpush1.bf16.msra.mxu0 %v1078
    %1520 = vmatprep.subr.bf16.mxu0 %v1083
    %1521 = vmatpush1.bf16.msra.mxu0 %v1082
    %1522 = vmatprep.subr.bf16.mxu0 %v1087
    %1523 = vmatpush1.bf16.msra.mxu0 %v1086
    %1524 = vmatprep.subr.bf16.mxu0 %v1091
    %1525 = vmatpush1.bf16.msra.mxu0 %v1090
    %1526 = vmatprep.subr.bf16.mxu0 %v1095
    %1527 = vmatpush1.bf16.msra.mxu0 %v1094
    %1528 = vmatprep.subr.bf16.mxu0 %v1099
    %1529 = vmatpush1.bf16.msra.mxu0 %v1098
    %1530 = vmatprep.subr.bf16.mxu0 %v1103
    %1531 = vmatpush1.bf16.msra.mxu0 %v1102
    %1532 = vmatprep.subr.bf16.mxu0 %v1107
    %1533 = vmatpush1.bf16.msra.mxu0 %v1106
    %1534 = vmatprep.subr.bf16.mxu0 %v1111
    %1535 = vmatpush1.bf16.msra.mxu0 %v1110
    %1536 = vmatprep.subr.bf16.mxu0 %v1115
    %1537 = vmatpush1.bf16.msra.mxu0 %v1114
    %1538 = vmatprep.subr.bf16.mxu0 %v1119
    %1539 = vmatpush1.bf16.msra.mxu0 %v1118
    %1540 = vmatprep.subr.bf16.mxu0 %v1123
    %1541 = vmatpush1.bf16.msra.mxu0 %v1122
    %1542 = vmatprep.mubr.bf16.mxu0 %v377
    %1543 = vmatmul.mubr.bf16.gmra.mrb[0].mxu0 %v376
    %v1544 = vpop.f32.mrb[0].mxu0
    %v1545 = vadd.f32 %v348, %v1544
    %v1546 = vpop.f32.mrb[0].mxu0
    %v1547 = vadd.f32 %v352, %v1546
    %v1548 = vpop.f32.mrb[0].mxu0
    %v1549 = vpop.f32.mrb[0].mxu0
    %1550 = vdwg.mxu0
    %1551 = vmatprep.subr.bf16.mxu0 %v1127
    %1552 = vmatpush1.bf16.msra.mxu0 %v1126
    %1553 = vmatprep.subr.bf16.mxu0 %v1131
    %1554 = vmatpush1.bf16.msra.mxu0 %v1130
    %1555 = vmatprep.subr.bf16.mxu0 %v1135
    %1556 = vmatpush1.bf16.msra.mxu0 %v1134
    %1557 = vmatprep.subr.bf16.mxu0 %v1139
    %1558 = vmatpush1.bf16.msra.mxu0 %v1138
    %1559 = vmatprep.subr.bf16.mxu0 %v1143
    %1560 = vmatpush1.bf16.msra.mxu0 %v1142
    %1561 = vmatprep.subr.bf16.mxu0 %v1147
    %1562 = vmatpush1.bf16.msra.mxu0 %v1146
    %1563 = vmatprep.subr.bf16.mxu0 %v1151
    %1564 = vmatpush1.bf16.msra.mxu0 %v1150
    %1565 = vmatprep.subr.bf16.mxu0 %v1155
    %1566 = vmatpush1.bf16.msra.mxu0 %v1154
    %1567 = vmatprep.subr.bf16.mxu0 %v1159
    %1568 = vmatpush1.bf16.msra.mxu0 %v1158
    %1569 = vmatprep.subr.bf16.mxu0 %v1163
    %1570 = vmatpush1.bf16.msra.mxu0 %v1162
    %1571 = vmatprep.subr.bf16.mxu0 %v1167
    %1572 = vmatpush1.bf16.msra.mxu0 %v1166
    %1573 = vmatprep.subr.bf16.mxu0 %v1171
    %1574 = vmatpush1.bf16.msra.mxu0 %v1170
    %1575 = vmatprep.subr.bf16.mxu0 %v1175
    %1576 = vmatpush1.bf16.msra.mxu0 %v1174
    %1577 = vmatprep.subr.bf16.mxu0 %v1179
    %1578 = vmatpush1.bf16.msra.mxu0 %v1178
    %1579 = vmatprep.subr.bf16.mxu0 %v1183
    %1580 = vmatpush1.bf16.msra.mxu0 %v1182
    %1581 = vmatprep.subr.bf16.mxu0 %v1187
    %1582 = vmatpush1.bf16.msra.mxu0 %v1186
    %1583 = vmatprep.mubr.bf16.mxu0 %v379
    %1584 = vmatmul.mubr.bf16.gmra.mrb[0].mxu0 %v378
    %v1585 = vpop.f32.mrb[0].mxu0
    %v1586 = vadd.f32 %v1545, %v1585
    %v1587 = vpop.f32.mrb[0].mxu0
    %v1588 = vadd.f32 %v1547, %v1587
    %v1589 = vpop.f32.mrb[0].mxu0
    %v1590 = vpop.f32.mrb[0].mxu0
    %1591 = vdwg.mxu0
    %1592 = vmatprep.subr.bf16.mxu0 %v1191
    %1593 = vmatpush1.bf16.msra.mxu0 %v1190
    %1594 = vmatprep.subr.bf16.mxu0 %v1195
    %1595 = vmatpush1.bf16.msra.mxu0 %v1194
    %1596 = vmatprep.subr.bf16.mxu0 %v1199
    %1597 = vmatpush1.bf16.msra.mxu0 %v1198
    %1598 = vmatprep.subr.bf16.mxu0 %v1203
    %1599 = vmatpush1.bf16.msra.mxu0 %v1202
    %1600 = vmatprep.subr.bf16.mxu0 %v1207
    %1601 = vmatpush1.bf16.msra.mxu0 %v1206
    %1602 = vmatprep.subr.bf16.mxu0 %v1211
    %1603 = vmatpush1.bf16.msra.mxu0 %v1210
    %1604 = vmatprep.subr.bf16.mxu0 %v1215
    %1605 = vmatpush1.bf16.msra.mxu0 %v1214
    %1606 = vmatprep.subr.bf16.mxu0 %v1219
    %1607 = vmatpush1.bf16.msra.mxu0 %v1218
    %1608 = vmatprep.subr.bf16.mxu0 %v1223
    %1609 = vmatpush1.bf16.msra.mxu0 %v1222
    %1610 = vmatprep.subr.bf16.mxu0 %v1227
    %1611 = vmatpush1.bf16.msra.mxu0 %v1226
    %1612 = vmatprep.subr.bf16.mxu0 %v1231
    %1613 = vmatpush1.bf16.msra.mxu0 %v1230
    %1614 = vmatprep.subr.bf16.mxu0 %v1235
    %1615 = vmatpush1.bf16.msra.mxu0 %v1234
    %1616 = vmatprep.subr.bf16.mxu0 %v1239
    %1617 = vmatpush1.bf16.msra.mxu0 %v1238
    %1618 = vmatprep.subr.bf16.mxu0 %v1243
    %1619 = vmatpush1.bf16.msra.mxu0 %v1242
    %1620 = vmatprep.subr.bf16.mxu0 %v1247
    %1621 = vmatpush1.bf16.msra.mxu0 %v1246
    %1622 = vmatprep.subr.bf16.mxu0 %v1251
    %1623 = vmatpush1.bf16.msra.mxu0 %v1250
    %1624 = vmatprep.mubr.bf16.mxu0 %v381
    %1625 = vmatmul.mubr.bf16.gmra.mrb[0].mxu0 %v380
    %v1626 = vpop.f32.mrb[0].mxu0
    %v1627 = vadd.f32 %v1586, %v1626
    %v1628 = vpop.f32.mrb[0].mxu0
    %v1629 = vadd.f32 %v1588, %v1628
    %v1630 = vpop.f32.mrb[0].mxu0
    %v1631 = vpop.f32.mrb[0].mxu0
    %1632 = vdwg.mxu0
    %1633 = vmatprep.subr.bf16.mxu0 %v1255
    %1634 = vmatpush1.bf16.msra.mxu0 %v1254
    %1635 = vmatprep.subr.bf16.mxu0 %v1259
    %1636 = vmatpush1.bf16.msra.mxu0 %v1258
    %1637 = vmatprep.subr.bf16.mxu0 %v1263
    %1638 = vmatpush1.bf16.msra.mxu0 %v1262
    %1639 = vmatprep.subr.bf16.mxu0 %v1267
    %1640 = vmatpush1.bf16.msra.mxu0 %v1266
    %1641 = vmatprep.subr.bf16.mxu0 %v1271
    %1642 = vmatpush1.bf16.msra.mxu0 %v1270
    %1643 = vmatprep.subr.bf16.mxu0 %v1275
    %1644 = vmatpush1.bf16.msra.mxu0 %v1274
    %1645 = vmatprep.subr.bf16.mxu0 %v1279
    %1646 = vmatpush1.bf16.msra.mxu0 %v1278
    %1647 = vmatprep.subr.bf16.mxu0 %v1283
    %1648 = vmatpush1.bf16.msra.mxu0 %v1282
    %1649 = vmatprep.subr.bf16.mxu0 0
    %1650 = vmatpush1.bf16.msra.mxu0 0
    %1651 = vmatprep.subr.bf16.mxu0 0
    %1652 = vmatpush1.bf16.msra.mxu0 0
    %1653 = vmatprep.subr.bf16.mxu0 0
    %1654 = vmatpush1.bf16.msra.mxu0 0
    %1655 = vmatprep.subr.bf16.mxu0 0
    %1656 = vmatpush1.bf16.msra.mxu0 0
    %1657 = vmatprep.subr.bf16.mxu0 0
    %1658 = vmatpush1.bf16.msra.mxu0 0
    %1659 = vmatprep.subr.bf16.mxu0 0
    %1660 = vmatpush1.bf16.msra.mxu0 0
    %1661 = vmatprep.subr.bf16.mxu0 0
    %1662 = vmatpush1.bf16.msra.mxu0 0
    %1663 = vmatprep.subr.bf16.mxu0 0
    %1664 = vmatpush1.bf16.msra.mxu0 0
    %1665 = vmatprep.mubr.bf16.mxu0 0
    %1666 = vmatmul.mubr.bf16.gmra.mrb[0].mxu0 %v382
    %v1667 = vpop.f32.mrb[0].mxu0
    %v1668 = vadd.f32 %v1627, %v1667
    %v1669 = vpop.f32.mrb[0].mxu0
    %v1670 = vadd.f32 %v1629, %v1669
    %v1671 = vpop.f32.mrb[0].mxu0
    %v1672 = vpop.f32.mrb[0].mxu0
    %1673 = vdwg.mxu0
    %1674 = vmatprep.subr.bf16.mxu0 %v1065
    %1675 = vmatpush1.bf16.msra.mxu0 %v1064
    %1676 = vmatprep.subr.bf16.mxu0 %v1069
    %1677 = vmatpush1.bf16.msra.mxu0 %v1068
    %1678 = vmatprep.subr.bf16.mxu0 %v1073
    %1679 = vmatpush1.bf16.msra.mxu0 %v1072
    %1680 = vmatprep.subr.bf16.mxu0 %v1077
    %1681 = vmatpush1.bf16.msra.mxu0 %v1076
    %1682 = vmatprep.subr.bf16.mxu0 %v1081
    %1683 = vmatpush1.bf16.msra.mxu0 %v1080
    %1684 = vmatprep.subr.bf16.mxu0 %v1085
    %1685 = vmatpush1.bf16.msra.mxu0 %v1084
    %1686 = vmatprep.subr.bf16.mxu0 %v1089
    %1687 = vmatpush1.bf16.msra.mxu0 %v1088
    %1688 = vmatprep.subr.bf16.mxu0 %v1093
    %1689 = vmatpush1.bf16.msra.mxu0 %v1092
    %1690 = vmatprep.subr.bf16.mxu0 %v1097
    %1691 = vmatpush1.bf16.msra.mxu0 %v1096
    %1692 = vmatprep.subr.bf16.mxu0 %v1101
    %1693 = vmatpush1.bf16.msra.mxu0 %v1100
    %1694 = vmatprep.subr.bf16.mxu0 %v1105
    %1695 = vmatpush1.bf16.msra.mxu0 %v1104
    %1696 = vmatprep.subr.bf16.mxu0 %v1109
    %1697 = vmatpush1.bf16.msra.mxu0 %v1108
    %1698 = vmatprep.subr.bf16.mxu0 %v1113
    %1699 = vmatpush1.bf16.msra.mxu0 %v1112
    %1700 = vmatprep.subr.bf16.mxu0 %v1117
    %1701 = vmatpush1.bf16.msra.mxu0 %v1116
    %1702 = vmatprep.subr.bf16.mxu0 %v1121
    %1703 = vmatpush1.bf16.msra.mxu0 %v1120
    %1704 = vmatprep.subr.bf16.mxu0 %v1125
    %1705 = vmatpush1.bf16.msra.mxu0 %v1124
    %1706 = vmatprep.mubr.bf16.mxu0 %v377
    %1707 = vmatmul.mubr.bf16.gmra.mrb[0].mxu0 %v376
    %v1708 = vpop.f32.mrb[0].mxu0
    %v1709 = vadd.f32 %v356, %v1708
    %v1710 = vpop.f32.mrb[0].mxu0
    %v1711 = vadd.f32 %v360, %v1710
    %v1712 = vpop.f32.mrb[0].mxu0
    %v1713 = vpop.f32.mrb[0].mxu0
    %1714 = vdwg.mxu0
    %1715 = vmatprep.subr.bf16.mxu0 %v1129
    %1716 = vmatpush1.bf16.msra.mxu0 %v1128
    %1717 = vmatprep.subr.bf16.mxu0 %v1133
    %1718 = vmatpush1.bf16.msra.mxu0 %v1132
    %1719 = vmatprep.subr.bf16.mxu0 %v1137
    %1720 = vmatpush1.bf16.msra.mxu0 %v1136
    %1721 = vmatprep.subr.bf16.mxu0 %v1141
    %1722 = vmatpush1.bf16.msra.mxu0 %v1140
    %1723 = vmatprep.subr.bf16.mxu0 %v1145
    %1724 = vmatpush1.bf16.msra.mxu0 %v1144
    %1725 = vmatprep.subr.bf16.mxu0 %v1149
    %1726 = vmatpush1.bf16.msra.mxu0 %v1148
    %1727 = vmatprep.subr.bf16.mxu0 %v1153
    %1728 = vmatpush1.bf16.msra.mxu0 %v1152
    %1729 = vmatprep.subr.bf16.mxu0 %v1157
    %1730 = vmatpush1.bf16.msra.mxu0 %v1156
    %1731 = vmatprep.subr.bf16.mxu0 %v1161
    %1732 = vmatpush1.bf16.msra.mxu0 %v1160
    %1733 = vmatprep.subr.bf16.mxu0 %v1165
    %1734 = vmatpush1.bf16.msra.mxu0 %v1164
    %1735 = vmatprep.subr.bf16.mxu0 %v1169
    %1736 = vmatpush1.bf16.msra.mxu0 %v1168
    %1737 = vmatprep.subr.bf16.mxu0 %v1173
    %1738 = vmatpush1.bf16.msra.mxu0 %v1172
    %1739 = vmatprep.subr.bf16.mxu0 %v1177
    %1740 = vmatpush1.bf16.msra.mxu0 %v1176
    %1741 = vmatprep.subr.bf16.mxu0 %v1181
    %1742 = vmatpush1.bf16.msra.mxu0 %v1180
    %1743 = vmatprep.subr.bf16.mxu0 %v1185
    %1744 = vmatpush1.bf16.msra.mxu0 %v1184
    %1745 = vmatprep.subr.bf16.mxu0 %v1189
    %1746 = vmatpush1.bf16.msra.mxu0 %v1188
    %1747 = vmatprep.mubr.bf16.mxu0 %v379
    %1748 = vmatmul.mubr.bf16.gmra.mrb[0].mxu0 %v378
    %v1749 = vpop.f32.mrb[0].mxu0
    %v1750 = vadd.f32 %v1709, %v1749
    %v1751 = vpop.f32.mrb[0].mxu0
    %v1752 = vadd.f32 %v1711, %v1751
    %v1753 = vpop.f32.mrb[0].mxu0
    %v1754 = vpop.f32.mrb[0].mxu0
    %1755 = vdwg.mxu0
    %1756 = vmatprep.subr.bf16.mxu0 %v1193
    %1757 = vmatpush1.bf16.msra.mxu0 %v1192
    %1758 = vmatprep.subr.bf16.mxu0 %v1197
    %1759 = vmatpush1.bf16.msra.mxu0 %v1196
    %1760 = vmatprep.subr.bf16.mxu0 %v1201
    %1761 = vmatpush1.bf16.msra.mxu0 %v1200
    %1762 = vmatprep.subr.bf16.mxu0 %v1205
    %1763 = vmatpush1.bf16.msra.mxu0 %v1204
    %1764 = vmatprep.subr.bf16.mxu0 %v1209
    %1765 = vmatpush1.bf16.msra.mxu0 %v1208
    %1766 = vmatprep.subr.bf16.mxu0 %v1213
    %1767 = vmatpush1.bf16.msra.mxu0 %v1212
    %1768 = vmatprep.subr.bf16.mxu0 %v1217
    %1769 = vmatpush1.bf16.msra.mxu0 %v1216
    %1770 = vmatprep.subr.bf16.mxu0 %v1221
    %1771 = vmatpush1.bf16.msra.mxu0 %v1220
    %1772 = vmatprep.subr.bf16.mxu0 %v1225
    %1773 = vmatpush1.bf16.msra.mxu0 %v1224
    %1774 = vmatprep.subr.bf16.mxu0 %v1229
    %1775 = vmatpush1.bf16.msra.mxu0 %v1228
    %1776 = vmatprep.subr.bf16.mxu0 %v1233
    %1777 = vmatpush1.bf16.msra.mxu0 %v1232
    %1778 = vmatprep.subr.bf16.mxu0 %v1237
    %1779 = vmatpush1.bf16.msra.mxu0 %v1236
    %1780 = vmatprep.subr.bf16.mxu0 %v1241
    %1781 = vmatpush1.bf16.msra.mxu0 %v1240
    %1782 = vmatprep.subr.bf16.mxu0 %v1245
    %1783 = vmatpush1.bf16.msra.mxu0 %v1244
    %1784 = vmatprep.subr.bf16.mxu0 %v1249
    %1785 = vmatpush1.bf16.msra.mxu0 %v1248
    %1786 = vmatprep.subr.bf16.mxu0 %v1253
    %1787 = vmatpush1.bf16.msra.mxu0 %v1252
    %1788 = vmatprep.mubr.bf16.mxu0 %v381
    %1789 = vmatmul.mubr.bf16.gmra.mrb[0].mxu0 %v380
    %v1790 = vpop.f32.mrb[0].mxu0
    %v1791 = vadd.f32 %v1750, %v1790
    %v1792 = vpop.f32.mrb[0].mxu0
    %v1793 = vadd.f32 %v1752, %v1792
    %v1794 = vpop.f32.mrb[0].mxu0
    %v1795 = vpop.f32.mrb[0].mxu0
    %1796 = vdwg.mxu0
    %1797 = vmatprep.subr.bf16.mxu0 %v1257
    %1798 = vmatpush1.bf16.msra.mxu0 %v1256
    %1799 = vmatprep.subr.bf16.mxu0 %v1261
    %1800 = vmatpush1.bf16.msra.mxu0 %v1260
    %1801 = vmatprep.subr.bf16.mxu0 %v1265
    %1802 = vmatpush1.bf16.msra.mxu0 %v1264
    %1803 = vmatprep.subr.bf16.mxu0 %v1269
    %1804 = vmatpush1.bf16.msra.mxu0 %v1268
    %1805 = vmatprep.subr.bf16.mxu0 %v1273
    %1806 = vmatpush1.bf16.msra.mxu0 %v1272
    %1807 = vmatprep.subr.bf16.mxu0 %v1277
    %1808 = vmatpush1.bf16.msra.mxu0 %v1276
    %1809 = vmatprep.subr.bf16.mxu0 %v1281
    %1810 = vmatpush1.bf16.msra.mxu0 %v1280
    %1811 = vmatprep.subr.bf16.mxu0 %v1285
    %1812 = vmatpush1.bf16.msra.mxu0 %v1284
    %1813 = vmatprep.subr.bf16.mxu0 0
    %1814 = vmatpush1.bf16.msra.mxu0 0
    %1815 = vmatprep.subr.bf16.mxu0 0
    %1816 = vmatpush1.bf16.msra.mxu0 0
    %1817 = vmatprep.subr.bf16.mxu0 0
    %1818 = vmatpush1.bf16.msra.mxu0 0
    %1819 = vmatprep.subr.bf16.mxu0 0
    %1820 = vmatpush1.bf16.msra.mxu0 0
    %1821 = vmatprep.subr.bf16.mxu0 0
    %1822 = vmatpush1.bf16.msra.mxu0 0
    %1823 = vmatprep.subr.bf16.mxu0 0
    %1824 = vmatpush1.bf16.msra.mxu0 0
    %1825 = vmatprep.subr.bf16.mxu0 0
    %1826 = vmatpush1.bf16.msra.mxu0 0
    %1827 = vmatprep.subr.bf16.mxu0 0
    %1828 = vmatpush1.bf16.msra.mxu0 0
    %1829 = vmatprep.mubr.bf16.mxu0 0
    %1830 = vmatmul.mubr.bf16.gmra.mrb[0].mxu0 %v382
    %v1831 = vpop.f32.mrb[0].mxu0
    %v1832 = vadd.f32 %v1791, %v1831
    %v1833 = vpop.f32.mrb[0].mxu0
    %v1834 = vadd.f32 %v1793, %v1833
    %v1835 = vpop.f32.mrb[0].mxu0
    %v1836 = vpop.f32.mrb[0].mxu0
    %1837 = vdwg.mxu0
    %v1838 = vmax.f32 %v1668, 0.0
    %v1839 = vmax.f32 %v1670, 0.0
    %v1840 = vmax.f32 %v1832, 0.0
    %v1841 = vmax.f32 %v1834, 0.0
    %v1842 = vpack.c.bf16 %v1838, %v1838
    %v1843 = vpack.c.bf16 %v1839, %v1839
    %v1844 = vpack.c.bf16 %v1840, %v1840
    %v1845 = vpack.c.bf16 %v1841, %v1841
    %v1846 = vld [vmem:[#allocation7] sm:$0xf]
    %v1847 = vld [vmem:[#allocation7 + $0x4] sm:$0xf]
    %v1848 = vld [vmem:[#allocation7 + $0x8] sm:$0xf]
    %v1849 = vld [vmem:[#allocation7 + $0xc] sm:$0xf]
    %v1850 = vld [vmem:[#allocation7 + $0x10] sm:$0xf]
    %v1851 = vld [vmem:[#allocation7 + $0x14] sm:$0xf]
    %v1852 = vld [vmem:[#allocation7 + $0x18] sm:$0xf]
    %v1853 = vld [vmem:[#allocation7 + $0x1c] sm:$0xf]
    %v1854 = vld [vmem:[#allocation7 + $0x20] sm:$0xf]
    %v1855 = vld [vmem:[#allocation7 + $0x24] sm:$0xf]
    %v1856 = vld [vmem:[#allocation7 + $0x28] sm:$0xf]
    %v1857 = vld [vmem:[#allocation7 + $0x2c] sm:$0xf]
    %v1858 = vld [vmem:[#allocation7 + $0x30] sm:$0xf]
    %v1859 = vld [vmem:[#allocation7 + $0x34] sm:$0xf]
    %v1860 = vld [vmem:[#allocation7 + $0x38] sm:$0xf]
    %v1861 = vld [vmem:[#allocation7 + $0x3c] sm:$0xf]
    %v1862 = vld [vmem:[#allocation7 + $0x40] sm:$0xf]
    %v1863 = vld [vmem:[#allocation7 + $0x44] sm:$0xf]
    %v1864 = vld [vmem:[#allocation7 + $0x48] sm:$0xf]
    %v1865 = vld [vmem:[#allocation7 + $0x4c] sm:$0xf]
    %v1866 = vld [vmem:[#allocation7 + $0x50] sm:$0xf]
    %v1867 = vld [vmem:[#allocation7 + $0x54] sm:$0xf]
    %v1868 = vld [vmem:[#allocation7 + $0x58] sm:$0xf]
    %v1869 = vld [vmem:[#allocation7 + $0x5c] sm:$0xf]
    %v1870 = vld [vmem:[#allocation7 + $0x60] sm:$0xf]
    %v1871 = vld [vmem:[#allocation7 + $0x64] sm:$0xf]
    %v1872 = vld [vmem:[#allocation7 + $0x68] sm:$0xf]
    %v1873 = vld [vmem:[#allocation7 + $0x6c] sm:$0xf]
    %v1874 = vld [vmem:[#allocation7 + $0x70] sm:$0xf]
    %v1875 = vld [vmem:[#allocation7 + $0x74] sm:$0xf]
    %v1876 = vld [vmem:[#allocation7 + $0x78] sm:$0xf]
    %v1877 = vld [vmem:[#allocation7 + $0x7c] sm:$0xf]
    %v1878 = vld [vmem:[#allocation7 + $0x80] sm:$0xf]
    %v1879 = vld [vmem:[#allocation7 + $0x84] sm:$0xf]
    %v1880 = vld [vmem:[#allocation7 + $0x88] sm:$0xf]
    %v1881 = vld [vmem:[#allocation7 + $0x8c] sm:$0xf]
    %v1882 = vld [vmem:[#allocation7 + $0x90] sm:$0xf]
    %v1883 = vld [vmem:[#allocation7 + $0x94] sm:$0xf]
    %v1884 = vld [vmem:[#allocation7 + $0x98] sm:$0xf]
    %v1885 = vld [vmem:[#allocation7 + $0x9c] sm:$0xf]
    %v1886 = vld [vmem:[#allocation7 + $0xa0] sm:$0xf]
    %v1887 = vld [vmem:[#allocation7 + $0xa4] sm:$0xf]
    %v1888 = vld [vmem:[#allocation7 + $0xa8] sm:$0xf]
    %v1889 = vld [vmem:[#allocation7 + $0xac] sm:$0xf]
    %v1890 = vld [vmem:[#allocation7 + $0xb0] sm:$0xf]
    %v1891 = vld [vmem:[#allocation7 + $0xb4] sm:$0xf]
    %v1892 = vld [vmem:[#allocation7 + $0xb8] sm:$0xf]
    %v1893 = vld [vmem:[#allocation7 + $0xbc] sm:$0xf]
    %v1894 = vld [vmem:[#allocation7 + $0xc0] sm:$0xf]
    %v1895 = vld [vmem:[#allocation7 + $0xc4] sm:$0xf]
    %v1896 = vld [vmem:[#allocation7 + $0xc8] sm:$0xf]
    %v1897 = vld [vmem:[#allocation7 + $0xcc] sm:$0xf]
    %v1898 = vld [vmem:[#allocation7 + $0xd0] sm:$0xf]
    %v1899 = vld [vmem:[#allocation7 + $0xd4] sm:$0xf]
    %v1900 = vld [vmem:[#allocation7 + $0xd8] sm:$0xf]
    %v1901 = vld [vmem:[#allocation7 + $0xdc] sm:$0xf]
    %v1902 = vld [vmem:[#allocation7 + $0xe0] sm:$0xf]
    %v1903 = vld [vmem:[#allocation7 + $0xe4] sm:$0xf]
    %v1904 = vld [vmem:[#allocation7 + $0xe8] sm:$0xf]
    %v1905 = vld [vmem:[#allocation7 + $0xec] sm:$0xf]
    %v1906 = vld [vmem:[#allocation7 + $0xf0] sm:$0xf]
    %v1907 = vld [vmem:[#allocation7 + $0xf4] sm:$0xf]
    %v1908 = vld [vmem:[#allocation7 + $0xf8] sm:$0xf]
    %v1909 = vld [vmem:[#allocation7 + $0xfc] sm:$0xf]
    %v1910 = vld [vmem:[#allocation8] sm:$0x1]
    %v1912 = vlaneseq
    %v1913 = vshrl.u32 %v1912, 7
    %v1914 = vsub.s32 0, %v1913
    %v1915 = vrot.slane %v1910, %v1914
    %v1981 = vunpack.c.l.b16 %v1846
    %v1982 = vunpack.c.l.b16 %v1847
    %v1983 = vunpack.c.l.b16 %v1848
    %v1984 = vunpack.c.l.b16 %v1849
    %v1985 = vunpack.c.l.b16 %v1850
    %v1986 = vunpack.c.l.b16 %v1851
    %v1987 = vunpack.c.l.b16 %v1852
    %v1988 = vunpack.c.l.b16 %v1853
    %v1989 = vunpack.c.l.b16 %v1854
    %v1990 = vunpack.c.l.b16 %v1855
    %v1991 = vunpack.c.l.b16 %v1856
    %v1992 = vunpack.c.l.b16 %v1857
    %v1993 = vunpack.c.l.b16 %v1858
    %v1994 = vunpack.c.l.b16 %v1859
    %v1995 = vunpack.c.l.b16 %v1860
    %v1996 = vunpack.c.l.b16 %v1861
    %v1997 = vunpack.c.l.b16 %v1862
    %v1998 = vunpack.c.l.b16 %v1863
    %v1999 = vunpack.c.l.b16 %v1864
    %v2000 = vunpack.c.l.b16 %v1865
    %v2001 = vunpack.c.l.b16 %v1866
    %v2002 = vunpack.c.l.b16 %v1867
    %v2003 = vunpack.c.l.b16 %v1868
    %v2004 = vunpack.c.l.b16 %v1869
    %v2005 = vunpack.c.l.b16 %v1870
    %v2006 = vunpack.c.l.b16 %v1871
    %v2007 = vunpack.c.l.b16 %v1872
    %v2008 = vunpack.c.l.b16 %v1873
    %v2009 = vunpack.c.l.b16 %v1874
    %v2010 = vunpack.c.l.b16 %v1875
    %v2011 = vunpack.c.l.b16 %v1876
    %v2012 = vunpack.c.l.b16 %v1877
    %v2013 = vunpack.c.l.b16 %v1878
    %v2014 = vunpack.c.l.b16 %v1879
    %v2015 = vunpack.c.l.b16 %v1880
    %v2016 = vunpack.c.l.b16 %v1881
    %v2017 = vunpack.c.l.b16 %v1882
    %v2018 = vunpack.c.l.b16 %v1883
    %v2019 = vunpack.c.l.b16 %v1884
    %v2020 = vunpack.c.l.b16 %v1885
    %v2021 = vunpack.c.l.b16 %v1886
    %v2022 = vunpack.c.l.b16 %v1887
    %v2023 = vunpack.c.l.b16 %v1888
    %v2024 = vunpack.c.l.b16 %v1889
    %v2025 = vunpack.c.l.b16 %v1890
    %v2026 = vunpack.c.l.b16 %v1891
    %v2027 = vunpack.c.l.b16 %v1892
    %v2028 = vunpack.c.l.b16 %v1893
    %v2029 = vunpack.c.l.b16 %v1894
    %v2030 = vunpack.c.l.b16 %v1895
    %v2031 = vunpack.c.l.b16 %v1896
    %v2032 = vunpack.c.l.b16 %v1897
    %v2033 = vunpack.c.l.b16 %v1898
    %v2034 = vunpack.c.l.b16 %v1899
    %v2035 = vunpack.c.l.b16 %v1900
    %v2036 = vunpack.c.l.b16 %v1901
    %v2037 = vunpack.c.l.b16 %v1902
    %v2038 = vunpack.c.l.b16 %v1903
    %v2039 = vunpack.c.l.b16 %v1904
    %v2040 = vunpack.c.l.b16 %v1905
    %v2041 = vunpack.c.l.b16 %v1906
    %v2042 = vunpack.c.l.b16 %v1907
    %v2043 = vunpack.c.l.b16 %v1908
    %v2044 = vunpack.c.l.b16 %v1909
    %v2045 = vpack.c.b16 %v1982, %v1981
    %v2046 = vpack.c.b16 %v1984, %v1983
    %v2047 = vpack.c.b16 %v1986, %v1985
    %v2048 = vpack.c.b16 %v1988, %v1987
    %v2049 = vpack.c.b16 %v1990, %v1989
    %v2050 = vpack.c.b16 %v1992, %v1991
    %v2051 = vpack.c.b16 %v1994, %v1993
    %v2052 = vpack.c.b16 %v1996, %v1995
    %v2053 = vpack.c.b16 %v1998, %v1997
    %v2054 = vpack.c.b16 %v2000, %v1999
    %v2055 = vpack.c.b16 %v2002, %v2001
    %v2056 = vpack.c.b16 %v2004, %v2003
    %v2057 = vpack.c.b16 %v2006, %v2005
    %v2058 = vpack.c.b16 %v2008, %v2007
    %v2059 = vpack.c.b16 %v2010, %v2009
    %v2060 = vpack.c.b16 %v2012, %v2011
    %v2061 = vpack.c.b16 %v2014, %v2013
    %v2062 = vpack.c.b16 %v2016, %v2015
    %v2063 = vpack.c.b16 %v2018, %v2017
    %v2064 = vpack.c.b16 %v2020, %v2019
    %v2065 = vpack.c.b16 %v2022, %v2021
    %v2066 = vpack.c.b16 %v2024, %v2023
    %v2067 = vpack.c.b16 %v2026, %v2025
    %v2068 = vpack.c.b16 %v2028, %v2027
    %v2069 = vpack.c.b16 %v2030, %v2029
    %v2070 = vpack.c.b16 %v2032, %v2031
    %v2071 = vpack.c.b16 %v2034, %v2033
    %v2072 = vpack.c.b16 %v2036, %v2035
    %v2073 = vpack.c.b16 %v2038, %v2037
    %v2074 = vpack.c.b16 %v2040, %v2039
    %v2075 = vpack.c.b16 %v2042, %v2041
    %v2076 = vpack.c.b16 %v2044, %v2043
    %2109 = vmatprep.subr.bf16.mxu0 0
    %2110 = vmatpush1.bf16.msra.mxu0 %v2045
    %2111 = vmatprep.subr.bf16.mxu0 0
    %2112 = vmatpush1.bf16.msra.mxu0 %v2046
    %2113 = vmatprep.subr.bf16.mxu0 0
    %2114 = vmatpush1.bf16.msra.mxu0 %v2047
    %2115 = vmatprep.subr.bf16.mxu0 0
    %2116 = vmatpush1.bf16.msra.mxu0 %v2048
    %2117 = vmatprep.subr.bf16.mxu0 0
    %2118 = vmatpush1.bf16.msra.mxu0 %v2049
    %2119 = vmatprep.subr.bf16.mxu0 0
    %2120 = vmatpush1.bf16.msra.mxu0 %v2050
    %2121 = vmatprep.subr.bf16.mxu0 0
    %2122 = vmatpush1.bf16.msra.mxu0 %v2051
    %2123 = vmatprep.subr.bf16.mxu0 0
    %2124 = vmatpush1.bf16.msra.mxu0 %v2052
    %2125 = vmatprep.subr.bf16.mxu0 0
    %2126 = vmatpush1.bf16.msra.mxu0 %v2053
    %2127 = vmatprep.subr.bf16.mxu0 0
    %2128 = vmatpush1.bf16.msra.mxu0 %v2054
    %2129 = vmatprep.subr.bf16.mxu0 0
    %2130 = vmatpush1.bf16.msra.mxu0 %v2055
    %2131 = vmatprep.subr.bf16.mxu0 0
    %2132 = vmatpush1.bf16.msra.mxu0 %v2056
    %2133 = vmatprep.subr.bf16.mxu0 0
    %2134 = vmatpush1.bf16.msra.mxu0 %v2057
    %2135 = vmatprep.subr.bf16.mxu0 0
    %2136 = vmatpush1.bf16.msra.mxu0 %v2058
    %2137 = vmatprep.subr.bf16.mxu0 0
    %2138 = vmatpush1.bf16.msra.mxu0 %v2059
    %2139 = vmatprep.subr.bf16.mxu0 0
    %2140 = vmatpush1.bf16.msra.mxu0 %v2060
    %2141 = vmatprep.mubr.bf16.mxu0 %v1843
    %2142 = vmatmul.mubr.bf16.gmra.mrb[0].mxu0 %v1842
    %v2143 = vpop.f32.mrb[0].mxu0
    %v2144 = vadd.f32 %v1915, %v2143
    %v2145 = vpop.f32.mrb[0].mxu0
    %v2146 = vpop.f32.mrb[0].mxu0
    %v2147 = vpop.f32.mrb[0].mxu0
    %2148 = vdwg.mxu0
    %2149 = vmatprep.subr.bf16.mxu0 0
    %2150 = vmatpush1.bf16.msra.mxu0 %v2061
    %2151 = vmatprep.subr.bf16.mxu0 0
    %2152 = vmatpush1.bf16.msra.mxu0 %v2062
    %2153 = vmatprep.subr.bf16.mxu0 0
    %2154 = vmatpush1.bf16.msra.mxu0 %v2063
    %2155 = vmatprep.subr.bf16.mxu0 0
    %2156 = vmatpush1.bf16.msra.mxu0 %v2064
    %2157 = vmatprep.subr.bf16.mxu0 0
    %2158 = vmatpush1.bf16.msra.mxu0 %v2065
    %2159 = vmatprep.subr.bf16.mxu0 0
    %2160 = vmatpush1.bf16.msra.mxu0 %v2066
    %2161 = vmatprep.subr.bf16.mxu0 0
    %2162 = vmatpush1.bf16.msra.mxu0 %v2067
    %2163 = vmatprep.subr.bf16.mxu0 0
    %2164 = vmatpush1.bf16.msra.mxu0 %v2068
    %2165 = vmatprep.subr.bf16.mxu0 0
    %2166 = vmatpush1.bf16.msra.mxu0 %v2069
    %2167 = vmatprep.subr.bf16.mxu0 0
    %2168 = vmatpush1.bf16.msra.mxu0 %v2070
    %2169 = vmatprep.subr.bf16.mxu0 0
    %2170 = vmatpush1.bf16.msra.mxu0 %v2071
    %2171 = vmatprep.subr.bf16.mxu0 0
    %2172 = vmatpush1.bf16.msra.mxu0 %v2072
    %2173 = vmatprep.subr.bf16.mxu0 0
    %2174 = vmatpush1.bf16.msra.mxu0 %v2073
    %2175 = vmatprep.subr.bf16.mxu0 0
    %2176 = vmatpush1.bf16.msra.mxu0 %v2074
    %2177 = vmatprep.subr.bf16.mxu0 0
    %2178 = vmatpush1.bf16.msra.mxu0 %v2075
    %2179 = vmatprep.subr.bf16.mxu0 0
    %2180 = vmatpush1.bf16.msra.mxu0 %v2076
    %2181 = vmatprep.mubr.bf16.mxu0 %v1845
    %2182 = vmatmul.mubr.bf16.gmra.mrb[0].mxu0 %v1844
    %v2183 = vpop.f32.mrb[0].mxu0
    %v2184 = vadd.f32 %v2144, %v2183
    %v2185 = vpop.f32.mrb[0].mxu0
    %v2186 = vpop.f32.mrb[0].mxu0
    %v2187 = vpop.f32.mrb[0].mxu0
    %2188 = vdwg.mxu0
    %v2189 = vpack.c.bf16 %v2184, %v2184
    %v2190 = vld [vmem:[#allocation10] sm:$0xff]
    %v2191 = vld [vmem:[#allocation10 + $0x8] sm:$0xff]
    %v2192 = vld [vmem:[#allocation10 + $0x10] sm:$0xff]
    %v2193 = vld [vmem:[#allocation10 + $0x18] sm:$0xff]
    %v2194 = vld [vmem:[#allocation10 + $0x20] sm:$0xff]
    %v2195 = vld [vmem:[#allocation10 + $0x28] sm:$0xff]
    %v2196 = vld [vmem:[#allocation10 + $0x30] sm:$0xff]
    %v2197 = vld [vmem:[#allocation10 + $0x38] sm:$0xff]
    %v2198 = vld [vmem:[#allocation10 + $0x40] sm:$0xff]
    %v2199 = vld [vmem:[#allocation10 + $0x48] sm:$0xff]
    %v2200 = vld [vmem:[#allocation10 + $0x50] sm:$0xff]
    %v2201 = vld [vmem:[#allocation10 + $0x58] sm:$0xff]
    %v2202 = vld [vmem:[#allocation10 + $0x60] sm:$0xff]
    %v2203 = vld [vmem:[#allocation10 + $0x68] sm:$0xff]
    %v2204 = vld [vmem:[#allocation10 + $0x70] sm:$0xff]
    %v2205 = vld [vmem:[#allocation10 + $0x78] sm:$0xff]
    %v2206 = vld [vmem:[#allocation10 + $0x80] sm:$0xff]
    %v2207 = vld [vmem:[#allocation10 + $0x88] sm:$0xff]
    %v2208 = vld [vmem:[#allocation10 + $0x90] sm:$0xff]
    %v2209 = vld [vmem:[#allocation10 + $0x98] sm:$0xff]
    %v2210 = vld [vmem:[#allocation10 + $0xa0] sm:$0xff]
    %v2211 = vld [vmem:[#allocation10 + $0xa8] sm:$0xff]
    %v2212 = vld [vmem:[#allocation10 + $0xb0] sm:$0xff]
    %v2213 = vld [vmem:[#allocation10 + $0xb8] sm:$0xff]
    %v2214 = vld [vmem:[#allocation10 + $0xc0] sm:$0xff]
    %v2215 = vld [vmem:[#allocation10 + $0xc8] sm:$0xff]
    %v2216 = vld [vmem:[#allocation10 + $0xd0] sm:$0xff]
    %v2217 = vld [vmem:[#allocation10 + $0xd8] sm:$0xff]
    %v2218 = vld [vmem:[#allocation10 + $0xe0] sm:$0xff]
    %v2219 = vld [vmem:[#allocation10 + $0xe8] sm:$0xff]
    %v2220 = vld [vmem:[#allocation10 + $0xf0] sm:$0xff]
    %v2221 = vld [vmem:[#allocation10 + $0xf8] sm:$0xff]
    %v2222 = vld [vmem:[%s6] sm:$0xf]
    %v2224 = vlaneseq
    %v2225 = vshrl.u32 %v2224, 7
    %v2226 = vsub.s32 0, %v2225
    %v2227 = vrot.slane %v2222, %v2226
    %v2228 = vlaneseq
    %v2229 = vshrl.u32 %v2228, 7
    %v2230 = vsub.s32 1, %v2229
    %v2231 = vrot.slane %v2222, %v2230
    %v2232 = vlaneseq
    %v2233 = vshrl.u32 %v2232, 7
    %v2234 = vsub.s32 2, %v2233
    %v2235 = vrot.slane %v2222, %v2234
    %v2236 = vlaneseq
    %v2237 = vshrl.u32 %v2236, 7
    %v2238 = vsub.s32 3, %v2237
    %v2239 = vrot.slane %v2222, %v2238
    %v2276 = vunpack.c.l.b16 %v2190
    %v2277 = vunpack.c.h.b16 %v2190
    %v2278 = vunpack.c.l.b16 %v2191
    %v2279 = vunpack.c.h.b16 %v2191
    %v2280 = vunpack.c.l.b16 %v2192
    %v2281 = vunpack.c.h.b16 %v2192
    %v2282 = vunpack.c.l.b16 %v2193
    %v2283 = vunpack.c.h.b16 %v2193
    %v2284 = vunpack.c.l.b16 %v2194
    %v2285 = vunpack.c.h.b16 %v2194
    %v2286 = vunpack.c.l.b16 %v2195
    %v2287 = vunpack.c.h.b16 %v2195
    %v2288 = vunpack.c.l.b16 %v2196
    %v2289 = vunpack.c.h.b16 %v2196
    %v2290 = vunpack.c.l.b16 %v2197
    %v2291 = vunpack.c.h.b16 %v2197
    %v2292 = vunpack.c.l.b16 %v2198
    %v2293 = vunpack.c.h.b16 %v2198
    %v2294 = vunpack.c.l.b16 %v2199
    %v2295 = vunpack.c.h.b16 %v2199
    %v2296 = vunpack.c.l.b16 %v2200
    %v2297 = vunpack.c.h.b16 %v2200
    %v2298 = vunpack.c.l.b16 %v2201
    %v2299 = vunpack.c.h.b16 %v2201
    %v2300 = vunpack.c.l.b16 %v2202
    %v2301 = vunpack.c.h.b16 %v2202
    %v2302 = vunpack.c.l.b16 %v2203
    %v2303 = vunpack.c.h.b16 %v2203
    %v2304 = vunpack.c.l.b16 %v2204
    %v2305 = vunpack.c.h.b16 %v2204
    %v2306 = vunpack.c.l.b16 %v2205
    %v2307 = vunpack.c.h.b16 %v2205
    %v2308 = vunpack.c.l.b16 %v2206
    %v2309 = vunpack.c.h.b16 %v2206
    %v2310 = vunpack.c.l.b16 %v2207
    %v2311 = vunpack.c.h.b16 %v2207
    %v2312 = vunpack.c.l.b16 %v2208
    %v2313 = vunpack.c.h.b16 %v2208
    %v2314 = vunpack.c.l.b16 %v2209
    %v2315 = vunpack.c.h.b16 %v2209
    %v2316 = vunpack.c.l.b16 %v2210
    %v2317 = vunpack.c.h.b16 %v2210
    %v2318 = vunpack.c.l.b16 %v2211
    %v2319 = vunpack.c.h.b16 %v2211
    %v2320 = vunpack.c.l.b16 %v2212
    %v2321 = vunpack.c.h.b16 %v2212
    %v2322 = vunpack.c.l.b16 %v2213
    %v2323 = vunpack.c.h.b16 %v2213
    %v2324 = vunpack.c.l.b16 %v2214
    %v2325 = vunpack.c.h.b16 %v2214
    %v2326 = vunpack.c.l.b16 %v2215
    %v2327 = vunpack.c.h.b16 %v2215
    %v2328 = vunpack.c.l.b16 %v2216
    %v2329 = vunpack.c.h.b16 %v2216
    %v2330 = vunpack.c.l.b16 %v2217
    %v2331 = vunpack.c.h.b16 %v2217
    %v2332 = vunpack.c.l.b16 %v2218
    %v2333 = vunpack.c.h.b16 %v2218
    %v2334 = vunpack.c.l.b16 %v2219
    %v2335 = vunpack.c.h.b16 %v2219
    %v2336 = vunpack.c.l.b16 %v2220
    %v2337 = vunpack.c.h.b16 %v2220
    %v2338 = vunpack.c.l.b16 %v2221
    %v2339 = vunpack.c.h.b16 %v2221
    %v2340 = vpack.c.b16 %v2280, %v2276
    %v2341 = vpack.c.b16 %v2281, %v2277
    %v2342 = vpack.c.b16 %v2282, %v2278
    %v2343 = vpack.c.b16 %v2283, %v2279
    %v2344 = vpack.c.b16 %v2288, %v2284
    %v2345 = vpack.c.b16 %v2289, %v2285
    %v2346 = vpack.c.b16 %v2290, %v2286
    %v2347 = vpack.c.b16 %v2291, %v2287
    %v2348 = vpack.c.b16 %v2296, %v2292
    %v2349 = vpack.c.b16 %v2297, %v2293
    %v2350 = vpack.c.b16 %v2298, %v2294
    %v2351 = vpack.c.b16 %v2299, %v2295
    %v2352 = vpack.c.b16 %v2304, %v2300
    %v2353 = vpack.c.b16 %v2305, %v2301
    %v2354 = vpack.c.b16 %v2306, %v2302
    %v2355 = vpack.c.b16 %v2307, %v2303
    %v2356 = vpack.c.b16 %v2312, %v2308
    %v2357 = vpack.c.b16 %v2313, %v2309
    %v2358 = vpack.c.b16 %v2314, %v2310
    %v2359 = vpack.c.b16 %v2315, %v2311
    %v2360 = vpack.c.b16 %v2320, %v2316
    %v2361 = vpack.c.b16 %v2321, %v2317
    %v2362 = vpack.c.b16 %v2322, %v2318
    %v2363 = vpack.c.b16 %v2323, %v2319
    %v2364 = vpack.c.b16 %v2328, %v2324
    %v2365 = vpack.c.b16 %v2329, %v2325
    %v2366 = vpack.c.b16 %v2330, %v2326
    %v2367 = vpack.c.b16 %v2331, %v2327
    %v2368 = vpack.c.b16 %v2336, %v2332
    %v2369 = vpack.c.b16 %v2337, %v2333
    %v2370 = vpack.c.b16 %v2338, %v2334
    %v2371 = vpack.c.b16 %v2339, %v2335
    %2404 = vmatprep.subr.bf16.mxu0 %v2341
    %2405 = vmatpush1.bf16.msra.mxu0 %v2340
    %2406 = vmatprep.subr.bf16.mxu0 %v2345
    %2407 = vmatpush1.bf16.msra.mxu0 %v2344
    %2408 = vmatprep.subr.bf16.mxu0 %v2349
    %2409 = vmatpush1.bf16.msra.mxu0 %v2348
    %2410 = vmatprep.subr.bf16.mxu0 %v2353
    %2411 = vmatpush1.bf16.msra.mxu0 %v2352
    %2412 = vmatprep.subr.bf16.mxu0 %v2357
    %2413 = vmatpush1.bf16.msra.mxu0 %v2356
    %2414 = vmatprep.subr.bf16.mxu0 %v2361
    %2415 = vmatpush1.bf16.msra.mxu0 %v2360
    %2416 = vmatprep.subr.bf16.mxu0 %v2365
    %2417 = vmatpush1.bf16.msra.mxu0 %v2364
    %2418 = vmatprep.subr.bf16.mxu0 %v2369
    %2419 = vmatpush1.bf16.msra.mxu0 %v2368
    %2420 = vmatprep.subr.bf16.mxu0 0
    %2421 = vmatpush1.bf16.msra.mxu0 0
    %2422 = vmatprep.subr.bf16.mxu0 0
    %2423 = vmatpush1.bf16.msra.mxu0 0
    %2424 = vmatprep.subr.bf16.mxu0 0
    %2425 = vmatpush1.bf16.msra.mxu0 0
    %2426 = vmatprep.subr.bf16.mxu0 0
    %2427 = vmatpush1.bf16.msra.mxu0 0
    %2428 = vmatprep.subr.bf16.mxu0 0
    %2429 = vmatpush1.bf16.msra.mxu0 0
    %2430 = vmatprep.subr.bf16.mxu0 0
    %2431 = vmatpush1.bf16.msra.mxu0 0
    %2432 = vmatprep.subr.bf16.mxu0 0
    %2433 = vmatpush1.bf16.msra.mxu0 0
    %2434 = vmatprep.subr.bf16.mxu0 0
    %2435 = vmatpush1.bf16.msra.mxu0 0
    %2436 = vmatprep.mubr.bf16.mxu0 0
    %2437 = vmatmul.mubr.bf16.gmra.mrb[0].mxu0 %v2189
    %v2438 = vpop.f32.mrb[0].mxu0
    %v2439 = vadd.f32 %v2227, %v2438
    %v2440 = vpop.f32.mrb[0].mxu0
    %v2441 = vadd.f32 %v2231, %v2440
    %v2442 = vpop.f32.mrb[0].mxu0
    %v2443 = vpop.f32.mrb[0].mxu0
    %2444 = vdwg.mxu0
    %2445 = vmatprep.subr.bf16.mxu0 %v2343
    %2446 = vmatpush1.bf16.msra.mxu0 %v2342
    %2447 = vmatprep.subr.bf16.mxu0 %v2347
    %2448 = vmatpush1.bf16.msra.mxu0 %v2346
    %2449 = vmatprep.subr.bf16.mxu0 %v2351
    %2450 = vmatpush1.bf16.msra.mxu0 %v2350
    %2451 = vmatprep.subr.bf16.mxu0 %v2355
    %2452 = vmatpush1.bf16.msra.mxu0 %v2354
    %2453 = vmatprep.subr.bf16.mxu0 %v2359
    %2454 = vmatpush1.bf16.msra.mxu0 %v2358
    %2455 = vmatprep.subr.bf16.mxu0 %v2363
    %2456 = vmatpush1.bf16.msra.mxu0 %v2362
    %2457 = vmatprep.subr.bf16.mxu0 %v2367
    %2458 = vmatpush1.bf16.msra.mxu0 %v2366
    %2459 = vmatprep.subr.bf16.mxu0 %v2371
    %2460 = vmatpush1.bf16.msra.mxu0 %v2370
    %2461 = vmatprep.subr.bf16.mxu0 0
    %2462 = vmatpush1.bf16.msra.mxu0 0
    %2463 = vmatprep.subr.bf16.mxu0 0
    %2464 = vmatpush1.bf16.msra.mxu0 0
    %2465 = vmatprep.subr.bf16.mxu0 0
    %2466 = vmatpush1.bf16.msra.mxu0 0
    %2467 = vmatprep.subr.bf16.mxu0 0
    %2468 = vmatpush1.bf16.msra.mxu0 0
    %2469 = vmatprep.subr.bf16.mxu0 0
    %2470 = vmatpush1.bf16.msra.mxu0 0
    %2471 = vmatprep.subr.bf16.mxu0 0
    %2472 = vmatpush1.bf16.msra.mxu0 0
    %2473 = vmatprep.subr.bf16.mxu0 0
    %2474 = vmatpush1.bf16.msra.mxu0 0
    %2475 = vmatprep.subr.bf16.mxu0 0
    %2476 = vmatpush1.bf16.msra.mxu0 0
    %2477 = vmatprep.mubr.bf16.mxu0 0
    %2478 = vmatmul.mubr.bf16.gmra.mrb[0].mxu0 %v2189
    %v2479 = vpop.f32.mrb[0].mxu0
    %v2480 = vadd.f32 %v2235, %v2479
    %v2481 = vpop.f32.mrb[0].mxu0
    %v2482 = vadd.f32 %v2239, %v2481
    %v2483 = vpop.f32.mrb[0].mxu0
    %v2484 = vpop.f32.mrb[0].mxu0
    %2485 = vdwg.mxu0
    %v2486 = vmax.f32 %v2439, 0.0
    %v2487 = vmax.f32 %v2441, 0.0
    %v2488 = vmax.f32 %v2480, 0.0
    %v2489 = vmax.f32 %v2482, 0.0
    %v2490 = vpack.c.bf16 %v2486, %v2486
    %v2491 = vpack.c.bf16 %v2487, %v2487
    %v2492 = vpack.c.bf16 %v2488, %v2488
    %v2493 = vpack.c.bf16 %v2489, %v2489
    %v2494 = vld [vmem:[#allocation11] sm:$0xff]
    %v2495 = vld [vmem:[#allocation11 + $0x8] sm:$0xff]
    %v2496 = vld [vmem:[#allocation11 + $0x10] sm:$0xff]
    %v2497 = vld [vmem:[#allocation11 + $0x18] sm:$0xf]
    %v2498 = vld [vmem:[#allocation11 + $0x1c] sm:$0xff]
    %v2499 = vld [vmem:[#allocation11 + $0x24] sm:$0xff]
    %v2500 = vld [vmem:[#allocation11 + $0x2c] sm:$0xff]
    %v2501 = vld [vmem:[#allocation11 + $0x34] sm:$0xf]
    %v2502 = vld [vmem:[#allocation11 + $0x38] sm:$0xff]
    %v2503 = vld [vmem:[#allocation11 + $0x40] sm:$0xff]
    %v2504 = vld [vmem:[#allocation11 + $0x48] sm:$0xff]
    %v2505 = vld [vmem:[#allocation11 + $0x50] sm:$0xf]
    %v2506 = vld [vmem:[#allocation11 + $0x54] sm:$0xff]
    %v2507 = vld [vmem:[#allocation11 + $0x5c] sm:$0xff]
    %v2508 = vld [vmem:[#allocation11 + $0x64] sm:$0xff]
    %v2509 = vld [vmem:[#allocation11 + $0x6c] sm:$0xf]
    %v2510 = vld [vmem:[#allocation11 + $0x70] sm:$0xff]
    %v2511 = vld [vmem:[#allocation11 + $0x78] sm:$0xff]
    %v2512 = vld [vmem:[#allocation11 + $0x80] sm:$0xff]
    %v2513 = vld [vmem:[#allocation11 + $0x88] sm:$0xf]
    %v2514 = vld [vmem:[#allocation11 + $0x8c] sm:$0xff]
    %v2515 = vld [vmem:[#allocation11 + $0x94] sm:$0xff]
    %v2516 = vld [vmem:[#allocation11 + $0x9c] sm:$0xff]
    %v2517 = vld [vmem:[#allocation11 + $0xa4] sm:$0xf]
    %v2518 = vld [vmem:[#allocation11 + $0xa8] sm:$0xff]
    %v2519 = vld [vmem:[#allocation11 + $0xb0] sm:$0xff]
    %v2520 = vld [vmem:[#allocation11 + $0xb8] sm:$0xff]
    %v2521 = vld [vmem:[#allocation11 + $0xc0] sm:$0xf]
    %v2522 = vld [vmem:[#allocation11 + $0xc4] sm:$0xff]
    %v2523 = vld [vmem:[#allocation11 + $0xcc] sm:$0xff]
    %v2524 = vld [vmem:[#allocation11 + $0xd4] sm:$0xff]
    %v2525 = vld [vmem:[#allocation11 + $0xdc] sm:$0xf]
    %v2526 = vld [vmem:[#allocation11 + $0xe0] sm:$0xff]
    %v2527 = vld [vmem:[#allocation11 + $0xe8] sm:$0xff]
    %v2528 = vld [vmem:[#allocation11 + $0xf0] sm:$0xff]
    %v2529 = vld [vmem:[#allocation11 + $0xf8] sm:$0xf]
    %v2530 = vld [vmem:[#allocation11 + $0xfc] sm:$0xff]
    %v2531 = vld [vmem:[#allocation11 + $0x104] sm:$0xff]
    %v2532 = vld [vmem:[#allocation11 + $0x10c] sm:$0xff]
    %v2533 = vld [vmem:[#allocation11 + $0x114] sm:$0xf]
    %v2534 = vld [vmem:[#allocation11 + $0x118] sm:$0xff]
    %v2535 = vld [vmem:[#allocation11 + $0x120] sm:$0xff]
    %v2536 = vld [vmem:[#allocation11 + $0x128] sm:$0xff]
    %v2537 = vld [vmem:[#allocation11 + $0x130] sm:$0xf]
    %v2538 = vld [vmem:[#allocation11 + $0x134] sm:$0xff]
    %v2539 = vld [vmem:[#allocation11 + $0x13c] sm:$0xff]
    %v2540 = vld [vmem:[#allocation11 + $0x144] sm:$0xff]
    %v2541 = vld [vmem:[#allocation11 + $0x14c] sm:$0xf]
    %v2542 = vld [vmem:[#allocation11 + $0x150] sm:$0xff]
    %v2543 = vld [vmem:[#allocation11 + $0x158] sm:$0xff]
    %v2544 = vld [vmem:[#allocation11 + $0x160] sm:$0xff]
    %v2545 = vld [vmem:[#allocation11 + $0x168] sm:$0xf]
    %v2546 = vld [vmem:[#allocation11 + $0x16c] sm:$0xff]
    %v2547 = vld [vmem:[#allocation11 + $0x174] sm:$0xff]
    %v2548 = vld [vmem:[#allocation11 + $0x17c] sm:$0xff]
    %v2549 = vld [vmem:[#allocation11 + $0x184] sm:$0xf]
    %v2550 = vld [vmem:[#allocation11 + $0x188] sm:$0xff]
    %v2551 = vld [vmem:[#allocation11 + $0x190] sm:$0xff]
    %v2552 = vld [vmem:[#allocation11 + $0x198] sm:$0xff]
    %v2553 = vld [vmem:[#allocation11 + $0x1a0] sm:$0xf]
    %v2554 = vld [vmem:[#allocation11 + $0x1a4] sm:$0xff]
    %v2555 = vld [vmem:[#allocation11 + $0x1ac] sm:$0xff]
    %v2556 = vld [vmem:[#allocation11 + $0x1b4] sm:$0xff]
    %v2557 = vld [vmem:[#allocation11 + $0x1bc] sm:$0xf]
    %v2558 = vld [vmem:[#allocation11 + $0x1c0] sm:$0xff]
    %v2559 = vld [vmem:[#allocation11 + $0x1c8] sm:$0xff]
    %v2560 = vld [vmem:[#allocation11 + $0x1d0] sm:$0xff]
    %v2561 = vld [vmem:[#allocation11 + $0x1d8] sm:$0xf]
    %v2562 = vld [vmem:[#allocation11 + $0x1dc] sm:$0xff]
    %v2563 = vld [vmem:[#allocation11 + $0x1e4] sm:$0xff]
    %v2564 = vld [vmem:[#allocation11 + $0x1ec] sm:$0xff]
    %v2565 = vld [vmem:[#allocation11 + $0x1f4] sm:$0xf]
    %v2566 = vld [vmem:[#allocation11 + $0x1f8] sm:$0xff]
    %v2567 = vld [vmem:[#allocation11 + $0x200] sm:$0xff]
    %v2568 = vld [vmem:[#allocation11 + $0x208] sm:$0xff]
    %v2569 = vld [vmem:[#allocation11 + $0x210] sm:$0xf]
    %v2570 = vld [vmem:[#allocation11 + $0x214] sm:$0xff]
    %v2571 = vld [vmem:[#allocation11 + $0x21c] sm:$0xff]
    %v2572 = vld [vmem:[#allocation11 + $0x224] sm:$0xff]
    %v2573 = vld [vmem:[#allocation11 + $0x22c] sm:$0xf]
    %v2574 = vld [vmem:[#allocation11 + $0x230] sm:$0xff]
    %v2575 = vld [vmem:[#allocation11 + $0x238] sm:$0xff]
    %v2576 = vld [vmem:[#allocation11 + $0x240] sm:$0xff]
    %v2577 = vld [vmem:[#allocation11 + $0x248] sm:$0xf]
    %v2578 = vld [vmem:[#allocation11 + $0x24c] sm:$0xff]
    %v2579 = vld [vmem:[#allocation11 + $0x254] sm:$0xff]
    %v2580 = vld [vmem:[#allocation11 + $0x25c] sm:$0xff]
    %v2581 = vld [vmem:[#allocation11 + $0x264] sm:$0xf]
    %v2582 = vld [vmem:[#allocation11 + $0x268] sm:$0xff]
    %v2583 = vld [vmem:[#allocation11 + $0x270] sm:$0xff]
    %v2584 = vld [vmem:[#allocation11 + $0x278] sm:$0xff]
    %v2585 = vld [vmem:[#allocation11 + $0x280] sm:$0xf]
    %v2586 = vld [vmem:[#allocation11 + $0x284] sm:$0xff]
    %v2587 = vld [vmem:[#allocation11 + $0x28c] sm:$0xff]
    %v2588 = vld [vmem:[#allocation11 + $0x294] sm:$0xff]
    %v2589 = vld [vmem:[#allocation11 + $0x29c] sm:$0xf]
    %v2590 = vld [vmem:[#allocation11 + $0x2a0] sm:$0xff]
    %v2591 = vld [vmem:[#allocation11 + $0x2a8] sm:$0xff]
    %v2592 = vld [vmem:[#allocation11 + $0x2b0] sm:$0xff]
    %v2593 = vld [vmem:[#allocation11 + $0x2b8] sm:$0xf]
    %v2594 = vld [vmem:[#allocation11 + $0x2bc] sm:$0xff]
    %v2595 = vld [vmem:[#allocation11 + $0x2c4] sm:$0xff]
    %v2596 = vld [vmem:[#allocation11 + $0x2cc] sm:$0xff]
    %v2597 = vld [vmem:[#allocation11 + $0x2d4] sm:$0xf]
    %v2598 = vld [vmem:[#allocation11 + $0x2d8] sm:$0xff]
    %v2599 = vld [vmem:[#allocation11 + $0x2e0] sm:$0xff]
    %v2600 = vld [vmem:[#allocation11 + $0x2e8] sm:$0xff]
    %v2601 = vld [vmem:[#allocation11 + $0x2f0] sm:$0xf]
    %v2602 = vld [vmem:[#allocation11 + $0x2f4] sm:$0xff]
    %v2603 = vld [vmem:[#allocation11 + $0x2fc] sm:$0xff]
    %v2604 = vld [vmem:[#allocation11 + $0x304] sm:$0xff]
    %v2605 = vld [vmem:[#allocation11 + $0x30c] sm:$0xf]
    %v2606 = vld [vmem:[#allocation11 + $0x310] sm:$0xff]
    %v2607 = vld [vmem:[#allocation11 + $0x318] sm:$0xff]
    %v2608 = vld [vmem:[#allocation11 + $0x320] sm:$0xff]
    %v2609 = vld [vmem:[#allocation11 + $0x328] sm:$0xf]
    %v2610 = vld [vmem:[#allocation11 + $0x32c] sm:$0xff]
    %v2611 = vld [vmem:[#allocation11 + $0x334] sm:$0xff]
    %v2612 = vld [vmem:[#allocation11 + $0x33c] sm:$0xff]
    %v2613 = vld [vmem:[#allocation11 + $0x344] sm:$0xf]
    %v2614 = vld [vmem:[#allocation11 + $0x348] sm:$0xff]
    %v2615 = vld [vmem:[#allocation11 + $0x350] sm:$0xff]
    %v2616 = vld [vmem:[#allocation11 + $0x358] sm:$0xff]
    %v2617 = vld [vmem:[#allocation11 + $0x360] sm:$0xf]
    %v2618 = vld [vmem:[#allocation11 + $0x364] sm:$0xff]
    %v2619 = vld [vmem:[#allocation11 + $0x36c] sm:$0xff]
    %v2620 = vld [vmem:[#allocation11 + $0x374] sm:$0xff]
    %v2621 = vld [vmem:[#allocation11 + $0x37c] sm:$0xf]
    %v2622 = vld [vmem:[#allocation11 + $0x380] sm:$0xff]
    %v2623 = vld [vmem:[#allocation11 + $0x388] sm:$0xff]
    %v2624 = vld [vmem:[#allocation11 + $0x390] sm:$0xff]
    %v2625 = vld [vmem:[#allocation11 + $0x398] sm:$0xf]
    %v2626 = vld [vmem:[#allocation11 + $0x39c] sm:$0xff]
    %v2627 = vld [vmem:[#allocation11 + $0x3a4] sm:$0xff]
    %v2628 = vld [vmem:[#allocation11 + $0x3ac] sm:$0xff]
    %v2629 = vld [vmem:[#allocation11 + $0x3b4] sm:$0xf]
    %v2630 = vld [vmem:[#allocation11 + $0x3b8] sm:$0xff]
    %v2631 = vld [vmem:[#allocation11 + $0x3c0] sm:$0xff]
    %v2632 = vld [vmem:[#allocation11 + $0x3c8] sm:$0xff]
    %v2633 = vld [vmem:[#allocation11 + $0x3d0] sm:$0xf]
    %v2634 = vld [vmem:[#allocation11 + $0x3d4] sm:$0xff]
    %v2635 = vld [vmem:[#allocation11 + $0x3dc] sm:$0xff]
    %v2636 = vld [vmem:[#allocation11 + $0x3e4] sm:$0xff]
    %v2637 = vld [vmem:[#allocation11 + $0x3ec] sm:$0xf]
    %v2638 = vld [vmem:[#allocation11 + $0x3f0] sm:$0xff]
    %v2639 = vld [vmem:[#allocation11 + $0x3f8] sm:$0xff]
    %v2640 = vld [vmem:[#allocation11 + $0x400] sm:$0xff]
    %v2641 = vld [vmem:[#allocation11 + $0x408] sm:$0xf]
    %v2642 = vld [vmem:[#allocation11 + $0x40c] sm:$0xff]
    %v2643 = vld [vmem:[#allocation11 + $0x414] sm:$0xff]
    %v2644 = vld [vmem:[#allocation11 + $0x41c] sm:$0xff]
    %v2645 = vld [vmem:[#allocation11 + $0x424] sm:$0xf]
    %v2646 = vld [vmem:[#allocation11 + $0x428] sm:$0xff]
    %v2647 = vld [vmem:[#allocation11 + $0x430] sm:$0xff]
    %v2648 = vld [vmem:[#allocation11 + $0x438] sm:$0xff]
    %v2649 = vld [vmem:[#allocation11 + $0x440] sm:$0xf]
    %v2650 = vld [vmem:[#allocation11 + $0x444] sm:$0xff]
    %v2651 = vld [vmem:[#allocation11 + $0x44c] sm:$0xff]
    %v2652 = vld [vmem:[#allocation11 + $0x454] sm:$0xff]
    %v2653 = vld [vmem:[#allocation11 + $0x45c] sm:$0xf]
    %v2654 = vld [vmem:[#allocation11 + $0x460] sm:$0xff]
    %v2655 = vld [vmem:[#allocation11 + $0x468] sm:$0xff]
    %v2656 = vld [vmem:[#allocation11 + $0x470] sm:$0xff]
    %v2657 = vld [vmem:[#allocation11 + $0x478] sm:$0xf]
    %v2658 = vld [vmem:[#allocation11 + $0x47c] sm:$0xff]
    %v2659 = vld [vmem:[#allocation11 + $0x484] sm:$0xff]
    %v2660 = vld [vmem:[#allocation11 + $0x48c] sm:$0xff]
    %v2661 = vld [vmem:[#allocation11 + $0x494] sm:$0xf]
    %v2662 = vld [vmem:[#allocation11 + $0x498] sm:$0xff]
    %v2663 = vld [vmem:[#allocation11 + $0x4a0] sm:$0xff]
    %v2664 = vld [vmem:[#allocation11 + $0x4a8] sm:$0xff]
    %v2665 = vld [vmem:[#allocation11 + $0x4b0] sm:$0xf]
    %v2666 = vld [vmem:[#allocation11 + $0x4b4] sm:$0xff]
    %v2667 = vld [vmem:[#allocation11 + $0x4bc] sm:$0xff]
    %v2668 = vld [vmem:[#allocation11 + $0x4c4] sm:$0xff]
    %v2669 = vld [vmem:[#allocation11 + $0x4cc] sm:$0xf]
    %v2670 = vld [vmem:[#allocation11 + $0x4d0] sm:$0xff]
    %v2671 = vld [vmem:[#allocation11 + $0x4d8] sm:$0xff]
    %v2672 = vld [vmem:[#allocation11 + $0x4e0] sm:$0xff]
    %v2673 = vld [vmem:[#allocation11 + $0x4e8] sm:$0xf]
    %v2674 = vld [vmem:[#allocation11 + $0x4ec] sm:$0xff]
    %v2675 = vld [vmem:[#allocation11 + $0x4f4] sm:$0xff]
    %v2676 = vld [vmem:[#allocation11 + $0x4fc] sm:$0xff]
    %v2677 = vld [vmem:[#allocation11 + $0x504] sm:$0xf]
    %v2678 = vld [vmem:[#allocation11 + $0x508] sm:$0xff]
    %v2679 = vld [vmem:[#allocation11 + $0x510] sm:$0xff]
    %v2680 = vld [vmem:[#allocation11 + $0x518] sm:$0xff]
    %v2681 = vld [vmem:[#allocation11 + $0x520] sm:$0xf]
    %v2682 = vld [vmem:[#allocation11 + $0x524] sm:$0xff]
    %v2683 = vld [vmem:[#allocation11 + $0x52c] sm:$0xff]
    %v2684 = vld [vmem:[#allocation11 + $0x534] sm:$0xff]
    %v2685 = vld [vmem:[#allocation11 + $0x53c] sm:$0xf]
    %v2686 = vld [vmem:[#allocation11 + $0x540] sm:$0xff]
    %v2687 = vld [vmem:[#allocation11 + $0x548] sm:$0xff]
    %v2688 = vld [vmem:[#allocation11 + $0x550] sm:$0xff]
    %v2689 = vld [vmem:[#allocation11 + $0x558] sm:$0xf]
    %v2690 = vld [vmem:[#allocation11 + $0x55c] sm:$0xff]
    %v2691 = vld [vmem:[#allocation11 + $0x564] sm:$0xff]
    %v2692 = vld [vmem:[#allocation11 + $0x56c] sm:$0xff]
    %v2693 = vld [vmem:[#allocation11 + $0x574] sm:$0xf]
    %v2694 = vld [vmem:[#allocation11 + $0x578] sm:$0xff]
    %v2695 = vld [vmem:[#allocation11 + $0x580] sm:$0xff]
    %v2696 = vld [vmem:[#allocation11 + $0x588] sm:$0xff]
    %v2697 = vld [vmem:[#allocation11 + $0x590] sm:$0xf]
    %v2698 = vld [vmem:[#allocation11 + $0x594] sm:$0xff]
    %v2699 = vld [vmem:[#allocation11 + $0x59c] sm:$0xff]
    %v2700 = vld [vmem:[#allocation11 + $0x5a4] sm:$0xff]
    %v2701 = vld [vmem:[#allocation11 + $0x5ac] sm:$0xf]
    %v2702 = vld [vmem:[#allocation11 + $0x5b0] sm:$0xff]
    %v2703 = vld [vmem:[#allocation11 + $0x5b8] sm:$0xff]
    %v2704 = vld [vmem:[#allocation11 + $0x5c0] sm:$0xff]
    %v2705 = vld [vmem:[#allocation11 + $0x5c8] sm:$0xf]
    %v2706 = vld [vmem:[#allocation11 + $0x5cc] sm:$0xff]
    %v2707 = vld [vmem:[#allocation11 + $0x5d4] sm:$0xff]
    %v2708 = vld [vmem:[#allocation11 + $0x5dc] sm:$0xff]
    %v2709 = vld [vmem:[#allocation11 + $0x5e4] sm:$0xf]
    %v2710 = vld [vmem:[#allocation11 + $0x5e8] sm:$0xff]
    %v2711 = vld [vmem:[#allocation11 + $0x5f0] sm:$0xff]
    %v2712 = vld [vmem:[#allocation11 + $0x5f8] sm:$0xff]
    %v2713 = vld [vmem:[#allocation11 + $0x600] sm:$0xf]
    %v2714 = vld [vmem:[#allocation11 + $0x604] sm:$0xff]
    %v2715 = vld [vmem:[#allocation11 + $0x60c] sm:$0xff]
    %v2716 = vld [vmem:[#allocation11 + $0x614] sm:$0xff]
    %v2717 = vld [vmem:[#allocation11 + $0x61c] sm:$0xf]
    %v2718 = vld [vmem:[#allocation11 + $0x620] sm:$0xff]
    %v2719 = vld [vmem:[#allocation11 + $0x628] sm:$0xff]
    %v2720 = vld [vmem:[#allocation11 + $0x630] sm:$0xff]
    %v2721 = vld [vmem:[#allocation11 + $0x638] sm:$0xf]
    %v2722 = vld [vmem:[#allocation11 + $0x63c] sm:$0xff]
    %v2723 = vld [vmem:[#allocation11 + $0x644] sm:$0xff]
    %v2724 = vld [vmem:[#allocation11 + $0x64c] sm:$0xff]
    %v2725 = vld [vmem:[#allocation11 + $0x654] sm:$0xf]
    %v2726 = vld [vmem:[#allocation11 + $0x658] sm:$0xff]
    %v2727 = vld [vmem:[#allocation11 + $0x660] sm:$0xff]
    %v2728 = vld [vmem:[#allocation11 + $0x668] sm:$0xff]
    %v2729 = vld [vmem:[#allocation11 + $0x670] sm:$0xf]
    %v2730 = vld [vmem:[#allocation11 + $0x674] sm:$0xff]
    %v2731 = vld [vmem:[#allocation11 + $0x67c] sm:$0xff]
    %v2732 = vld [vmem:[#allocation11 + $0x684] sm:$0xff]
    %v2733 = vld [vmem:[#allocation11 + $0x68c] sm:$0xf]
    %v2734 = vld [vmem:[#allocation11 + $0x690] sm:$0xff]
    %v2735 = vld [vmem:[#allocation11 + $0x698] sm:$0xff]
    %v2736 = vld [vmem:[#allocation11 + $0x6a0] sm:$0xff]
    %v2737 = vld [vmem:[#allocation11 + $0x6a8] sm:$0xf]
    %v2738 = vld [vmem:[#allocation11 + $0x6ac] sm:$0xff]
    %v2739 = vld [vmem:[#allocation11 + $0x6b4] sm:$0xff]
    %v2740 = vld [vmem:[#allocation11 + $0x6bc] sm:$0xff]
    %v2741 = vld [vmem:[#allocation11 + $0x6c4] sm:$0xf]
    %v2742 = vld [vmem:[#allocation11 + $0x6c8] sm:$0xff]
    %v2743 = vld [vmem:[#allocation11 + $0x6d0] sm:$0xff]
    %v2744 = vld [vmem:[#allocation11 + $0x6d8] sm:$0xff]
    %v2745 = vld [vmem:[#allocation11 + $0x6e0] sm:$0xf]
    %v2746 = vld [vmem:[#allocation11 + $0x6e4] sm:$0xff]
    %v2747 = vld [vmem:[#allocation11 + $0x6ec] sm:$0xff]
    %v2748 = vld [vmem:[#allocation11 + $0x6f4] sm:$0xff]
    %v2749 = vld [vmem:[#allocation11 + $0x6fc] sm:$0xf]
    %v3006 = vunpack.c.l.b16 %v2494
    %v3007 = vunpack.c.h.b16 %v2494
    %v3008 = vunpack.c.l.b16 %v2495
    %v3009 = vunpack.c.h.b16 %v2495
    %v3010 = vunpack.c.l.b16 %v2496
    %v3011 = vunpack.c.h.b16 %v2496
    %v3012 = vunpack.c.l.b16 %v2497
    %v3013 = vunpack.c.l.b16 %v2498
    %v3014 = vunpack.c.h.b16 %v2498
    %v3015 = vunpack.c.l.b16 %v2499
    %v3016 = vunpack.c.h.b16 %v2499
    %v3017 = vunpack.c.l.b16 %v2500
    %v3018 = vunpack.c.h.b16 %v2500
    %v3019 = vunpack.c.l.b16 %v2501
    %v3020 = vunpack.c.l.b16 %v2502
    %v3021 = vunpack.c.h.b16 %v2502
    %v3022 = vunpack.c.l.b16 %v2503
    %v3023 = vunpack.c.h.b16 %v2503
    %v3024 = vunpack.c.l.b16 %v2504
    %v3025 = vunpack.c.h.b16 %v2504
    %v3026 = vunpack.c.l.b16 %v2505
    %v3027 = vunpack.c.l.b16 %v2506
    %v3028 = vunpack.c.h.b16 %v2506
    %v3029 = vunpack.c.l.b16 %v2507
    %v3030 = vunpack.c.h.b16 %v2507
    %v3031 = vunpack.c.l.b16 %v2508
    %v3032 = vunpack.c.h.b16 %v2508
    %v3033 = vunpack.c.l.b16 %v2509
    %v3034 = vunpack.c.l.b16 %v2510
    %v3035 = vunpack.c.h.b16 %v2510
    %v3036 = vunpack.c.l.b16 %v2511
    %v3037 = vunpack.c.h.b16 %v2511
    %v3038 = vunpack.c.l.b16 %v2512
    %v3039 = vunpack.c.h.b16 %v2512
    %v3040 = vunpack.c.l.b16 %v2513
    %v3041 = vunpack.c.l.b16 %v2514
    %v3042 = vunpack.c.h.b16 %v2514
    %v3043 = vunpack.c.l.b16 %v2515
    %v3044 = vunpack.c.h.b16 %v2515
    %v3045 = vunpack.c.l.b16 %v2516
    %v3046 = vunpack.c.h.b16 %v2516
    %v3047 = vunpack.c.l.b16 %v2517
    %v3048 = vunpack.c.l.b16 %v2518
    %v3049 = vunpack.c.h.b16 %v2518
    %v3050 = vunpack.c.l.b16 %v2519
    %v3051 = vunpack.c.h.b16 %v2519
    %v3052 = vunpack.c.l.b16 %v2520
    %v3053 = vunpack.c.h.b16 %v2520
    %v3054 = vunpack.c.l.b16 %v2521
    %v3055 = vunpack.c.l.b16 %v2522
    %v3056 = vunpack.c.h.b16 %v2522
    %v3057 = vunpack.c.l.b16 %v2523
    %v3058 = vunpack.c.h.b16 %v2523
    %v3059 = vunpack.c.l.b16 %v2524
    %v3060 = vunpack.c.h.b16 %v2524
    %v3061 = vunpack.c.l.b16 %v2525
    %v3062 = vunpack.c.l.b16 %v2526
    %v3063 = vunpack.c.h.b16 %v2526
    %v3064 = vunpack.c.l.b16 %v2527
    %v3065 = vunpack.c.h.b16 %v2527
    %v3066 = vunpack.c.l.b16 %v2528
    %v3067 = vunpack.c.h.b16 %v2528
    %v3068 = vunpack.c.l.b16 %v2529
    %v3069 = vunpack.c.l.b16 %v2530
    %v3070 = vunpack.c.h.b16 %v2530
    %v3071 = vunpack.c.l.b16 %v2531
    %v3072 = vunpack.c.h.b16 %v2531
    %v3073 = vunpack.c.l.b16 %v2532
    %v3074 = vunpack.c.h.b16 %v2532
    %v3075 = vunpack.c.l.b16 %v2533
    %v3076 = vunpack.c.l.b16 %v2534
    %v3077 = vunpack.c.h.b16 %v2534
    %v3078 = vunpack.c.l.b16 %v2535
    %v3079 = vunpack.c.h.b16 %v2535
    %v3080 = vunpack.c.l.b16 %v2536
    %v3081 = vunpack.c.h.b16 %v2536
    %v3082 = vunpack.c.l.b16 %v2537
    %v3083 = vunpack.c.l.b16 %v2538
    %v3084 = vunpack.c.h.b16 %v2538
    %v3085 = vunpack.c.l.b16 %v2539
    %v3086 = vunpack.c.h.b16 %v2539
    %v3087 = vunpack.c.l.b16 %v2540
    %v3088 = vunpack.c.h.b16 %v2540
    %v3089 = vunpack.c.l.b16 %v2541
    %v3090 = vunpack.c.l.b16 %v2542
    %v3091 = vunpack.c.h.b16 %v2542
    %v3092 = vunpack.c.l.b16 %v2543
    %v3093 = vunpack.c.h.b16 %v2543
    %v3094 = vunpack.c.l.b16 %v2544
    %v3095 = vunpack.c.h.b16 %v2544
    %v3096 = vunpack.c.l.b16 %v2545
    %v3097 = vunpack.c.l.b16 %v2546
    %v3098 = vunpack.c.h.b16 %v2546
    %v3099 = vunpack.c.l.b16 %v2547
    %v3100 = vunpack.c.h.b16 %v2547
    %v3101 = vunpack.c.l.b16 %v2548
    %v3102 = vunpack.c.h.b16 %v2548
    %v3103 = vunpack.c.l.b16 %v2549
    %v3104 = vunpack.c.l.b16 %v2550
    %v3105 = vunpack.c.h.b16 %v2550
    %v3106 = vunpack.c.l.b16 %v2551
    %v3107 = vunpack.c.h.b16 %v2551
    %v3108 = vunpack.c.l.b16 %v2552
    %v3109 = vunpack.c.h.b16 %v2552
    %v3110 = vunpack.c.l.b16 %v2553
    %v3111 = vunpack.c.l.b16 %v2554
    %v3112 = vunpack.c.h.b16 %v2554
    %v3113 = vunpack.c.l.b16 %v2555
    %v3114 = vunpack.c.h.b16 %v2555
    %v3115 = vunpack.c.l.b16 %v2556
    %v3116 = vunpack.c.h.b16 %v2556
    %v3117 = vunpack.c.l.b16 %v2557
    %v3118 = vunpack.c.l.b16 %v2558
    %v3119 = vunpack.c.h.b16 %v2558
    %v3120 = vunpack.c.l.b16 %v2559
    %v3121 = vunpack.c.h.b16 %v2559
    %v3122 = vunpack.c.l.b16 %v2560
    %v3123 = vunpack.c.h.b16 %v2560
    %v3124 = vunpack.c.l.b16 %v2561
    %v3125 = vunpack.c.l.b16 %v2562
    %v3126 = vunpack.c.h.b16 %v2562
    %v3127 = vunpack.c.l.b16 %v2563
    %v3128 = vunpack.c.h.b16 %v2563
    %v3129 = vunpack.c.l.b16 %v2564
    %v3130 = vunpack.c.h.b16 %v2564
    %v3131 = vunpack.c.l.b16 %v2565
    %v3132 = vunpack.c.l.b16 %v2566
    %v3133 = vunpack.c.h.b16 %v2566
    %v3134 = vunpack.c.l.b16 %v2567
    %v3135 = vunpack.c.h.b16 %v2567
    %v3136 = vunpack.c.l.b16 %v2568
    %v3137 = vunpack.c.h.b16 %v2568
    %v3138 = vunpack.c.l.b16 %v2569
    %v3139 = vunpack.c.l.b16 %v2570
    %v3140 = vunpack.c.h.b16 %v2570
    %v3141 = vunpack.c.l.b16 %v2571
    %v3142 = vunpack.c.h.b16 %v2571
    %v3143 = vunpack.c.l.b16 %v2572
    %v3144 = vunpack.c.h.b16 %v2572
    %v3145 = vunpack.c.l.b16 %v2573
    %v3146 = vunpack.c.l.b16 %v2574
    %v3147 = vunpack.c.h.b16 %v2574
    %v3148 = vunpack.c.l.b16 %v2575
    %v3149 = vunpack.c.h.b16 %v2575
    %v3150 = vunpack.c.l.b16 %v2576
    %v3151 = vunpack.c.h.b16 %v2576
    %v3152 = vunpack.c.l.b16 %v2577
    %v3153 = vunpack.c.l.b16 %v2578
    %v3154 = vunpack.c.h.b16 %v2578
    %v3155 = vunpack.c.l.b16 %v2579
    %v3156 = vunpack.c.h.b16 %v2579
    %v3157 = vunpack.c.l.b16 %v2580
    %v3158 = vunpack.c.h.b16 %v2580
    %v3159 = vunpack.c.l.b16 %v2581
    %v3160 = vunpack.c.l.b16 %v2582
    %v3161 = vunpack.c.h.b16 %v2582
    %v3162 = vunpack.c.l.b16 %v2583
    %v3163 = vunpack.c.h.b16 %v2583
    %v3164 = vunpack.c.l.b16 %v2584
    %v3165 = vunpack.c.h.b16 %v2584
    %v3166 = vunpack.c.l.b16 %v2585
    %v3167 = vunpack.c.l.b16 %v2586
    %v3168 = vunpack.c.h.b16 %v2586
    %v3169 = vunpack.c.l.b16 %v2587
    %v3170 = vunpack.c.h.b16 %v2587
    %v3171 = vunpack.c.l.b16 %v2588
    %v3172 = vunpack.c.h.b16 %v2588
    %v3173 = vunpack.c.l.b16 %v2589
    %v3174 = vunpack.c.l.b16 %v2590
    %v3175 = vunpack.c.h.b16 %v2590
    %v3176 = vunpack.c.l.b16 %v2591
    %v3177 = vunpack.c.h.b16 %v2591
    %v3178 = vunpack.c.l.b16 %v2592
    %v3179 = vunpack.c.h.b16 %v2592
    %v3180 = vunpack.c.l.b16 %v2593
    %v3181 = vunpack.c.l.b16 %v2594
    %v3182 = vunpack.c.h.b16 %v2594
    %v3183 = vunpack.c.l.b16 %v2595
    %v3184 = vunpack.c.h.b16 %v2595
    %v3185 = vunpack.c.l.b16 %v2596
    %v3186 = vunpack.c.h.b16 %v2596
    %v3187 = vunpack.c.l.b16 %v2597
    %v3188 = vunpack.c.l.b16 %v2598
    %v3189 = vunpack.c.h.b16 %v2598
    %v3190 = vunpack.c.l.b16 %v2599
    %v3191 = vunpack.c.h.b16 %v2599
    %v3192 = vunpack.c.l.b16 %v2600
    %v3193 = vunpack.c.h.b16 %v2600
    %v3194 = vunpack.c.l.b16 %v2601
    %v3195 = vunpack.c.l.b16 %v2602
    %v3196 = vunpack.c.h.b16 %v2602
    %v3197 = vunpack.c.l.b16 %v2603
    %v3198 = vunpack.c.h.b16 %v2603
    %v3199 = vunpack.c.l.b16 %v2604
    %v3200 = vunpack.c.h.b16 %v2604
    %v3201 = vunpack.c.l.b16 %v2605
    %v3202 = vunpack.c.l.b16 %v2606
    %v3203 = vunpack.c.h.b16 %v2606
    %v3204 = vunpack.c.l.b16 %v2607
    %v3205 = vunpack.c.h.b16 %v2607
    %v3206 = vunpack.c.l.b16 %v2608
    %v3207 = vunpack.c.h.b16 %v2608
    %v3208 = vunpack.c.l.b16 %v2609
    %v3209 = vunpack.c.l.b16 %v2610
    %v3210 = vunpack.c.h.b16 %v2610
    %v3211 = vunpack.c.l.b16 %v2611
    %v3212 = vunpack.c.h.b16 %v2611
    %v3213 = vunpack.c.l.b16 %v2612
    %v3214 = vunpack.c.h.b16 %v2612
    %v3215 = vunpack.c.l.b16 %v2613
    %v3216 = vunpack.c.l.b16 %v2614
    %v3217 = vunpack.c.h.b16 %v2614
    %v3218 = vunpack.c.l.b16 %v2615
    %v3219 = vunpack.c.h.b16 %v2615
    %v3220 = vunpack.c.l.b16 %v2616
    %v3221 = vunpack.c.h.b16 %v2616
    %v3222 = vunpack.c.l.b16 %v2617
    %v3223 = vunpack.c.l.b16 %v2618
    %v3224 = vunpack.c.h.b16 %v2618
    %v3225 = vunpack.c.l.b16 %v2619
    %v3226 = vunpack.c.h.b16 %v2619
    %v3227 = vunpack.c.l.b16 %v2620
    %v3228 = vunpack.c.h.b16 %v2620
    %v3229 = vunpack.c.l.b16 %v2621
    %v3230 = vunpack.c.l.b16 %v2622
    %v3231 = vunpack.c.h.b16 %v2622
    %v3232 = vunpack.c.l.b16 %v2623
    %v3233 = vunpack.c.h.b16 %v2623
    %v3234 = vunpack.c.l.b16 %v2624
    %v3235 = vunpack.c.h.b16 %v2624
    %v3236 = vunpack.c.l.b16 %v2625
    %v3237 = vunpack.c.l.b16 %v2626
    %v3238 = vunpack.c.h.b16 %v2626
    %v3239 = vunpack.c.l.b16 %v2627
    %v3240 = vunpack.c.h.b16 %v2627
    %v3241 = vunpack.c.l.b16 %v2628
    %v3242 = vunpack.c.h.b16 %v2628
    %v3243 = vunpack.c.l.b16 %v2629
    %v3244 = vunpack.c.l.b16 %v2630
    %v3245 = vunpack.c.h.b16 %v2630
    %v3246 = vunpack.c.l.b16 %v2631
    %v3247 = vunpack.c.h.b16 %v2631
    %v3248 = vunpack.c.l.b16 %v2632
    %v3249 = vunpack.c.h.b16 %v2632
    %v3250 = vunpack.c.l.b16 %v2633
    %v3251 = vunpack.c.l.b16 %v2634
    %v3252 = vunpack.c.h.b16 %v2634
    %v3253 = vunpack.c.l.b16 %v2635
    %v3254 = vunpack.c.h.b16 %v2635
    %v3255 = vunpack.c.l.b16 %v2636
    %v3256 = vunpack.c.h.b16 %v2636
    %v3257 = vunpack.c.l.b16 %v2637
    %v3258 = vunpack.c.l.b16 %v2638
    %v3259 = vunpack.c.h.b16 %v2638
    %v3260 = vunpack.c.l.b16 %v2639
    %v3261 = vunpack.c.h.b16 %v2639
    %v3262 = vunpack.c.l.b16 %v2640
    %v3263 = vunpack.c.h.b16 %v2640
    %v3264 = vunpack.c.l.b16 %v2641
    %v3265 = vunpack.c.l.b16 %v2642
    %v3266 = vunpack.c.h.b16 %v2642
    %v3267 = vunpack.c.l.b16 %v2643
    %v3268 = vunpack.c.h.b16 %v2643
    %v3269 = vunpack.c.l.b16 %v2644
    %v3270 = vunpack.c.h.b16 %v2644
    %v3271 = vunpack.c.l.b16 %v2645
    %v3272 = vunpack.c.l.b16 %v2646
    %v3273 = vunpack.c.h.b16 %v2646
    %v3274 = vunpack.c.l.b16 %v2647
    %v3275 = vunpack.c.h.b16 %v2647
    %v3276 = vunpack.c.l.b16 %v2648
    %v3277 = vunpack.c.h.b16 %v2648
    %v3278 = vunpack.c.l.b16 %v2649
    %v3279 = vunpack.c.l.b16 %v2650
    %v3280 = vunpack.c.h.b16 %v2650
    %v3281 = vunpack.c.l.b16 %v2651
    %v3282 = vunpack.c.h.b16 %v2651
    %v3283 = vunpack.c.l.b16 %v2652
    %v3284 = vunpack.c.h.b16 %v2652
    %v3285 = vunpack.c.l.b16 %v2653
    %v3286 = vunpack.c.l.b16 %v2654
    %v3287 = vunpack.c.h.b16 %v2654
    %v3288 = vunpack.c.l.b16 %v2655
    %v3289 = vunpack.c.h.b16 %v2655
    %v3290 = vunpack.c.l.b16 %v2656
    %v3291 = vunpack.c.h.b16 %v2656
    %v3292 = vunpack.c.l.b16 %v2657
    %v3293 = vunpack.c.l.b16 %v2658
    %v3294 = vunpack.c.h.b16 %v2658
    %v3295 = vunpack.c.l.b16 %v2659
    %v3296 = vunpack.c.h.b16 %v2659
    %v3297 = vunpack.c.l.b16 %v2660
    %v3298 = vunpack.c.h.b16 %v2660
    %v3299 = vunpack.c.l.b16 %v2661
    %v3300 = vunpack.c.l.b16 %v2662
    %v3301 = vunpack.c.h.b16 %v2662
    %v3302 = vunpack.c.l.b16 %v2663
    %v3303 = vunpack.c.h.b16 %v2663
    %v3304 = vunpack.c.l.b16 %v2664
    %v3305 = vunpack.c.h.b16 %v2664
    %v3306 = vunpack.c.l.b16 %v2665
    %v3307 = vunpack.c.l.b16 %v2666
    %v3308 = vunpack.c.h.b16 %v2666
    %v3309 = vunpack.c.l.b16 %v2667
    %v3310 = vunpack.c.h.b16 %v2667
    %v3311 = vunpack.c.l.b16 %v2668
    %v3312 = vunpack.c.h.b16 %v2668
    %v3313 = vunpack.c.l.b16 %v2669
    %v3314 = vunpack.c.l.b16 %v2670
    %v3315 = vunpack.c.h.b16 %v2670
    %v3316 = vunpack.c.l.b16 %v2671
    %v3317 = vunpack.c.h.b16 %v2671
    %v3318 = vunpack.c.l.b16 %v2672
    %v3319 = vunpack.c.h.b16 %v2672
    %v3320 = vunpack.c.l.b16 %v2673
    %v3321 = vunpack.c.l.b16 %v2674
    %v3322 = vunpack.c.h.b16 %v2674
    %v3323 = vunpack.c.l.b16 %v2675
    %v3324 = vunpack.c.h.b16 %v2675
    %v3325 = vunpack.c.l.b16 %v2676
    %v3326 = vunpack.c.h.b16 %v2676
    %v3327 = vunpack.c.l.b16 %v2677
    %v3328 = vunpack.c.l.b16 %v2678
    %v3329 = vunpack.c.h.b16 %v2678
    %v3330 = vunpack.c.l.b16 %v2679
    %v3331 = vunpack.c.h.b16 %v2679
    %v3332 = vunpack.c.l.b16 %v2680
    %v3333 = vunpack.c.h.b16 %v2680
    %v3334 = vunpack.c.l.b16 %v2681
    %v3335 = vunpack.c.l.b16 %v2682
    %v3336 = vunpack.c.h.b16 %v2682
    %v3337 = vunpack.c.l.b16 %v2683
    %v3338 = vunpack.c.h.b16 %v2683
    %v3339 = vunpack.c.l.b16 %v2684
    %v3340 = vunpack.c.h.b16 %v2684
    %v3341 = vunpack.c.l.b16 %v2685
    %v3342 = vunpack.c.l.b16 %v2686
    %v3343 = vunpack.c.h.b16 %v2686
    %v3344 = vunpack.c.l.b16 %v2687
    %v3345 = vunpack.c.h.b16 %v2687
    %v3346 = vunpack.c.l.b16 %v2688
    %v3347 = vunpack.c.h.b16 %v2688
    %v3348 = vunpack.c.l.b16 %v2689
    %v3349 = vunpack.c.l.b16 %v2690
    %v3350 = vunpack.c.h.b16 %v2690
    %v3351 = vunpack.c.l.b16 %v2691
    %v3352 = vunpack.c.h.b16 %v2691
    %v3353 = vunpack.c.l.b16 %v2692
    %v3354 = vunpack.c.h.b16 %v2692
    %v3355 = vunpack.c.l.b16 %v2693
    %v3356 = vunpack.c.l.b16 %v2694
    %v3357 = vunpack.c.h.b16 %v2694
    %v3358 = vunpack.c.l.b16 %v2695
    %v3359 = vunpack.c.h.b16 %v2695
    %v3360 = vunpack.c.l.b16 %v2696
    %v3361 = vunpack.c.h.b16 %v2696
    %v3362 = vunpack.c.l.b16 %v2697
    %v3363 = vunpack.c.l.b16 %v2698
    %v3364 = vunpack.c.h.b16 %v2698
    %v3365 = vunpack.c.l.b16 %v2699
    %v3366 = vunpack.c.h.b16 %v2699
    %v3367 = vunpack.c.l.b16 %v2700
    %v3368 = vunpack.c.h.b16 %v2700
    %v3369 = vunpack.c.l.b16 %v2701
    %v3370 = vunpack.c.l.b16 %v2702
    %v3371 = vunpack.c.h.b16 %v2702
    %v3372 = vunpack.c.l.b16 %v2703
    %v3373 = vunpack.c.h.b16 %v2703
    %v3374 = vunpack.c.l.b16 %v2704
    %v3375 = vunpack.c.h.b16 %v2704
    %v3376 = vunpack.c.l.b16 %v2705
    %v3377 = vunpack.c.l.b16 %v2706
    %v3378 = vunpack.c.h.b16 %v2706
    %v3379 = vunpack.c.l.b16 %v2707
    %v3380 = vunpack.c.h.b16 %v2707
    %v3381 = vunpack.c.l.b16 %v2708
    %v3382 = vunpack.c.h.b16 %v2708
    %v3383 = vunpack.c.l.b16 %v2709
    %v3384 = vunpack.c.l.b16 %v2710
    %v3385 = vunpack.c.h.b16 %v2710
    %v3386 = vunpack.c.l.b16 %v2711
    %v3387 = vunpack.c.h.b16 %v2711
    %v3388 = vunpack.c.l.b16 %v2712
    %v3389 = vunpack.c.h.b16 %v2712
    %v3390 = vunpack.c.l.b16 %v2713
    %v3391 = vunpack.c.l.b16 %v2714
    %v3392 = vunpack.c.h.b16 %v2714
    %v3393 = vunpack.c.l.b16 %v2715
    %v3394 = vunpack.c.h.b16 %v2715
    %v3395 = vunpack.c.l.b16 %v2716
    %v3396 = vunpack.c.h.b16 %v2716
    %v3397 = vunpack.c.l.b16 %v2717
    %v3398 = vunpack.c.l.b16 %v2718
    %v3399 = vunpack.c.h.b16 %v2718
    %v3400 = vunpack.c.l.b16 %v2719
    %v3401 = vunpack.c.h.b16 %v2719
    %v3402 = vunpack.c.l.b16 %v2720
    %v3403 = vunpack.c.h.b16 %v2720
    %v3404 = vunpack.c.l.b16 %v2721
    %v3405 = vunpack.c.l.b16 %v2722
    %v3406 = vunpack.c.h.b16 %v2722
    %v3407 = vunpack.c.l.b16 %v2723
    %v3408 = vunpack.c.h.b16 %v2723
    %v3409 = vunpack.c.l.b16 %v2724
    %v3410 = vunpack.c.h.b16 %v2724
    %v3411 = vunpack.c.l.b16 %v2725
    %v3412 = vunpack.c.l.b16 %v2726
    %v3413 = vunpack.c.h.b16 %v2726
    %v3414 = vunpack.c.l.b16 %v2727
    %v3415 = vunpack.c.h.b16 %v2727
    %v3416 = vunpack.c.l.b16 %v2728
    %v3417 = vunpack.c.h.b16 %v2728
    %v3418 = vunpack.c.l.b16 %v2729
    %v3419 = vunpack.c.l.b16 %v2730
    %v3420 = vunpack.c.h.b16 %v2730
    %v3421 = vunpack.c.l.b16 %v2731
    %v3422 = vunpack.c.h.b16 %v2731
    %v3423 = vunpack.c.l.b16 %v2732
    %v3424 = vunpack.c.h.b16 %v2732
    %v3425 = vunpack.c.l.b16 %v2733
    %v3426 = vunpack.c.l.b16 %v2734
    %v3427 = vunpack.c.h.b16 %v2734
    %v3428 = vunpack.c.l.b16 %v2735
    %v3429 = vunpack.c.h.b16 %v2735
    %v3430 = vunpack.c.l.b16 %v2736
    %v3431 = vunpack.c.h.b16 %v2736
    %v3432 = vunpack.c.l.b16 %v2737
    %v3433 = vunpack.c.l.b16 %v2738
    %v3434 = vunpack.c.h.b16 %v2738
    %v3435 = vunpack.c.l.b16 %v2739
    %v3436 = vunpack.c.h.b16 %v2739
    %v3437 = vunpack.c.l.b16 %v2740
    %v3438 = vunpack.c.h.b16 %v2740
    %v3439 = vunpack.c.l.b16 %v2741
    %v3440 = vunpack.c.l.b16 %v2742
    %v3441 = vunpack.c.h.b16 %v2742
    %v3442 = vunpack.c.l.b16 %v2743
    %v3443 = vunpack.c.h.b16 %v2743
    %v3444 = vunpack.c.l.b16 %v2744
    %v3445 = vunpack.c.h.b16 %v2744
    %v3446 = vunpack.c.l.b16 %v2745
    %v3447 = vunpack.c.l.b16 %v2746
    %v3448 = vunpack.c.h.b16 %v2746
    %v3449 = vunpack.c.l.b16 %v2747
    %v3450 = vunpack.c.h.b16 %v2747
    %v3451 = vunpack.c.l.b16 %v2748
    %v3452 = vunpack.c.h.b16 %v2748
    %v3453 = vunpack.c.l.b16 %v2749
    %v3454 = vpack.c.b16 %v3013, %v3006
    %v3455 = vpack.c.b16 %v3014, %v3007
    %v3456 = vpack.c.b16 %v3015, %v3008
    %v3457 = vpack.c.b16 %v3016, %v3009
    %v3458 = vpack.c.b16 %v3017, %v3010
    %v3459 = vpack.c.b16 %v3018, %v3011
    %v3460 = vpack.c.b16 %v3019, %v3012
    %v3461 = vpack.c.b16 %v3027, %v3020
    %v3462 = vpack.c.b16 %v3028, %v3021
    %v3463 = vpack.c.b16 %v3029, %v3022
    %v3464 = vpack.c.b16 %v3030, %v3023
    %v3465 = vpack.c.b16 %v3031, %v3024
    %v3466 = vpack.c.b16 %v3032, %v3025
    %v3467 = vpack.c.b16 %v3033, %v3026
    %v3468 = vpack.c.b16 %v3041, %v3034
    %v3469 = vpack.c.b16 %v3042, %v3035
    %v3470 = vpack.c.b16 %v3043, %v3036
    %v3471 = vpack.c.b16 %v3044, %v3037
    %v3472 = vpack.c.b16 %v3045, %v3038
    %v3473 = vpack.c.b16 %v3046, %v3039
    %v3474 = vpack.c.b16 %v3047, %v3040
    %v3475 = vpack.c.b16 %v3055, %v3048
    %v3476 = vpack.c.b16 %v3056, %v3049
    %v3477 = vpack.c.b16 %v3057, %v3050
    %v3478 = vpack.c.b16 %v3058, %v3051
    %v3479 = vpack.c.b16 %v3059, %v3052
    %v3480 = vpack.c.b16 %v3060, %v3053
    %v3481 = vpack.c.b16 %v3061, %v3054
    %v3482 = vpack.c.b16 %v3069, %v3062
    %v3483 = vpack.c.b16 %v3070, %v3063
    %v3484 = vpack.c.b16 %v3071, %v3064
    %v3485 = vpack.c.b16 %v3072, %v3065
    %v3486 = vpack.c.b16 %v3073, %v3066
    %v3487 = vpack.c.b16 %v3074, %v3067
    %v3488 = vpack.c.b16 %v3075, %v3068
    %v3489 = vpack.c.b16 %v3083, %v3076
    %v3490 = vpack.c.b16 %v3084, %v3077
    %v3491 = vpack.c.b16 %v3085, %v3078
    %v3492 = vpack.c.b16 %v3086, %v3079
    %v3493 = vpack.c.b16 %v3087, %v3080
    %v3494 = vpack.c.b16 %v3088, %v3081
    %v3495 = vpack.c.b16 %v3089, %v3082
    %v3496 = vpack.c.b16 %v3097, %v3090
    %v3497 = vpack.c.b16 %v3098, %v3091
    %v3498 = vpack.c.b16 %v3099, %v3092
    %v3499 = vpack.c.b16 %v3100, %v3093
    %v3500 = vpack.c.b16 %v3101, %v3094
    %v3501 = vpack.c.b16 %v3102, %v3095
    %v3502 = vpack.c.b16 %v3103, %v3096
    %v3503 = vpack.c.b16 %v3111, %v3104
    %v3504 = vpack.c.b16 %v3112, %v3105
    %v3505 = vpack.c.b16 %v3113, %v3106
    %v3506 = vpack.c.b16 %v3114, %v3107
    %v3507 = vpack.c.b16 %v3115, %v3108
    %v3508 = vpack.c.b16 %v3116, %v3109
    %v3509 = vpack.c.b16 %v3117, %v3110
    %v3510 = vpack.c.b16 %v3125, %v3118
    %v3511 = vpack.c.b16 %v3126, %v3119
    %v3512 = vpack.c.b16 %v3127, %v3120
    %v3513 = vpack.c.b16 %v3128, %v3121
    %v3514 = vpack.c.b16 %v3129, %v3122
    %v3515 = vpack.c.b16 %v3130, %v3123
    %v3516 = vpack.c.b16 %v3131, %v3124
    %v3517 = vpack.c.b16 %v3139, %v3132
    %v3518 = vpack.c.b16 %v3140, %v3133
    %v3519 = vpack.c.b16 %v3141, %v3134
    %v3520 = vpack.c.b16 %v3142, %v3135
    %v3521 = vpack.c.b16 %v3143, %v3136
    %v3522 = vpack.c.b16 %v3144, %v3137
    %v3523 = vpack.c.b16 %v3145, %v3138
    %v3524 = vpack.c.b16 %v3153, %v3146
    %v3525 = vpack.c.b16 %v3154, %v3147
    %v3526 = vpack.c.b16 %v3155, %v3148
    %v3527 = vpack.c.b16 %v3156, %v3149
    %v3528 = vpack.c.b16 %v3157, %v3150
    %v3529 = vpack.c.b16 %v3158, %v3151
    %v3530 = vpack.c.b16 %v3159, %v3152
    %v3531 = vpack.c.b16 %v3167, %v3160
    %v3532 = vpack.c.b16 %v3168, %v3161
    %v3533 = vpack.c.b16 %v3169, %v3162
    %v3534 = vpack.c.b16 %v3170, %v3163
    %v3535 = vpack.c.b16 %v3171, %v3164
    %v3536 = vpack.c.b16 %v3172, %v3165
    %v3537 = vpack.c.b16 %v3173, %v3166
    %v3538 = vpack.c.b16 %v3181, %v3174
    %v3539 = vpack.c.b16 %v3182, %v3175
    %v3540 = vpack.c.b16 %v3183, %v3176
    %v3541 = vpack.c.b16 %v3184, %v3177
    %v3542 = vpack.c.b16 %v3185, %v3178
    %v3543 = vpack.c.b16 %v3186, %v3179
    %v3544 = vpack.c.b16 %v3187, %v3180
    %v3545 = vpack.c.b16 %v3195, %v3188
    %v3546 = vpack.c.b16 %v3196, %v3189
    %v3547 = vpack.c.b16 %v3197, %v3190
    %v3548 = vpack.c.b16 %v3198, %v3191
    %v3549 = vpack.c.b16 %v3199, %v3192
    %v3550 = vpack.c.b16 %v3200, %v3193
    %v3551 = vpack.c.b16 %v3201, %v3194
    %v3552 = vpack.c.b16 %v3209, %v3202
    %v3553 = vpack.c.b16 %v3210, %v3203
    %v3554 = vpack.c.b16 %v3211, %v3204
    %v3555 = vpack.c.b16 %v3212, %v3205
    %v3556 = vpack.c.b16 %v3213, %v3206
    %v3557 = vpack.c.b16 %v3214, %v3207
    %v3558 = vpack.c.b16 %v3215, %v3208
    %v3559 = vpack.c.b16 %v3223, %v3216
    %v3560 = vpack.c.b16 %v3224, %v3217
    %v3561 = vpack.c.b16 %v3225, %v3218
    %v3562 = vpack.c.b16 %v3226, %v3219
    %v3563 = vpack.c.b16 %v3227, %v3220
    %v3564 = vpack.c.b16 %v3228, %v3221
    %v3565 = vpack.c.b16 %v3229, %v3222
    %v3566 = vpack.c.b16 %v3237, %v3230
    %v3567 = vpack.c.b16 %v3238, %v3231
    %v3568 = vpack.c.b16 %v3239, %v3232
    %v3569 = vpack.c.b16 %v3240, %v3233
    %v3570 = vpack.c.b16 %v3241, %v3234
    %v3571 = vpack.c.b16 %v3242, %v3235
    %v3572 = vpack.c.b16 %v3243, %v3236
    %v3573 = vpack.c.b16 %v3251, %v3244
    %v3574 = vpack.c.b16 %v3252, %v3245
    %v3575 = vpack.c.b16 %v3253, %v3246
    %v3576 = vpack.c.b16 %v3254, %v3247
    %v3577 = vpack.c.b16 %v3255, %v3248
    %v3578 = vpack.c.b16 %v3256, %v3249
    %v3579 = vpack.c.b16 %v3257, %v3250
    %v3580 = vpack.c.b16 %v3265, %v3258
    %v3581 = vpack.c.b16 %v3266, %v3259
    %v3582 = vpack.c.b16 %v3267, %v3260
    %v3583 = vpack.c.b16 %v3268, %v3261
    %v3584 = vpack.c.b16 %v3269, %v3262
    %v3585 = vpack.c.b16 %v3270, %v3263
    %v3586 = vpack.c.b16 %v3271, %v3264
    %v3587 = vpack.c.b16 %v3279, %v3272
    %v3588 = vpack.c.b16 %v3280, %v3273
    %v3589 = vpack.c.b16 %v3281, %v3274
    %v3590 = vpack.c.b16 %v3282, %v3275
    %v3591 = vpack.c.b16 %v3283, %v3276
    %v3592 = vpack.c.b16 %v3284, %v3277
    %v3593 = vpack.c.b16 %v3285, %v3278
    %v3594 = vpack.c.b16 %v3293, %v3286
    %v3595 = vpack.c.b16 %v3294, %v3287
    %v3596 = vpack.c.b16 %v3295, %v3288
    %v3597 = vpack.c.b16 %v3296, %v3289
    %v3598 = vpack.c.b16 %v3297, %v3290
    %v3599 = vpack.c.b16 %v3298, %v3291
    %v3600 = vpack.c.b16 %v3299, %v3292
    %v3601 = vpack.c.b16 %v3307, %v3300
    %v3602 = vpack.c.b16 %v3308, %v3301
    %v3603 = vpack.c.b16 %v3309, %v3302
    %v3604 = vpack.c.b16 %v3310, %v3303
    %v3605 = vpack.c.b16 %v3311, %v3304
    %v3606 = vpack.c.b16 %v3312, %v3305
    %v3607 = vpack.c.b16 %v3313, %v3306
    %v3608 = vpack.c.b16 %v3321, %v3314
    %v3609 = vpack.c.b16 %v3322, %v3315
    %v3610 = vpack.c.b16 %v3323, %v3316
    %v3611 = vpack.c.b16 %v3324, %v3317
    %v3612 = vpack.c.b16 %v3325, %v3318
    %v3613 = vpack.c.b16 %v3326, %v3319
    %v3614 = vpack.c.b16 %v3327, %v3320
    %v3615 = vpack.c.b16 %v3335, %v3328
    %v3616 = vpack.c.b16 %v3336, %v3329
    %v3617 = vpack.c.b16 %v3337, %v3330
    %v3618 = vpack.c.b16 %v3338, %v3331
    %v3619 = vpack.c.b16 %v3339, %v3332
    %v3620 = vpack.c.b16 %v3340, %v3333
    %v3621 = vpack.c.b16 %v3341, %v3334
    %v3622 = vpack.c.b16 %v3349, %v3342
    %v3623 = vpack.c.b16 %v3350, %v3343
    %v3624 = vpack.c.b16 %v3351, %v3344
    %v3625 = vpack.c.b16 %v3352, %v3345
    %v3626 = vpack.c.b16 %v3353, %v3346
    %v3627 = vpack.c.b16 %v3354, %v3347
    %v3628 = vpack.c.b16 %v3355, %v3348
    %v3629 = vpack.c.b16 %v3363, %v3356
    %v3630 = vpack.c.b16 %v3364, %v3357
    %v3631 = vpack.c.b16 %v3365, %v3358
    %v3632 = vpack.c.b16 %v3366, %v3359
    %v3633 = vpack.c.b16 %v3367, %v3360
    %v3634 = vpack.c.b16 %v3368, %v3361
    %v3635 = vpack.c.b16 %v3369, %v3362
    %v3636 = vpack.c.b16 %v3377, %v3370
    %v3637 = vpack.c.b16 %v3378, %v3371
    %v3638 = vpack.c.b16 %v3379, %v3372
    %v3639 = vpack.c.b16 %v3380, %v3373
    %v3640 = vpack.c.b16 %v3381, %v3374
    %v3641 = vpack.c.b16 %v3382, %v3375
    %v3642 = vpack.c.b16 %v3383, %v3376
    %v3643 = vpack.c.b16 %v3391, %v3384
    %v3644 = vpack.c.b16 %v3392, %v3385
    %v3645 = vpack.c.b16 %v3393, %v3386
    %v3646 = vpack.c.b16 %v3394, %v3387
    %v3647 = vpack.c.b16 %v3395, %v3388
    %v3648 = vpack.c.b16 %v3396, %v3389
    %v3649 = vpack.c.b16 %v3397, %v3390
    %v3650 = vpack.c.b16 %v3405, %v3398
    %v3651 = vpack.c.b16 %v3406, %v3399
    %v3652 = vpack.c.b16 %v3407, %v3400
    %v3653 = vpack.c.b16 %v3408, %v3401
    %v3654 = vpack.c.b16 %v3409, %v3402
    %v3655 = vpack.c.b16 %v3410, %v3403
    %v3656 = vpack.c.b16 %v3411, %v3404
    %v3657 = vpack.c.b16 %v3419, %v3412
    %v3658 = vpack.c.b16 %v3420, %v3413
    %v3659 = vpack.c.b16 %v3421, %v3414
    %v3660 = vpack.c.b16 %v3422, %v3415
    %v3661 = vpack.c.b16 %v3423, %v3416
    %v3662 = vpack.c.b16 %v3424, %v3417
    %v3663 = vpack.c.b16 %v3425, %v3418
    %v3664 = vpack.c.b16 %v3433, %v3426
    %v3665 = vpack.c.b16 %v3434, %v3427
    %v3666 = vpack.c.b16 %v3435, %v3428
    %v3667 = vpack.c.b16 %v3436, %v3429
    %v3668 = vpack.c.b16 %v3437, %v3430
    %v3669 = vpack.c.b16 %v3438, %v3431
    %v3670 = vpack.c.b16 %v3439, %v3432
    %v3671 = vpack.c.b16 %v3447, %v3440
    %v3672 = vpack.c.b16 %v3448, %v3441
    %v3673 = vpack.c.b16 %v3449, %v3442
    %v3674 = vpack.c.b16 %v3450, %v3443
    %v3675 = vpack.c.b16 %v3451, %v3444
    %v3676 = vpack.c.b16 %v3452, %v3445
    %v3677 = vpack.c.b16 %v3453, %v3446
    %3902 = vmatprep.subr.bf16.mxu0 %v3455
    %3903 = vmatpush1.bf16.msra.mxu0 %v3454
    %3904 = vmatprep.subr.bf16.mxu0 %v3462
    %3905 = vmatpush1.bf16.msra.mxu0 %v3461
    %3906 = vmatprep.subr.bf16.mxu0 %v3469
    %3907 = vmatpush1.bf16.msra.mxu0 %v3468
    %3908 = vmatprep.subr.bf16.mxu0 %v3476
    %3909 = vmatpush1.bf16.msra.mxu0 %v3475
    %3910 = vmatprep.subr.bf16.mxu0 %v3483
    %3911 = vmatpush1.bf16.msra.mxu0 %v3482
    %3912 = vmatprep.subr.bf16.mxu0 %v3490
    %3913 = vmatpush1.bf16.msra.mxu0 %v3489
    %3914 = vmatprep.subr.bf16.mxu0 %v3497
    %3915 = vmatpush1.bf16.msra.mxu0 %v3496
    %3916 = vmatprep.subr.bf16.mxu0 %v3504
    %3917 = vmatpush1.bf16.msra.mxu0 %v3503
    %3918 = vmatprep.subr.bf16.mxu0 %v3511
    %3919 = vmatpush1.bf16.msra.mxu0 %v3510
    %3920 = vmatprep.subr.bf16.mxu0 %v3518
    %3921 = vmatpush1.bf16.msra.mxu0 %v3517
    %3922 = vmatprep.subr.bf16.mxu0 %v3525
    %3923 = vmatpush1.bf16.msra.mxu0 %v3524
    %3924 = vmatprep.subr.bf16.mxu0 %v3532
    %3925 = vmatpush1.bf16.msra.mxu0 %v3531
    %3926 = vmatprep.subr.bf16.mxu0 %v3539
    %3927 = vmatpush1.bf16.msra.mxu0 %v3538
    %3928 = vmatprep.subr.bf16.mxu0 %v3546
    %3929 = vmatpush1.bf16.msra.mxu0 %v3545
    %3930 = vmatprep.subr.bf16.mxu0 %v3553
    %3931 = vmatpush1.bf16.msra.mxu0 %v3552
    %3932 = vmatprep.subr.bf16.mxu0 %v3560
    %3933 = vmatpush1.bf16.msra.mxu0 %v3559
    %3934 = vmatprep.mubr.bf16.mxu0 %v2491
    %3935 = vmatmul.mubr.bf16.gmra.mrb[0].mxu0 %v2490
    %v3936 = vpop.f32.mrb[0].mxu0
    %v3937 = vadd.f32 0.0, %v3936
    %v3938 = vpop.f32.mrb[0].mxu0
    %v3939 = vadd.f32 0.0, %v3938
    %v3940 = vpop.f32.mrb[0].mxu0
    %v3941 = vpop.f32.mrb[0].mxu0
    %3942 = vdwg.mxu0
    %3943 = vmatprep.subr.bf16.mxu0 %v3567
    %3944 = vmatpush1.bf16.msra.mxu0 %v3566
    %3945 = vmatprep.subr.bf16.mxu0 %v3574
    %3946 = vmatpush1.bf16.msra.mxu0 %v3573
    %3947 = vmatprep.subr.bf16.mxu0 %v3581
    %3948 = vmatpush1.bf16.msra.mxu0 %v3580
    %3949 = vmatprep.subr.bf16.mxu0 %v3588
    %3950 = vmatpush1.bf16.msra.mxu0 %v3587
    %3951 = vmatprep.subr.bf16.mxu0 %v3595
    %3952 = vmatpush1.bf16.msra.mxu0 %v3594
    %3953 = vmatprep.subr.bf16.mxu0 %v3602
    %3954 = vmatpush1.bf16.msra.mxu0 %v3601
    %3955 = vmatprep.subr.bf16.mxu0 %v3609
    %3956 = vmatpush1.bf16.msra.mxu0 %v3608
    %3957 = vmatprep.subr.bf16.mxu0 %v3616
    %3958 = vmatpush1.bf16.msra.mxu0 %v3615
    %3959 = vmatprep.subr.bf16.mxu0 %v3623
    %3960 = vmatpush1.bf16.msra.mxu0 %v3622
    %3961 = vmatprep.subr.bf16.mxu0 %v3630
    %3962 = vmatpush1.bf16.msra.mxu0 %v3629
    %3963 = vmatprep.subr.bf16.mxu0 %v3637
    %3964 = vmatpush1.bf16.msra.mxu0 %v3636
    %3965 = vmatprep.subr.bf16.mxu0 %v3644
    %3966 = vmatpush1.bf16.msra.mxu0 %v3643
    %3967 = vmatprep.subr.bf16.mxu0 %v3651
    %3968 = vmatpush1.bf16.msra.mxu0 %v3650
    %3969 = vmatprep.subr.bf16.mxu0 %v3658
    %3970 = vmatpush1.bf16.msra.mxu0 %v3657
    %3971 = vmatprep.subr.bf16.mxu0 %v3665
    %3972 = vmatpush1.bf16.msra.mxu0 %v3664
    %3973 = vmatprep.subr.bf16.mxu0 %v3672
    %3974 = vmatpush1.bf16.msra.mxu0 %v3671
    %3975 = vmatprep.mubr.bf16.mxu0 %v2493
    %3976 = vmatmul.mubr.bf16.gmra.mrb[0].mxu0 %v2492
    %v3977 = vpop.f32.mrb[0].mxu0
    %v3978 = vadd.f32 %v3937, %v3977
    %v3979 = vpop.f32.mrb[0].mxu0
    %v3980 = vadd.f32 %v3939, %v3979
    %v3981 = vpop.f32.mrb[0].mxu0
    %v3982 = vpop.f32.mrb[0].mxu0
    %3983 = vdwg.mxu0
    %3984 = vmatprep.subr.bf16.mxu0 %v3457
    %3985 = vmatpush1.bf16.msra.mxu0 %v3456
    %3986 = vmatprep.subr.bf16.mxu0 %v3464
    %3987 = vmatpush1.bf16.msra.mxu0 %v3463
    %3988 = vmatprep.subr.bf16.mxu0 %v3471
    %3989 = vmatpush1.bf16.msra.mxu0 %v3470
    %3990 = vmatprep.subr.bf16.mxu0 %v3478
    %3991 = vmatpush1.bf16.msra.mxu0 %v3477
    %3992 = vmatprep.subr.bf16.mxu0 %v3485
    %3993 = vmatpush1.bf16.msra.mxu0 %v3484
    %3994 = vmatprep.subr.bf16.mxu0 %v3492
    %3995 = vmatpush1.bf16.msra.mxu0 %v3491
    %3996 = vmatprep.subr.bf16.mxu0 %v3499
    %3997 = vmatpush1.bf16.msra.mxu0 %v3498
    %3998 = vmatprep.subr.bf16.mxu0 %v3506
    %3999 = vmatpush1.bf16.msra.mxu0 %v3505
    %4000 = vmatprep.subr.bf16.mxu0 %v3513
    %4001 = vmatpush1.bf16.msra.mxu0 %v3512
    %4002 = vmatprep.subr.bf16.mxu0 %v3520
    %4003 = vmatpush1.bf16.msra.mxu0 %v3519
    %4004 = vmatprep.subr.bf16.mxu0 %v3527
    %4005 = vmatpush1.bf16.msra.mxu0 %v3526
    %4006 = vmatprep.subr.bf16.mxu0 %v3534
    %4007 = vmatpush1.bf16.msra.mxu0 %v3533
    %4008 = vmatprep.subr.bf16.mxu0 %v3541
    %4009 = vmatpush1.bf16.msra.mxu0 %v3540
    %4010 = vmatprep.subr.bf16.mxu0 %v3548
    %4011 = vmatpush1.bf16.msra.mxu0 %v3547
    %4012 = vmatprep.subr.bf16.mxu0 %v3555
    %4013 = vmatpush1.bf16.msra.mxu0 %v3554
    %4014 = vmatprep.subr.bf16.mxu0 %v3562
    %4015 = vmatpush1.bf16.msra.mxu0 %v3561
    %4016 = vmatprep.mubr.bf16.mxu0 %v2491
    %4017 = vmatmul.mubr.bf16.gmra.mrb[0].mxu0 %v2490
    %v4018 = vpop.f32.mrb[0].mxu0
    %v4019 = vadd.f32 0.0, %v4018
    %v4020 = vpop.f32.mrb[0].mxu0
    %v4021 = vadd.f32 0.0, %v4020
    %v4022 = vpop.f32.mrb[0].mxu0
    %v4023 = vpop.f32.mrb[0].mxu0
    %4024 = vdwg.mxu0
    %4025 = vmatprep.subr.bf16.mxu0 %v3569
    %4026 = vmatpush1.bf16.msra.mxu0 %v3568
    %4027 = vmatprep.subr.bf16.mxu0 %v3576
    %4028 = vmatpush1.bf16.msra.mxu0 %v3575
    %4029 = vmatprep.subr.bf16.mxu0 %v3583
    %4030 = vmatpush1.bf16.msra.mxu0 %v3582
    %4031 = vmatprep.subr.bf16.mxu0 %v3590
    %4032 = vmatpush1.bf16.msra.mxu0 %v3589
    %4033 = vmatprep.subr.bf16.mxu0 %v3597
    %4034 = vmatpush1.bf16.msra.mxu0 %v3596
    %4035 = vmatprep.subr.bf16.mxu0 %v3604
    %4036 = vmatpush1.bf16.msra.mxu0 %v3603
    %4037 = vmatprep.subr.bf16.mxu0 %v3611
    %4038 = vmatpush1.bf16.msra.mxu0 %v3610
    %4039 = vmatprep.subr.bf16.mxu0 %v3618
    %4040 = vmatpush1.bf16.msra.mxu0 %v3617
    %4041 = vmatprep.subr.bf16.mxu0 %v3625
    %4042 = vmatpush1.bf16.msra.mxu0 %v3624
    %4043 = vmatprep.subr.bf16.mxu0 %v3632
    %4044 = vmatpush1.bf16.msra.mxu0 %v3631
    %4045 = vmatprep.subr.bf16.mxu0 %v3639
    %4046 = vmatpush1.bf16.msra.mxu0 %v3638
    %4047 = vmatprep.subr.bf16.mxu0 %v3646
    %4048 = vmatpush1.bf16.msra.mxu0 %v3645
    %4049 = vmatprep.subr.bf16.mxu0 %v3653
    %4050 = vmatpush1.bf16.msra.mxu0 %v3652
    %4051 = vmatprep.subr.bf16.mxu0 %v3660
    %4052 = vmatpush1.bf16.msra.mxu0 %v3659
    %4053 = vmatprep.subr.bf16.mxu0 %v3667
    %4054 = vmatpush1.bf16.msra.mxu0 %v3666
    %4055 = vmatprep.subr.bf16.mxu0 %v3674
    %4056 = vmatpush1.bf16.msra.mxu0 %v3673
    %4057 = vmatprep.mubr.bf16.mxu0 %v2493
    %4058 = vmatmul.mubr.bf16.gmra.mrb[0].mxu0 %v2492
    %v4059 = vpop.f32.mrb[0].mxu0
    %v4060 = vadd.f32 %v4019, %v4059
    %v4061 = vpop.f32.mrb[0].mxu0
    %v4062 = vadd.f32 %v4021, %v4061
    %v4063 = vpop.f32.mrb[0].mxu0
    %v4064 = vpop.f32.mrb[0].mxu0
    %4065 = vdwg.mxu0
    %4066 = vmatprep.subr.bf16.mxu0 %v3459
    %4067 = vmatpush1.bf16.msra.mxu0 %v3458
    %4068 = vmatprep.subr.bf16.mxu0 %v3466
    %4069 = vmatpush1.bf16.msra.mxu0 %v3465
    %4070 = vmatprep.subr.bf16.mxu0 %v3473
    %4071 = vmatpush1.bf16.msra.mxu0 %v3472
    %4072 = vmatprep.subr.bf16.mxu0 %v3480
    %4073 = vmatpush1.bf16.msra.mxu0 %v3479
    %4074 = vmatprep.subr.bf16.mxu0 %v3487
    %4075 = vmatpush1.bf16.msra.mxu0 %v3486
    %4076 = vmatprep.subr.bf16.mxu0 %v3494
    %4077 = vmatpush1.bf16.msra.mxu0 %v3493
    %4078 = vmatprep.subr.bf16.mxu0 %v3501
    %4079 = vmatpush1.bf16.msra.mxu0 %v3500
    %4080 = vmatprep.subr.bf16.mxu0 %v3508
    %4081 = vmatpush1.bf16.msra.mxu0 %v3507
    %4082 = vmatprep.subr.bf16.mxu0 %v3515
    %4083 = vmatpush1.bf16.msra.mxu0 %v3514
    %4084 = vmatprep.subr.bf16.mxu0 %v3522
    %4085 = vmatpush1.bf16.msra.mxu0 %v3521
    %4086 = vmatprep.subr.bf16.mxu0 %v3529
    %4087 = vmatpush1.bf16.msra.mxu0 %v3528
    %4088 = vmatprep.subr.bf16.mxu0 %v3536
    %4089 = vmatpush1.bf16.msra.mxu0 %v3535
    %4090 = vmatprep.subr.bf16.mxu0 %v3543
    %4091 = vmatpush1.bf16.msra.mxu0 %v3542
    %4092 = vmatprep.subr.bf16.mxu0 %v3550
    %4093 = vmatpush1.bf16.msra.mxu0 %v3549
    %4094 = vmatprep.subr.bf16.mxu0 %v3557
    %4095 = vmatpush1.bf16.msra.mxu0 %v3556
    %4096 = vmatprep.subr.bf16.mxu0 %v3564
    %4097 = vmatpush1.bf16.msra.mxu0 %v3563
    %4098 = vmatprep.mubr.bf16.mxu0 %v2491
    %4099 = vmatmul.mubr.bf16.gmra.mrb[0].mxu0 %v2490
    %v4100 = vpop.f32.mrb[0].mxu0
    %v4101 = vadd.f32 0.0, %v4100
    %v4102 = vpop.f32.mrb[0].mxu0
    %v4103 = vadd.f32 0.0, %v4102
    %v4104 = vpop.f32.mrb[0].mxu0
    %v4105 = vpop.f32.mrb[0].mxu0
    %4106 = vdwg.mxu0
    %4107 = vmatprep.subr.bf16.mxu0 %v3571
    %4108 = vmatpush1.bf16.msra.mxu0 %v3570
    %4109 = vmatprep.subr.bf16.mxu0 %v3578
    %4110 = vmatpush1.bf16.msra.mxu0 %v3577
    %4111 = vmatprep.subr.bf16.mxu0 %v3585
    %4112 = vmatpush1.bf16.msra.mxu0 %v3584
    %4113 = vmatprep.subr.bf16.mxu0 %v3592
    %4114 = vmatpush1.bf16.msra.mxu0 %v3591
    %4115 = vmatprep.subr.bf16.mxu0 %v3599
    %4116 = vmatpush1.bf16.msra.mxu0 %v3598
    %4117 = vmatprep.subr.bf16.mxu0 %v3606
    %4118 = vmatpush1.bf16.msra.mxu0 %v3605
    %4119 = vmatprep.subr.bf16.mxu0 %v3613
    %4120 = vmatpush1.bf16.msra.mxu0 %v3612
    %4121 = vmatprep.subr.bf16.mxu0 %v3620
    %4122 = vmatpush1.bf16.msra.mxu0 %v3619
    %4123 = vmatprep.subr.bf16.mxu0 %v3627
    %4124 = vmatpush1.bf16.msra.mxu0 %v3626
    %4125 = vmatprep.subr.bf16.mxu0 %v3634
    %4126 = vmatpush1.bf16.msra.mxu0 %v3633
    %4127 = vmatprep.subr.bf16.mxu0 %v3641
    %4128 = vmatpush1.bf16.msra.mxu0 %v3640
    %4129 = vmatprep.subr.bf16.mxu0 %v3648
    %4130 = vmatpush1.bf16.msra.mxu0 %v3647
    %4131 = vmatprep.subr.bf16.mxu0 %v3655
    %4132 = vmatpush1.bf16.msra.mxu0 %v3654
    %4133 = vmatprep.subr.bf16.mxu0 %v3662
    %4134 = vmatpush1.bf16.msra.mxu0 %v3661
    %4135 = vmatprep.subr.bf16.mxu0 %v3669
    %4136 = vmatpush1.bf16.msra.mxu0 %v3668
    %4137 = vmatprep.subr.bf16.mxu0 %v3676
    %4138 = vmatpush1.bf16.msra.mxu0 %v3675
    %4139 = vmatprep.mubr.bf16.mxu0 %v2493
    %4140 = vmatmul.mubr.bf16.gmra.mrb[0].mxu0 %v2492
    %v4141 = vpop.f32.mrb[0].mxu0
    %v4142 = vadd.f32 %v4101, %v4141
    %v4143 = vpop.f32.mrb[0].mxu0
    %v4144 = vadd.f32 %v4103, %v4143
    %v4145 = vpop.f32.mrb[0].mxu0
    %v4146 = vpop.f32.mrb[0].mxu0
    %4147 = vdwg.mxu0
    %4148 = vmatprep.subr.bf16.mxu0 0
    %4149 = vmatpush1.bf16.msra.mxu0 %v3460
    %4150 = vmatprep.subr.bf16.mxu0 0
    %4151 = vmatpush1.bf16.msra.mxu0 %v3467
    %4152 = vmatprep.subr.bf16.mxu0 0
    %4153 = vmatpush1.bf16.msra.mxu0 %v3474
    %4154 = vmatprep.subr.bf16.mxu0 0
    %4155 = vmatpush1.bf16.msra.mxu0 %v3481
    %4156 = vmatprep.subr.bf16.mxu0 0
    %4157 = vmatpush1.bf16.msra.mxu0 %v3488
    %4158 = vmatprep.subr.bf16.mxu0 0
    %4159 = vmatpush1.bf16.msra.mxu0 %v3495
    %4160 = vmatprep.subr.bf16.mxu0 0
    %4161 = vmatpush1.bf16.msra.mxu0 %v3502
    %4162 = vmatprep.subr.bf16.mxu0 0
    %4163 = vmatpush1.bf16.msra.mxu0 %v3509
    %4164 = vmatprep.subr.bf16.mxu0 0
    %4165 = vmatpush1.bf16.msra.mxu0 %v3516
    %4166 = vmatprep.subr.bf16.mxu0 0
    %4167 = vmatpush1.bf16.msra.mxu0 %v3523
    %4168 = vmatprep.subr.bf16.mxu0 0
    %4169 = vmatpush1.bf16.msra.mxu0 %v3530
    %4170 = vmatprep.subr.bf16.mxu0 0
    %4171 = vmatpush1.bf16.msra.mxu0 %v3537
    %4172 = vmatprep.subr.bf16.mxu0 0
    %4173 = vmatpush1.bf16.msra.mxu0 %v3544
    %4174 = vmatprep.subr.bf16.mxu0 0
    %4175 = vmatpush1.bf16.msra.mxu0 %v3551
    %4176 = vmatprep.subr.bf16.mxu0 0
    %4177 = vmatpush1.bf16.msra.mxu0 %v3558
    %4178 = vmatprep.subr.bf16.mxu0 0
    %4179 = vmatpush1.bf16.msra.mxu0 %v3565
    %4180 = vmatprep.mubr.bf16.mxu0 %v2491
    %4181 = vmatmul.mubr.bf16.gmra.mrb[0].mxu0 %v2490
    %v4182 = vpop.f32.mrb[0].mxu0
    %v4183 = vadd.f32 0.0, %v4182
    %v4184 = vpop.f32.mrb[0].mxu0
    %v4185 = vpop.f32.mrb[0].mxu0
    %v4186 = vpop.f32.mrb[0].mxu0
    %4187 = vdwg.mxu0
    %4188 = vmatprep.subr.bf16.mxu0 0
    %4189 = vmatpush1.bf16.msra.mxu0 %v3572
    %4190 = vmatprep.subr.bf16.mxu0 0
    %4191 = vmatpush1.bf16.msra.mxu0 %v3579
    %4192 = vmatprep.subr.bf16.mxu0 0
    %4193 = vmatpush1.bf16.msra.mxu0 %v3586
    %4194 = vmatprep.subr.bf16.mxu0 0
    %4195 = vmatpush1.bf16.msra.mxu0 %v3593
    %4196 = vmatprep.subr.bf16.mxu0 0
    %4197 = vmatpush1.bf16.msra.mxu0 %v3600
    %4198 = vmatprep.subr.bf16.mxu0 0
    %4199 = vmatpush1.bf16.msra.mxu0 %v3607
    %4200 = vmatprep.subr.bf16.mxu0 0
    %4201 = vmatpush1.bf16.msra.mxu0 %v3614
    %4202 = vmatprep.subr.bf16.mxu0 0
    %4203 = vmatpush1.bf16.msra.mxu0 %v3621
    %4204 = vmatprep.subr.bf16.mxu0 0
    %4205 = vmatpush1.bf16.msra.mxu0 %v3628
    %4206 = vmatprep.subr.bf16.mxu0 0
    %4207 = vmatpush1.bf16.msra.mxu0 %v3635
    %4208 = vmatprep.subr.bf16.mxu0 0
    %4209 = vmatpush1.bf16.msra.mxu0 %v3642
    %4210 = vmatprep.subr.bf16.mxu0 0
    %4211 = vmatpush1.bf16.msra.mxu0 %v3649
    %4212 = vmatprep.subr.bf16.mxu0 0
    %4213 = vmatpush1.bf16.msra.mxu0 %v3656
    %4214 = vmatprep.subr.bf16.mxu0 0
    %4215 = vmatpush1.bf16.msra.mxu0 %v3663
    %4216 = vmatprep.subr.bf16.mxu0 0
    %4217 = vmatpush1.bf16.msra.mxu0 %v3670
    %4218 = vmatprep.subr.bf16.mxu0 0
    %4219 = vmatpush1.bf16.msra.mxu0 %v3677
    %4220 = vmatprep.mubr.bf16.mxu0 %v2493
    %4221 = vmatmul.mubr.bf16.gmra.mrb[0].mxu0 %v2492
    %v4222 = vpop.f32.mrb[0].mxu0
    %v4223 = vadd.f32 %v4183, %v4222
    %v4224 = vpop.f32.mrb[0].mxu0
    %v4225 = vpop.f32.mrb[0].mxu0
    %v4226 = vpop.f32.mrb[0].mxu0
    %4227 = vdwg.mxu0
    %v4228 = vpack.c.bf16 %v3978, %v3978
    %v4229 = vpack.c.bf16 %v3980, %v3980
    %v4230 = vpack.c.bf16 %v4060, %v4060
    %v4231 = vpack.c.bf16 %v4062, %v4062
    %v4232 = vpack.c.bf16 %v4142, %v4142
    %v4233 = vpack.c.bf16 %v4144, %v4144
    %v4234 = vpack.c.bf16 %v4223, %v4223
    %v4235 = vld [vmem:[%s8] sm:$0xff]
    %v4237 = vlaneseq
    %v4238 = vshrl.u32 %v4237, 7
    %v4239 = vsub.s32 0, %v4238
    %v4240 = vrot.slane %v4235, %v4239
    %v4241 = vlaneseq
    %v4242 = vshrl.u32 %v4241, 7
    %v4243 = vsub.s32 1, %v4242
    %v4244 = vrot.slane %v4235, %v4243
    %v4245 = vlaneseq
    %v4246 = vshrl.u32 %v4245, 7
    %v4247 = vsub.s32 2, %v4246
    %v4248 = vrot.slane %v4235, %v4247
    %v4249 = vlaneseq
    %v4250 = vshrl.u32 %v4249, 7
    %v4251 = vsub.s32 3, %v4250
    %v4252 = vrot.slane %v4235, %v4251
    %v4253 = vlaneseq
    %v4254 = vshrl.u32 %v4253, 7
    %v4255 = vsub.s32 4, %v4254
    %v4256 = vrot.slane %v4235, %v4255
    %v4257 = vlaneseq
    %v4258 = vshrl.u32 %v4257, 7
    %v4259 = vsub.s32 5, %v4258
    %v4260 = vrot.slane %v4235, %v4259
    %v4261 = vlaneseq
    %v4262 = vshrl.u32 %v4261, 7
    %v4263 = vsub.s32 6, %v4262
    %v4264 = vrot.slane %v4235, %v4263
    %v4272 = vpack.c.bf16 %v4240, %v4240
    %v4273 = vpack.c.bf16 %v4244, %v4244
    %v4274 = vpack.c.bf16 %v4248, %v4248
    %v4275 = vpack.c.bf16 %v4252, %v4252
    %v4276 = vpack.c.bf16 %v4256, %v4256
    %v4277 = vpack.c.bf16 %v4260, %v4260
    %v4278 = vpack.c.bf16 %v4264, %v4264
    %v4280 = vpack.i.b16 %v4272, %v4272
    %v4282 = vlaneseq
    %v4283 = vshrl.u32 %v4282, 7
    %v4284 = vsub.s32 0, %v4283
    %v4285 = vrot.slane %v4280, %v4284
    %v4287 = vpack.i.b16 %v4273, %v4273
    %v4289 = vlaneseq
    %v4290 = vshrl.u32 %v4289, 7
    %v4291 = vsub.s32 0, %v4290
    %v4292 = vrot.slane %v4287, %v4291
    %v4294 = vpack.i.b16 %v4274, %v4274
    %v4296 = vlaneseq
    %v4297 = vshrl.u32 %v4296, 7
    %v4298 = vsub.s32 0, %v4297
    %v4299 = vrot.slane %v4294, %v4298
    %v4301 = vpack.i.b16 %v4275, %v4275
    %v4303 = vlaneseq
    %v4304 = vshrl.u32 %v4303, 7
    %v4305 = vsub.s32 0, %v4304
    %v4306 = vrot.slane %v4301, %v4305
    %v4308 = vpack.i.b16 %v4276, %v4276
    %v4310 = vlaneseq
    %v4311 = vshrl.u32 %v4310, 7
    %v4312 = vsub.s32 0, %v4311
    %v4313 = vrot.slane %v4308, %v4312
    %v4315 = vpack.i.b16 %v4277, %v4277
    %v4317 = vlaneseq
    %v4318 = vshrl.u32 %v4317, 7
    %v4319 = vsub.s32 0, %v4318
    %v4320 = vrot.slane %v4315, %v4319
    %v4322 = vpack.i.b16 %v4278, %v4278
    %v4324 = vlaneseq
    %v4325 = vshrl.u32 %v4324, 7
    %v4326 = vsub.s32 0, %v4325
    %v4327 = vrot.slane %v4322, %v4326
    %v4328 = vadd.bf16 %v4228, %v4285
    %v4329 = vadd.bf16 %v4229, %v4292
    %v4330 = vadd.bf16 %v4230, %v4299
    %v4331 = vadd.bf16 %v4231, %v4306
    %v4332 = vadd.bf16 %v4232, %v4313
    %v4333 = vadd.bf16 %v4233, %v4320
    %v4334 = vadd.bf16 %v4234, %v4327
    %v4335 = vtanh.bf16.pop %v4328
    %v4336 = vtanh.bf16.pop %v4329
    %v4337 = vtanh.bf16.pop %v4330
    %v4338 = vtanh.bf16.pop %v4331
    %v4339 = vtanh.bf16.pop %v4332
    %v4340 = vtanh.bf16.pop %v4333
    %v4341 = vtanh.bf16.pop %v4334
    %v4349 = vunpack.c.l.b16 %v4335
    %v4350 = vunpack.c.l.b16 %v4336
    %v4351 = vunpack.c.l.b16 %v4337
    %v4352 = vunpack.c.l.b16 %v4338
    %v4353 = vunpack.c.l.b16 %v4339
    %v4354 = vunpack.c.l.b16 %v4340
    %v4355 = vunpack.c.l.b16 %v4341
    %v4356 = vpack.c.b16 %v4350, %v4349
    %v4357 = vpack.c.b16 %v4352, %v4351
    %v4358 = vpack.c.b16 %v4354, %v4353
    %v4359 = vpack.c.b16 %v4355, %v4355
    %4364 = vst [vmem:[#allocation13] sm:$0xff] %v4356
    %4365 = vst [vmem:[#allocation13 + $0x8] sm:$0xff] %v4357
    %4366 = vst [vmem:[#allocation13 + $0x10] sm:$0xff] %v4358
    %4367 = vst [vmem:[#allocation13 + $0x18] sm:$0xf] %v4359
    %4368 = vst [vmem:[#allocation14] sm:$0xff] %v2184
    // Predicated region
    $region62: #{tpu_custom_call.1} parent=1 // pred_check
      _
    $region63: #{tpu_custom_call.1} parent=1 // pred_check_branch
      %4370 = sbr.rel (0) target = $region65
    $region64: #{tpu_custom_call.1} parent=1 // pred_region
      %s4372 = ssub.s32 448, 448
      %4373 = vsyncadd [#allocation4], %s4372
      %s4375 = sshll.u32 [#allocation13], 4
      %s4376 = int_to_ptr.vmem [resolvable:$true] %s4375
      %4378 = dma.vmem_to_hbm [thread:$0]  %s4376, 448, %s9, [#allocation4]
    $region65: #{tpu_custom_call.1} parent=1 // pred_fallthru
      _
    // Predicated region
    $region66: #{tpu_custom_call.1} parent=1 // pred_check
      _
    $region67: #{tpu_custom_call.1} parent=1 // pred_check_branch
      %4380 = sbr.rel (0) target = $region69
    $region68: #{tpu_custom_call.1} parent=1 // pred_region
      %s4382 = ssub.s32 128, 128
      %4383 = vsyncadd [#allocation15], %s4382
      %s4385 = sshll.u32 [#allocation14], 4
      %s4386 = int_to_ptr.vmem [resolvable:$true] %s4385
      %4388 = dma.vmem_to_hbm [thread:$0]  %s4386, 128, %s10, [#allocation15]
    $region69: #{tpu_custom_call.1} parent=1 // pred_fallthru
      _
    // Predicated region
    $region70: #{tpu_custom_call.1} parent=1 // pred_check
      _
    $region71: #{tpu_custom_call.1} parent=1 // pred_check_branch
      %4390 = sbr.rel (0) target = $region73
    $region72: #{tpu_custom_call.1} parent=1 // pred_region
      %4391 = dma.done [#allocation4], 448
    $region73: #{tpu_custom_call.1} parent=1 // pred_fallthru
      _
    // Predicated region
    $region74: #{tpu_custom_call.1} parent=1 // pred_check
      _
    $region75: #{tpu_custom_call.1} parent=1 // pred_check_branch
      %4393 = sbr.rel (0) target = $region77
    $region76: #{tpu_custom_call.1} parent=1 // pred_region
      %4394 = dma.done [#allocation15], 128
    $region77: #{tpu_custom_call.1} parent=1 // pred_fallthru
      _
    %4395 = vsyncpa [#allocation3], 1
    %4396 = vsyncpa [#allocation6], 1
    %4397 = vsyncpa [#allocation9], 1
    %4398 = vsyncpa [#allocation12], 1
    %4399 = vsyncpa [#allocation4], 1
    %4400 = vsyncpa [#allocation15], 1

</llo_original>
